<compile_context>
chip_gen: v7x
topology: tpu7x:2x2x1
jax: 0.10.0
libtpu: 0.0.40
codegen_flags: <defaults>
</compile_context>

<pallas_src>
import functools

import jax
import jax.numpy as jnp
from jax.experimental import pallas as pl
from jax.experimental.pallas import tpu as pltpu

LN_EPS = 1e-5                  # torch.nn.LayerNorm default
_MM_DTYPE = jnp.bfloat16       # matmul-operand dtype (flip to jnp.float32 for full f32)

# Per-layer merged (block-diagonal / lane-tiled) parameters, stacked on a
# leading `depth` axis so the sequential grid axis prefetches layer l+1 while
# layer l computes.
_STACKED_ORDER = ("ln1_w", "ln1_b", "w_qkv", "w_out", "b_out",
                  "ln2_w", "ln2_b", "ff_w1", "ff_b1", "ff_w2", "ff_b2")


# ----------------------------- kernel helpers ------------------------------ #

def _dual_layernorm(xy, w2, b2, d, left_mask):
    """LayerNorm applied independently to the two lane halves of (M, 2*d).

    The PyTorch PreNorm applies the SAME LayerNorm to both streams, so w2/b2
    are the LN params tiled to 2*d lanes; statistics are per-half (masked
    reductions -> no lane slicing / re-concatenation of the merged slab).
    """
    inv_d = 1.0 / d
    sl = jnp.sum(jnp.where(left_mask, xy, 0.0), axis=-1, keepdims=True)
    sr = jnp.sum(jnp.where(left_mask, 0.0, xy), axis=-1, keepdims=True)
    mu = jnp.where(left_mask, sl, sr) * inv_d
    xc = xy - mu
    sq = xc * xc
    vl = jnp.sum(jnp.where(left_mask, sq, 0.0), axis=-1, keepdims=True)
    vr = jnp.sum(jnp.where(left_mask, 0.0, sq), axis=-1, keepdims=True)
    var = jnp.where(left_mask, vl, vr) * inv_d
    return xc * jax.lax.rsqrt(var + LN_EPS) * w2 + b2


def _gelu(x):
    # TODO(synk): torch.nn.GELU defaults to the exact erf form; the tanh
    # approximation is used for robust Mosaic lowering (~1e-3 difference).
    return jax.nn.gelu(x, approximate=True)


# ------------------------ fused transformer kernel -------------------------- #

def _fused_kernel(heads, dim_head, Bt, N, depth, D,
                  xy_ref,
                  ln1w_ref, ln1b_ref, wqkv_ref, wout_ref, bout_ref,
                  ln2w_ref, ln2b_ref, fw1_ref, fb1_ref, fw2_ref, fb2_ref,
                  lnfw_ref, lnfb_ref,
                  out_ref):
    l = pl.program_id(1)                     # sequential layer index
    inner = heads * dim_head
    M = Bt * N

    # The (M, 2D) output block is the layer-to-layer carry (resident in VMEM
    # across the "arbitrary" depth axis).  Initialize it from the input once.
    @pl.when(l == 0)
    def _():
        out_ref[...] = xy_ref[...]

    xy = out_ref[...]                        # (M, 2D) f32: lanes [0:D]=x, [D:2D]=y

    left = jax.lax.broadcasted_iota(jnp.int32, (M, 2 * D), 1) < D

    # ---------------- PreNorm (shared LN) + cross attention ---------------- #
    xyn = _dual_layernorm(xy, ln1w_ref[0], ln1b_ref[0], D, left)

    # Single block-diagonal QKV matmul for both streams: K = 2D = 128.
    qkv = jnp.dot(xyn.astype(_MM_DTYPE), wqkv_ref[0],
                  preferred_element_type=jnp.float32)        # (M, 6*inner)
    qkv16 = qkv.astype(_MM_DTYPE)
    # Column layout (pack_params): [q_x | k_x | v_x | q_y | k_y | v_y], each
    # `inner` wide, head-major within.  Note: the attention scale is already
    # folded into the q columns of the weights.

    def head_tiles(col0):
        # Static lane slices + leading-dim reshapes only (layout friendly).
        return [qkv16[:, col0 + h * dim_head: col0 + (h + 1) * dim_head]
                .reshape(Bt, N, dim_head) for h in range(heads)]

    q_x = head_tiles(0)
    k_x = head_tiles(inner)
    v_x = head_tiles(2 * inner)
    q_y = head_tiles(3 * inner)
    k_y = head_tiles(4 * inner)
    v_y = head_tiles(5 * inner)

    # Flatten (stream, head, batch) into one einsum batch axis Z = 2*heads*Bt.
    # Stream x queries attend the y stream's keys/values and vice versa.
    Q = jnp.concatenate(q_x + q_y, axis=0)                   # (Z, N, dh)
    K = jnp.concatenate(k_y + k_x, axis=0)                   # partner keys
    V = jnp.concatenate(v_y + v_x, axis=0)                   # partner values

    s = jnp.einsum('znd,zmd->znm', Q, K,
                   preferred_element_type=jnp.float32)       # (Z, N, N)
    s = s - jnp.max(s, axis=-1, keepdims=True)
    e = jnp.exp(s)
    p = e * pl.reciprocal(jnp.sum(e, axis=-1, keepdims=True), approx=True)
    o = jnp.einsum('znm,zmd->znd', p.astype(_MM_DTYPE), V,
                   preferred_element_type=jnp.float32)       # (Z, N, dh)

    # Merge heads (and both streams) back into one lane-dense (M, 2*inner)
    # slab: columns ordered (stream, head) to match the merged out-projection.
    attn = jnp.concatenate(
        [o[i * Bt:(i + 1) * Bt].reshape(M, dim_head) for i in range(2 * heads)],
        axis=-1)                                             # (M, 2*inner)

    # Single block-diagonal output projection (K = 2*inner = 64).
    # NOTE: the reference module adds the residual against the *normed* input
    # (PreNorm passes norm(x) into Attention, which adds its own input back).
    xy1 = (jnp.dot(attn.astype(_MM_DTYPE), wout_ref[0],
                   preferred_element_type=jnp.float32)
           + bout_ref[0] + xyn)

    # ------------------- PreNorm + FeedForward (merged) -------------------- #
    xy1n = _dual_layernorm(xy1, ln2w_ref[0], ln2b_ref[0], D, left)
    hmid = _gelu(jnp.dot(xy1n.astype(_MM_DTYPE), fw1_ref[0],
                         preferred_element_type=jnp.float32) + fb1_ref[0])
    xy2 = xy1n + jnp.dot(hmid.astype(_MM_DTYPE), fw2_ref[0],
                         preferred_element_type=jnp.float32) + fb2_ref[0]

    # Carry to the next layer, or apply the final (shared) LayerNorm and emit.
    @pl.when(l < depth - 1)
    def _():
        out_ref[...] = xy2

    @pl.when(l == depth - 1)
    def _():
        out_ref[...] = _dual_layernorm(xy2, lnfw_ref[...], lnfb_ref[...], D, left)


def fused_cross_vit_transformer(xy2d, packed, cfg, B, N, batch_tiles=1):
    """xy2d: (B*N, 2*D) with x in lanes [0:D], y in lanes [D:2D]."""
    D2 = xy2d.shape[1]
    D = D2 // 2
    depth, heads, dh = cfg["depth"], cfg["heads"], cfg["dim_head"]
    assert B % batch_tiles == 0
    Bt = B // batch_tiles
    Mt = Bt * N

    kern = functools.partial(_fused_kernel, heads, dh, Bt, N, depth, D)

    act_spec = pl.BlockSpec((Mt, D2), lambda b, l: (b, 0))

    def layer_spec(arr):                       # (depth, r, c) stacked weights
        return pl.BlockSpec((1,) + arr.shape[1:], lambda b, l: (l, 0, 0))

    def const_spec(arr):                       # layer-invariant params
        return pl.BlockSpec(arr.shape, lambda b, l: (0, 0))

    weights = [packed[k] for k in _STACKED_ORDER]
    return pl.pallas_call(
        kern,
        out_shape=jax.ShapeDtypeStruct((B * N, D2), xy2d.dtype),
        grid=(batch_tiles, depth),
        in_specs=([act_spec]
                  + [layer_spec(w) for w in weights]
                  + [const_spec(packed["ln_w"]), const_spec(packed["ln_b"])]),
        out_specs=act_spec,
        # The input is only read at l==0 and the output block (the carry)
        # replaces it: reuse the HBM buffer.
        input_output_aliases={0: 0},
        compiler_params=pltpu.CompilerParams(
            # "parallel" batch axis: on v7x set batch_tiles=B so the two
            # TensorCores each take one batch slice.  Set vmem_limit_bytes
            # here when scaling B*N or dim beyond the defaults.
            dimension_semantics=("parallel", "arbitrary")),
    )(xy2d, *weights, packed["ln_w"], packed["ln_b"])


# ------------------------------ JAX-level glue ------------------------------ #

def patchify(img, p1, p2):
    # 'b c (h p1) (w p2) -> b (h w) (p1 p2 c)'
    b, c, H, W = img.shape
    h, w = H // p1, W // p2
    t = img.reshape(b, c, h, p1, w, p2)
    t = t.transpose(0, 2, 4, 3, 5, 1)          # b h w p1 p2 c
    return t.reshape(b, h * w, p1 * p2 * c)


def unpatchify(x, c, h, w, p1, p2):
    # 'b (h w) (p1 p2 c) -> b c (h p1) (w p2)'
    b = x.shape[0]
    t = x.reshape(b, h, w, p1, p2, c)
    t = t.transpose(0, 5, 1, 3, 2, 4)          # b c h p1 w p2
    return t.reshape(b, c, h * p1, w * p2)


def cross_vit_forward(x0, y0, packed, cfg):
    p1, p2 = cfg["p1"], cfg["p2"]
    x = patchify(x0, p1, p2) + packed["pos_rgb"]
    y = patchify(y0, p1, p2) + packed["pos_d"]
    # emb_dropout / dropout: p = 0.0 (eval) -> identity
    B, N, D = x.shape
    xy = jnp.concatenate([x.reshape(B * N, D), y.reshape(B * N, D)], axis=-1)
    xy = fused_cross_vit_transformer(xy, packed, cfg, B, N,
                                     batch_tiles=cfg.get("batch_tiles", 1))
    x = xy[:, :D].reshape(B, N, D)
    y = xy[:, D:].reshape(B, N, D)
    x_img = unpatchify(x, cfg["c"], cfg["h"], cfg["w"], p1, p2)
    y_img = unpatchify(y, cfg["c"], cfg["h"], cfg["w"], p1, p2)
    return x_img, y_img


# ------------------------------ parameters ---------------------------------- #

def init_params(key, cfg):
    """Per-layer parameters in the PyTorch module's layout."""
    dim = cfg["dim"]
    inner = cfg["heads"] * cfg["dim_head"]
    mlp = cfg["mlp_dim"]
    num = cfg["num"]
    keys = iter(jax.random.split(key, 128))

    def lin(i, o):
        return jax.random.normal(next(keys), (i, o), jnp.float32) * 0.02

    layers = []
    for _ in range(cfg["depth"]):
        layers.append(dict(
            ln1_w=jnp.ones((1, dim), jnp.float32),
            ln1_b=jnp.zeros((1, dim), jnp.float32),
            w_qkv_rgb=lin(dim, 3 * inner),
            w_qkv_d=lin(dim, 3 * inner),
            w_out_rd=lin(inner, dim),
            b_out_rd=jnp.zeros((1, dim), jnp.float32),
            w_out_dr=lin(inner, dim),
            b_out_dr=jnp.zeros((1, dim), jnp.float32),
            ln2_w=jnp.ones((1, dim), jnp.float32),
            ln2_b=jnp.zeros((1, dim), jnp.float32),
            ff_rgb_w1=lin(dim, mlp), ff_rgb_b1=jnp.zeros((1, mlp), jnp.float32),
            ff_rgb_w2=lin(mlp, dim), ff_rgb_b2=jnp.zeros((1, dim), jnp.float32),
            ff_d_w1=lin(dim, mlp), ff_d_b1=jnp.zeros((1, mlp), jnp.float32),
            ff_d_w2=lin(mlp, dim), ff_d_b2=jnp.zeros((1, dim), jnp.float32),
        ))
    return dict(
        pos_rgb=jax.random.normal(next(keys), (1, num, dim), jnp.float32) * 0.02,
        pos_d=jax.random.normal(next(keys), (1, num, dim), jnp.float32) * 0.02,
        ln_w=jnp.ones((1, dim), jnp.float32),
        ln_b=jnp.zeros((1, dim), jnp.float32),
        layers=layers,
    )


def pack_params(params, cfg):
    """Merge the two streams' weights into block-diagonal matrices, tile the
    shared LN params to 2*D lanes, fold the attention scale into the q columns
    of the QKV weights, stack per-layer params along a leading depth axis and
    cast matmul weights to bf16."""
    inner = cfg["heads"] * cfg["dim_head"]
    scale = cfg["dim_head"] ** -0.5

    def blockdiag(a, b):
        ra, ca = a.shape
        rb, cb = b.shape
        top = jnp.concatenate([a, jnp.zeros((ra, cb), a.dtype)], axis=1)
        bot = jnp.concatenate([jnp.zeros((rb, ca), b.dtype), b], axis=1)
        return jnp.concatenate([top, bot], axis=0)

    def tile2(v):                              # (1, C) -> (1, 2C)
        return jnp.concatenate([v, v], axis=-1)

    def per_layer(lp):
        wqx = lp["w_qkv_rgb"].at[:, :inner].multiply(scale)   # pre-scale q
        wqy = lp["w_qkv_d"].at[:, :inner].multiply(scale)
        return dict(
            ln1_w=tile2(lp["ln1_w"]), ln1_b=tile2(lp["ln1_b"]),
            w_qkv=blockdiag(wqx, wqy).astype(_MM_DTYPE),            # (2D, 6*inner)
            w_out=blockdiag(lp["w_out_rd"], lp["w_out_dr"]).astype(_MM_DTYPE),
            b_out=jnp.concatenate([lp["b_out_rd"], lp["b_out_dr"]], axis=-1),
            ln2_w=tile2(lp["ln2_w"]), ln2_b=tile2(lp["ln2_b"]),
            ff_w1=blockdiag(lp["ff_rgb_w1"], lp["ff_d_w1"]).astype(_MM_DTYPE),
            ff_b1=jnp.concatenate([lp["ff_rgb_b1"], lp["ff_d_b1"]], axis=-1),
            ff_w2=blockdiag(lp["ff_rgb_w2"], lp["ff_d_w2"]).astype(_MM_DTYPE),
            ff_b2=jnp.concatenate([lp["ff_rgb_b2"], lp["ff_d_b2"]], axis=-1),
        )

    merged = [per_layer(lp) for lp in params["layers"]]
    packed = {k: jnp.stack([m[k] for m in merged], axis=0) for k in _STACKED_ORDER}
    packed["pos_rgb"] = params["pos_rgb"]
    packed["pos_d"] = params["pos_d"]
    packed["ln_w"] = tile2(params["ln_w"])
    packed["ln_b"] = tile2(params["ln_b"])
    return packed


# --------------------------------- main -------------------------------------- #

if __name__ == "__main__":
    cfg = dict(c=4, p1=4, p2=4, h=8, w=8,
               depth=2, heads=2, dim_head=16, mlp_dim=128)
    cfg["dim"] = cfg["p1"] * cfg["p2"] * cfg["c"]   # 64
    cfg["num"] = cfg["h"] * cfg["w"]                # 64
    # On v7x set cfg["batch_tiles"] = 2 to shard the parallel batch axis over
    # both TensorCores; default 1 keeps one full-M pass (best for v5e/v6e).
    cfg["batch_tiles"] = 1

    key = jax.random.PRNGKey(0)
    kx, ky, kp = jax.random.split(key, 3)
    B = 2
    H = cfg["h"] * cfg["p1"]                        # 32
    W = cfg["w"] * cfg["p2"]                        # 32
    x0 = jax.random.normal(kx, (B, cfg["c"], H, W), jnp.float32)
    y0 = jax.random.normal(ky, (B, cfg["c"], H, W), jnp.float32)

    params = init_params(kp, cfg)
    packed = pack_params(params, cfg)

    fwd = jax.jit(functools.partial(cross_vit_forward, cfg=cfg))
    x_out, y_out = fwd(x0, y0, packed)
    jax.block_until_ready((x_out, y_out))

    assert x_out.shape == x0.shape and y_out.shape == y0.shape
    assert bool(jnp.all(jnp.isfinite(x_out))) and bool(jnp.all(jnp.isfinite(y_out)))
    print("KERNEL_OK")
</pallas_src>

<mosaic_0001>
module attributes {stable_mosaic.version = 11 : i64} {
  func.func @_fused_kernel(%arg0: i32, %arg1: i32, %arg2: memref<128x128xf32, #tpu.memory_space<vmem>>, %arg3: memref<1x1x128xf32, #tpu.memory_space<vmem>>, %arg4: memref<1x1x128xf32, #tpu.memory_space<vmem>>, %arg5: memref<1x128x192xbf16, #tpu.memory_space<vmem>>, %arg6: memref<1x64x128xbf16, #tpu.memory_space<vmem>>, %arg7: memref<1x1x128xf32, #tpu.memory_space<vmem>>, %arg8: memref<1x1x128xf32, #tpu.memory_space<vmem>>, %arg9: memref<1x1x128xf32, #tpu.memory_space<vmem>>, %arg10: memref<1x128x256xbf16, #tpu.memory_space<vmem>>, %arg11: memref<1x1x256xf32, #tpu.memory_space<vmem>>, %arg12: memref<1x256x128xbf16, #tpu.memory_space<vmem>>, %arg13: memref<1x1x128xf32, #tpu.memory_space<vmem>>, %arg14: memref<1x128xf32, #tpu.memory_space<vmem>>, %arg15: memref<1x128xf32, #tpu.memory_space<vmem>>, %arg16: memref<128x128xf32, #tpu.memory_space<vmem>>) attributes {dimension_semantics = [#tpu.dimension_semantics<parallel>, #tpu.dimension_semantics<arbitrary>], iteration_bounds = array<i64: 1, 2>, scalar_prefetch = 0 : i64, scratch_operands = 0 : i64, tpu.core_type = #tpu.core_type<tc>, window_params = [{transform_indices = @transform_0, window_bounds = array<i64: 128, 128>}, {transform_indices = @transform_1, window_bounds = array<i64: 1, 1, 128>}, {transform_indices = @transform_2, window_bounds = array<i64: 1, 1, 128>}, {transform_indices = @transform_3, window_bounds = array<i64: 1, 128, 192>}, {transform_indices = @transform_4, window_bounds = array<i64: 1, 64, 128>}, {transform_indices = @transform_5, window_bounds = array<i64: 1, 1, 128>}, {transform_indices = @transform_6, window_bounds = array<i64: 1, 1, 128>}, {transform_indices = @transform_7, window_bounds = array<i64: 1, 1, 128>}, {transform_indices = @transform_8, window_bounds = array<i64: 1, 128, 256>}, {transform_indices = @transform_9, window_bounds = array<i64: 1, 1, 256>}, {transform_indices = @transform_10, window_bounds = array<i64: 1, 256, 128>}, {transform_indices = @transform_11, window_bounds = array<i64: 1, 1, 128>}, {pipeline_mode = #tpu.pipeline_mode<synchronous>, transform_indices = @transform_12, window_bounds = array<i64: 1, 128>}, {pipeline_mode = #tpu.pipeline_mode<synchronous>, transform_indices = @transform_13, window_bounds = array<i64: 1, 128>}, {transform_indices = @transform_14, window_bounds = array<i64: 128, 128>}]} {
    %c0_i32 = arith.constant 0 : i32
    %0 = arith.cmpi eq, %arg1, %c0_i32 : i32
    %1 = arith.extui %0 : i1 to i32
    %c0_i32_0 = arith.constant 0 : i32
    %2 = arith.cmpi ne, %1, %c0_i32_0 : i32
    scf.if %2 {
      %c0_71 = arith.constant 0 : index
      %c0_72 = arith.constant 0 : index
      %194 = vector.load %arg2[%c0_71, %c0_72] : memref<128x128xf32, #tpu.memory_space<vmem>>, vector<128x128xf32>
      %c0_73 = arith.constant 0 : index
      %c0_74 = arith.constant 0 : index
      %195 = vector.load %arg16[%c0_73, %c0_74] : memref<128x128xf32, #tpu.memory_space<vmem>>, vector<128x128xf32>
      tpu.vector_store %arg16[%c0_73, %c0_74], %194 {strides = array<i32>} : memref<128x128xf32, #tpu.memory_space<vmem>>, vector<128x128xf32>,
    } else {
    }
    %c0 = arith.constant 0 : index
    %c0_1 = arith.constant 0 : index
    %3 = vector.load %arg16[%c0, %c0_1] : memref<128x128xf32, #tpu.memory_space<vmem>>, vector<128x128xf32>
    %4 = tpu.iota {dimensions = array<i32: 1>} : vector<128x128xi32>
    %c64_i32 = arith.constant 64 : i32
    %5 = vector.broadcast %c64_i32 : i32 to vector<128x128xi32>
    %6 = arith.cmpi slt, %4, %5 : vector<128x128xi32>
    %c0_2 = arith.constant 0 : index
    %c0_3 = arith.constant 0 : index
    %c0_4 = arith.constant 0 : index
    %7 = vector.load %arg3[%c0_2, %c0_3, %c0_4] : memref<1x1x128xf32, #tpu.memory_space<vmem>>, vector<1x1x128xf32>
    %8 = vector.shape_cast %7 : vector<1x1x128xf32> to vector<1x128xf32>
    %c0_5 = arith.constant 0 : index
    %c0_6 = arith.constant 0 : index
    %c0_7 = arith.constant 0 : index
    %9 = vector.load %arg4[%c0_5, %c0_6, %c0_7] : memref<1x1x128xf32, #tpu.memory_space<vmem>>, vector<1x1x128xf32>
    %10 = vector.shape_cast %9 : vector<1x1x128xf32> to vector<1x128xf32>
    %cst = arith.constant 0.000000e+00 : f32
    %11 = vector.broadcast %cst : f32 to vector<128x128xf32>
    %12 = arith.select %6, %3, %11 : vector<128x128xi1>, vector<128x128xf32>
    %cst_8 = arith.constant dense<0.000000e+00> : vector<128xf32>
    %13 = vector.multi_reduction <add>, %12, %cst_8 [1] : vector<128x128xf32> to vector<128xf32>
    %14 = vector.shape_cast %13 : vector<128xf32> to vector<128x1xf32>
    %cst_9 = arith.constant 0.000000e+00 : f32
    %15 = vector.broadcast %cst_9 : f32 to vector<128x128xf32>
    %16 = arith.select %6, %15, %3 : vector<128x128xi1>, vector<128x128xf32>
    %cst_10 = arith.constant dense<0.000000e+00> : vector<128xf32>
    %17 = vector.multi_reduction <add>, %16, %cst_10 [1] : vector<128x128xf32> to vector<128xf32>
    %18 = vector.shape_cast %17 : vector<128xf32> to vector<128x1xf32>
    %19 = vector.shape_cast %14 : vector<128x1xf32> to vector<128x1xf32>
    %20 = vector.broadcast %19 : vector<128x1xf32> to vector<128x128xf32>
    %21 = vector.shape_cast %18 : vector<128x1xf32> to vector<128x1xf32>
    %22 = vector.broadcast %21 : vector<128x1xf32> to vector<128x128xf32>
    %23 = arith.select %6, %20, %22 : vector<128x128xi1>, vector<128x128xf32>
    %cst_11 = arith.constant 1.562500e-02 : f32
    %24 = vector.broadcast %cst_11 : f32 to vector<128x128xf32>
    %25 = arith.mulf %23, %24 : vector<128x128xf32>
    %26 = arith.subf %3, %25 : vector<128x128xf32>
    %27 = arith.mulf %26, %26 : vector<128x128xf32>
    %cst_12 = arith.constant 0.000000e+00 : f32
    %28 = vector.broadcast %cst_12 : f32 to vector<128x128xf32>
    %29 = arith.select %6, %27, %28 : vector<128x128xi1>, vector<128x128xf32>
    %cst_13 = arith.constant dense<0.000000e+00> : vector<128xf32>
    %30 = vector.multi_reduction <add>, %29, %cst_13 [1] : vector<128x128xf32> to vector<128xf32>
    %31 = vector.shape_cast %30 : vector<128xf32> to vector<128x1xf32>
    %cst_14 = arith.constant 0.000000e+00 : f32
    %32 = vector.broadcast %cst_14 : f32 to vector<128x128xf32>
    %33 = arith.select %6, %32, %27 : vector<128x128xi1>, vector<128x128xf32>
    %cst_15 = arith.constant dense<0.000000e+00> : vector<128xf32>
    %34 = vector.multi_reduction <add>, %33, %cst_15 [1] : vector<128x128xf32> to vector<128xf32>
    %35 = vector.shape_cast %34 : vector<128xf32> to vector<128x1xf32>
    %36 = vector.shape_cast %31 : vector<128x1xf32> to vector<128x1xf32>
    %37 = vector.broadcast %36 : vector<128x1xf32> to vector<128x128xf32>
    %38 = vector.shape_cast %35 : vector<128x1xf32> to vector<128x1xf32>
    %39 = vector.broadcast %38 : vector<128x1xf32> to vector<128x128xf32>
    %40 = arith.select %6, %37, %39 : vector<128x128xi1>, vector<128x128xf32>
    %cst_16 = arith.constant 1.562500e-02 : f32
    %41 = vector.broadcast %cst_16 : f32 to vector<128x128xf32>
    %42 = arith.mulf %40, %41 : vector<128x128xf32>
    %cst_17 = arith.constant 9.99999974E-6 : f32
    %43 = vector.broadcast %cst_17 : f32 to vector<128x128xf32>
    %44 = arith.addf %42, %43 : vector<128x128xf32>
    %45 = math.rsqrt %44 : vector<128x128xf32>
    %46 = arith.mulf %26, %45 : vector<128x128xf32>
    %47 = vector.broadcast %8 : vector<1x128xf32> to vector<128x128xf32>
    %48 = arith.mulf %46, %47 : vector<128x128xf32>
    %49 = vector.broadcast %10 : vector<1x128xf32> to vector<128x128xf32>
    %50 = arith.addf %48, %49 : vector<128x128xf32>
    %51 = arith.truncf %50 : vector<128x128xf32> to vector<128x128xbf16>
    %c0_18 = arith.constant 0 : index
    %c0_19 = arith.constant 0 : index
    %c0_20 = arith.constant 0 : index
    %52 = vector.load %arg5[%c0_18, %c0_19, %c0_20] : memref<1x128x192xbf16, #tpu.memory_space<vmem>>, vector<1x128x192xbf16>
    %53 = vector.shape_cast %52 : vector<1x128x192xbf16> to vector<128x192xbf16>
    %cst_21 = arith.constant dense<0.000000e+00> : vector<128x192xf32>
    %54 = tpu.matmul %51, %53, %cst_21 {dimension_numbers = #tpu.dot_dimension_numbers<[1], [0], [0], [1], [0, 0, 1, 1], [], []>} : vector<128x128xbf16>, vector<128x192xbf16>, vector<128x192xf32> -> vector<128x192xf32>
    %55 = arith.truncf %54 : vector<128x192xf32> to vector<128x192xbf16>
    %56 = vector.extract_strided_slice %55 {offsets = [0, 0], sizes = [128, 16], strides = [1, 1]} : vector<128x192xbf16> to vector<128x16xbf16>
    %57 = vector.shape_cast %56 : vector<128x16xbf16> to vector<2x64x16xbf16>
    %58 = vector.extract_strided_slice %55 {offsets = [0, 16], sizes = [128, 16], strides = [1, 1]} : vector<128x192xbf16> to vector<128x16xbf16>
    %59 = vector.shape_cast %58 : vector<128x16xbf16> to vector<2x64x16xbf16>
    %60 = vector.extract_strided_slice %55 {offsets = [0, 32], sizes = [128, 16], strides = [1, 1]} : vector<128x192xbf16> to vector<128x16xbf16>
    %61 = vector.shape_cast %60 : vector<128x16xbf16> to vector<2x64x16xbf16>
    %62 = vector.extract_strided_slice %55 {offsets = [0, 48], sizes = [128, 16], strides = [1, 1]} : vector<128x192xbf16> to vector<128x16xbf16>
    %63 = vector.shape_cast %62 : vector<128x16xbf16> to vector<2x64x16xbf16>
    %64 = vector.extract_strided_slice %55 {offsets = [0, 64], sizes = [128, 16], strides = [1, 1]} : vector<128x192xbf16> to vector<128x16xbf16>
    %65 = vector.shape_cast %64 : vector<128x16xbf16> to vector<2x64x16xbf16>
    %66 = vector.extract_strided_slice %55 {offsets = [0, 80], sizes = [128, 16], strides = [1, 1]} : vector<128x192xbf16> to vector<128x16xbf16>
    %67 = vector.shape_cast %66 : vector<128x16xbf16> to vector<2x64x16xbf16>
    %68 = vector.extract_strided_slice %55 {offsets = [0, 96], sizes = [128, 16], strides = [1, 1]} : vector<128x192xbf16> to vector<128x16xbf16>
    %69 = vector.shape_cast %68 : vector<128x16xbf16> to vector<2x64x16xbf16>
    %70 = vector.extract_strided_slice %55 {offsets = [0, 112], sizes = [128, 16], strides = [1, 1]} : vector<128x192xbf16> to vector<128x16xbf16>
    %71 = vector.shape_cast %70 : vector<128x16xbf16> to vector<2x64x16xbf16>
    %72 = vector.extract_strided_slice %55 {offsets = [0, 128], sizes = [128, 16], strides = [1, 1]} : vector<128x192xbf16> to vector<128x16xbf16>
    %73 = vector.shape_cast %72 : vector<128x16xbf16> to vector<2x64x16xbf16>
    %74 = vector.extract_strided_slice %55 {offsets = [0, 144], sizes = [128, 16], strides = [1, 1]} : vector<128x192xbf16> to vector<128x16xbf16>
    %75 = vector.shape_cast %74 : vector<128x16xbf16> to vector<2x64x16xbf16>
    %76 = vector.extract_strided_slice %55 {offsets = [0, 160], sizes = [128, 16], strides = [1, 1]} : vector<128x192xbf16> to vector<128x16xbf16>
    %77 = vector.shape_cast %76 : vector<128x16xbf16> to vector<2x64x16xbf16>
    %78 = vector.extract_strided_slice %55 {offsets = [0, 176], sizes = [128, 16], strides = [1, 1]} : vector<128x192xbf16> to vector<128x16xbf16>
    %79 = vector.shape_cast %78 : vector<128x16xbf16> to vector<2x64x16xbf16>
    %80 = tpu.concatenate %57, %59, %69, %71 in 0 : vector<2x64x16xbf16>, vector<2x64x16xbf16>, vector<2x64x16xbf16>, vector<2x64x16xbf16> -> vector<8x64x16xbf16>
    %81 = tpu.concatenate %73, %75, %61, %63 in 0 : vector<2x64x16xbf16>, vector<2x64x16xbf16>, vector<2x64x16xbf16>, vector<2x64x16xbf16> -> vector<8x64x16xbf16>
    %82 = tpu.concatenate %77, %79, %65, %67 in 0 : vector<2x64x16xbf16>, vector<2x64x16xbf16>, vector<2x64x16xbf16>, vector<2x64x16xbf16> -> vector<8x64x16xbf16>
    "tpu.trace_start"() <{level = 10 : i32, message = "znd,zmd->znm"}> : () -> ()
    %cst_22 = arith.constant dense<0.000000e+00> : vector<8x64x64xf32>
    %83 = tpu.matmul %80, %81, %cst_22 {dimension_numbers = #tpu.dot_dimension_numbers<[2], [2], [1], [1], [0, 0, 0, 1, 1, 1], [0], [0]>} : vector<8x64x16xbf16>, vector<8x64x16xbf16>, vector<8x64x64xf32> -> vector<8x64x64xf32>
    "tpu.trace_stop"() : () -> ()
    %cst_23 = arith.constant dense<0xFF800000> : vector<8x64xf32>
    %84 = vector.multi_reduction <maximumf>, %83, %cst_23 [2] : vector<8x64x64xf32> to vector<8x64xf32>
    %85 = vector.shape_cast %84 : vector<8x64xf32> to vector<8x64x1xf32>
    %86 = vector.broadcast %85 : vector<8x64x1xf32> to vector<8x64x64xf32>
    %87 = arith.subf %83, %86 : vector<8x64x64xf32>
    %88 = math.exp %87 : vector<8x64x64xf32>
    %cst_24 = arith.constant dense<0.000000e+00> : vector<8x64xf32>
    %89 = vector.multi_reduction <add>, %88, %cst_24 [2] : vector<8x64x64xf32> to vector<8x64xf32>
    %90 = vector.shape_cast %89 : vector<8x64xf32> to vector<8x64x1xf32>
    %91 = tpu.reciprocal %90 {approx = true} : vector<8x64x1xf32> -> vector<8x64x1xf32>
    %92 = vector.broadcast %91 : vector<8x64x1xf32> to vector<8x64x64xf32>
    %93 = arith.mulf %88, %92 : vector<8x64x64xf32>
    %94 = arith.truncf %93 : vector<8x64x64xf32> to vector<8x64x64xbf16>
    "tpu.trace_start"() <{level = 10 : i32, message = "znm,zmd->znd"}> : () -> ()
    %cst_25 = arith.constant dense<0.000000e+00> : vector<8x64x16xf32>
    %95 = tpu.matmul %94, %82, %cst_25 {dimension_numbers = #tpu.dot_dimension_numbers<[2], [1], [1], [2], [0, 0, 0, 1, 1, 2], [0], [0]>} : vector<8x64x64xbf16>, vector<8x64x16xbf16>, vector<8x64x16xf32> -> vector<8x64x16xf32>
    "tpu.trace_stop"() : () -> ()
    %96 = vector.extract_strided_slice %95 {offsets = [0, 0, 0], sizes = [2, 64, 16], strides = [1, 1, 1]} : vector<8x64x16xf32> to vector<2x64x16xf32>
    %97 = vector.shape_cast %96 : vector<2x64x16xf32> to vector<128x16xf32>
    %98 = vector.extract_strided_slice %95 {offsets = [2, 0, 0], sizes = [2, 64, 16], strides = [1, 1, 1]} : vector<8x64x16xf32> to vector<2x64x16xf32>
    %99 = vector.shape_cast %98 : vector<2x64x16xf32> to vector<128x16xf32>
    %100 = vector.extract_strided_slice %95 {offsets = [4, 0, 0], sizes = [2, 64, 16], strides = [1, 1, 1]} : vector<8x64x16xf32> to vector<2x64x16xf32>
    %101 = vector.shape_cast %100 : vector<2x64x16xf32> to vector<128x16xf32>
    %102 = vector.extract_strided_slice %95 {offsets = [6, 0, 0], sizes = [2, 64, 16], strides = [1, 1, 1]} : vector<8x64x16xf32> to vector<2x64x16xf32>
    %103 = vector.shape_cast %102 : vector<2x64x16xf32> to vector<128x16xf32>
    %104 = tpu.concatenate %97, %99, %101, %103 in 1 : vector<128x16xf32>, vector<128x16xf32>, vector<128x16xf32>, vector<128x16xf32> -> vector<128x64xf32>
    %105 = arith.truncf %104 : vector<128x64xf32> to vector<128x64xbf16>
    %c0_26 = arith.constant 0 : index
    %c0_27 = arith.constant 0 : index
    %c0_28 = arith.constant 0 : index
    %106 = vector.load %arg6[%c0_26, %c0_27, %c0_28] : memref<1x64x128xbf16, #tpu.memory_space<vmem>>, vector<1x64x128xbf16>
    %107 = vector.shape_cast %106 : vector<1x64x128xbf16> to vector<64x128xbf16>
    %cst_29 = arith.constant dense<0.000000e+00> : vector<128x128xf32>
    %108 = tpu.matmul %105, %107, %cst_29 {dimension_numbers = #tpu.dot_dimension_numbers<[1], [0], [0], [1], [0, 0, 1, 1], [], []>} : vector<128x64xbf16>, vector<64x128xbf16>, vector<128x128xf32> -> vector<128x128xf32>
    %c0_30 = arith.constant 0 : index
    %c0_31 = arith.constant 0 : index
    %c0_32 = arith.constant 0 : index
    %109 = vector.load %arg7[%c0_30, %c0_31, %c0_32] : memref<1x1x128xf32, #tpu.memory_space<vmem>>, vector<1x1x128xf32>
    %110 = vector.shape_cast %109 : vector<1x1x128xf32> to vector<1x128xf32>
    %111 = vector.broadcast %110 : vector<1x128xf32> to vector<128x128xf32>
    %112 = arith.addf %108, %111 : vector<128x128xf32>
    %113 = arith.addf %112, %50 : vector<128x128xf32>
    %c0_33 = arith.constant 0 : index
    %c0_34 = arith.constant 0 : index
    %c0_35 = arith.constant 0 : index
    %114 = vector.load %arg8[%c0_33, %c0_34, %c0_35] : memref<1x1x128xf32, #tpu.memory_space<vmem>>, vector<1x1x128xf32>
    %115 = vector.shape_cast %114 : vector<1x1x128xf32> to vector<1x128xf32>
    %c0_36 = arith.constant 0 : index
    %c0_37 = arith.constant 0 : index
    %c0_38 = arith.constant 0 : index
    %116 = vector.load %arg9[%c0_36, %c0_37, %c0_38] : memref<1x1x128xf32, #tpu.memory_space<vmem>>, vector<1x1x128xf32>
    %117 = vector.shape_cast %116 : vector<1x1x128xf32> to vector<1x128xf32>
    %cst_39 = arith.constant 0.000000e+00 : f32
    %118 = vector.broadcast %cst_39 : f32 to vector<128x128xf32>
    %119 = arith.select %6, %113, %118 : vector<128x128xi1>, vector<128x128xf32>
    %cst_40 = arith.constant dense<0.000000e+00> : vector<128xf32>
    %120 = vector.multi_reduction <add>, %119, %cst_40 [1] : vector<128x128xf32> to vector<128xf32>
    %121 = vector.shape_cast %120 : vector<128xf32> to vector<128x1xf32>
    %cst_41 = arith.constant 0.000000e+00 : f32
    %122 = vector.broadcast %cst_41 : f32 to vector<128x128xf32>
    %123 = arith.select %6, %122, %113 : vector<128x128xi1>, vector<128x128xf32>
    %cst_42 = arith.constant dense<0.000000e+00> : vector<128xf32>
    %124 = vector.multi_reduction <add>, %123, %cst_42 [1] : vector<128x128xf32> to vector<128xf32>
    %125 = vector.shape_cast %124 : vector<128xf32> to vector<128x1xf32>
    %126 = vector.shape_cast %121 : vector<128x1xf32> to vector<128x1xf32>
    %127 = vector.broadcast %126 : vector<128x1xf32> to vector<128x128xf32>
    %128 = vector.shape_cast %125 : vector<128x1xf32> to vector<128x1xf32>
    %129 = vector.broadcast %128 : vector<128x1xf32> to vector<128x128xf32>
    %130 = arith.select %6, %127, %129 : vector<128x128xi1>, vector<128x128xf32>
    %cst_43 = arith.constant 1.562500e-02 : f32
    %131 = vector.broadcast %cst_43 : f32 to vector<128x128xf32>
    %132 = arith.mulf %130, %131 : vector<128x128xf32>
    %133 = arith.subf %113, %132 : vector<128x128xf32>
    %134 = arith.mulf %133, %133 : vector<128x128xf32>
    %cst_44 = arith.constant 0.000000e+00 : f32
    %135 = vector.broadcast %cst_44 : f32 to vector<128x128xf32>
    %136 = arith.select %6, %134, %135 : vector<128x128xi1>, vector<128x128xf32>
    %cst_45 = arith.constant dense<0.000000e+00> : vector<128xf32>
    %137 = vector.multi_reduction <add>, %136, %cst_45 [1] : vector<128x128xf32> to vector<128xf32>
    %138 = vector.shape_cast %137 : vector<128xf32> to vector<128x1xf32>
    %cst_46 = arith.constant 0.000000e+00 : f32
    %139 = vector.broadcast %cst_46 : f32 to vector<128x128xf32>
    %140 = arith.select %6, %139, %134 : vector<128x128xi1>, vector<128x128xf32>
    %cst_47 = arith.constant dense<0.000000e+00> : vector<128xf32>
    %141 = vector.multi_reduction <add>, %140, %cst_47 [1] : vector<128x128xf32> to vector<128xf32>
    %142 = vector.shape_cast %141 : vector<128xf32> to vector<128x1xf32>
    %143 = vector.shape_cast %138 : vector<128x1xf32> to vector<128x1xf32>
    %144 = vector.broadcast %143 : vector<128x1xf32> to vector<128x128xf32>
    %145 = vector.shape_cast %142 : vector<128x1xf32> to vector<128x1xf32>
    %146 = vector.broadcast %145 : vector<128x1xf32> to vector<128x128xf32>
    %147 = arith.select %6, %144, %146 : vector<128x128xi1>, vector<128x128xf32>
    %cst_48 = arith.constant 1.562500e-02 : f32
    %148 = vector.broadcast %cst_48 : f32 to vector<128x128xf32>
    %149 = arith.mulf %147, %148 : vector<128x128xf32>
    %cst_49 = arith.constant 9.99999974E-6 : f32
    %150 = vector.broadcast %cst_49 : f32 to vector<128x128xf32>
    %151 = arith.addf %149, %150 : vector<128x128xf32>
    %152 = math.rsqrt %151 : vector<128x128xf32>
    %153 = arith.mulf %133, %152 : vector<128x128xf32>
    %154 = vector.broadcast %115 : vector<1x128xf32> to vector<128x128xf32>
    %155 = arith.mulf %153, %154 : vector<128x128xf32>
    %156 = vector.broadcast %117 : vector<1x128xf32> to vector<128x128xf32>
    %157 = arith.addf %155, %156 : vector<128x128xf32>
    %158 = arith.truncf %157 : vector<128x128xf32> to vector<128x128xbf16>
    %c0_50 = arith.constant 0 : index
    %c0_51 = arith.constant 0 : index
    %c0_52 = arith.constant 0 : index
    %159 = vector.load %arg10[%c0_50, %c0_51, %c0_52] : memref<1x128x256xbf16, #tpu.memory_space<vmem>>, vector<1x128x256xbf16>
    %160 = vector.shape_cast %159 : vector<1x128x256xbf16> to vector<128x256xbf16>
    %cst_53 = arith.constant dense<0.000000e+00> : vector<128x256xf32>
    %161 = tpu.matmul %158, %160, %cst_53 {dimension_numbers = #tpu.dot_dimension_numbers<[1], [0], [0], [1], [0, 0, 1, 1], [], []>} : vector<128x128xbf16>, vector<128x256xbf16>, vector<128x256xf32> -> vector<128x256xf32>
    %c0_54 = arith.constant 0 : index
    %c0_55 = arith.constant 0 : index
    %c0_56 = arith.constant 0 : index
    %162 = vector.load %arg11[%c0_54, %c0_55, %c0_56] : memref<1x1x256xf32, #tpu.memory_space<vmem>>, vector<1x1x256xf32>
    %163 = vector.shape_cast %162 : vector<1x1x256xf32> to vector<1x256xf32>
    %164 = vector.broadcast %163 : vector<1x256xf32> to vector<128x256xf32>
    %165 = arith.addf %161, %164 : vector<128x256xf32>
    %166 = arith.mulf %165, %165 : vector<128x256xf32>
    %167 = arith.mulf %165, %166 : vector<128x256xf32>
    %cst_57 = arith.constant 4.471500e-02 : f32
    %168 = vector.broadcast %cst_57 : f32 to vector<128x256xf32>
    %169 = arith.mulf %168, %167 : vector<128x256xf32>
    %170 = arith.addf %165, %169 : vector<128x256xf32>
    %cst_58 = arith.constant 0.797884583 : f32
    %171 = vector.broadcast %cst_58 : f32 to vector<128x256xf32>
    %172 = arith.mulf %171, %170 : vector<128x256xf32>
    %173 = math.tanh %172 : vector<128x256xf32>
    %cst_59 = arith.constant 1.000000e+00 : f32
    %174 = vector.broadcast %cst_59 : f32 to vector<128x256xf32>
    %175 = arith.addf %174, %173 : vector<128x256xf32>
    %cst_60 = arith.constant 5.000000e-01 : f32
    %176 = vector.broadcast %cst_60 : f32 to vector<128x256xf32>
    %177 = arith.mulf %176, %175 : vector<128x256xf32>
    %178 = arith.mulf %165, %177 : vector<128x256xf32>
    %179 = arith.truncf %178 : vector<128x256xf32> to vector<128x256xbf16>
    %c0_61 = arith.constant 0 : index
    %c0_62 = arith.constant 0 : index
    %c0_63 = arith.constant 0 : index
    %180 = vector.load %arg12[%c0_61, %c0_62, %c0_63] : memref<1x256x128xbf16, #tpu.memory_space<vmem>>, vector<1x256x128xbf16>
    %181 = vector.shape_cast %180 : vector<1x256x128xbf16> to vector<256x128xbf16>
    %cst_64 = arith.constant dense<0.000000e+00> : vector<128x128xf32>
    %182 = tpu.matmul %179, %181, %cst_64 {dimension_numbers = #tpu.dot_dimension_numbers<[1], [0], [0], [1], [0, 0, 1, 1], [], []>} : vector<128x256xbf16>, vector<256x128xbf16>, vector<128x128xf32> -> vector<128x128xf32>
    %183 = arith.addf %157, %182 : vector<128x128xf32>
    %c0_65 = arith.constant 0 : index
    %c0_66 = arith.constant 0 : index
    %c0_67 = arith.constant 0 : index
    %184 = vector.load %arg13[%c0_65, %c0_66, %c0_67] : memref<1x1x128xf32, #tpu.memory_space<vmem>>, vector<1x1x128xf32>
    %185 = vector.shape_cast %184 : vector<1x1x128xf32> to vector<1x128xf32>
    %186 = vector.broadcast %185 : vector<1x128xf32> to vector<128x128xf32>
    %187 = arith.addf %183, %186 : vector<128x128xf32>
    %c1_i32 = arith.constant 1 : i32
    %188 = arith.cmpi slt, %arg1, %c1_i32 : i32
    %189 = arith.extui %188 : i1 to i32
    %c0_i32_68 = arith.constant 0 : i32
    %190 = arith.cmpi ne, %189, %c0_i32_68 : i32
    scf.if %190 {
      %c0_71 = arith.constant 0 : index
      %c0_72 = arith.constant 0 : index
      %194 = vector.load %arg16[%c0_71, %c0_72] : memref<128x128xf32, #tpu.memory_space<vmem>>, vector<128x128xf32>
      tpu.vector_store %arg16[%c0_71, %c0_72], %187 {strides = array<i32>} : memref<128x128xf32, #tpu.memory_space<vmem>>, vector<128x128xf32>,
    } else {
    }
    %c1_i32_69 = arith.constant 1 : i32
    %191 = arith.cmpi eq, %arg1, %c1_i32_69 : i32
    %192 = arith.extui %191 : i1 to i32
    %c0_i32_70 = arith.constant 0 : i32
    %193 = arith.cmpi ne, %192, %c0_i32_70 : i32
    scf.if %193 {
      %c0_71 = arith.constant 0 : index
      %c0_72 = arith.constant 0 : index
      %194 = vector.load %arg14[%c0_71, %c0_72] : memref<1x128xf32, #tpu.memory_space<vmem>>, vector<1x128xf32>
      %c0_73 = arith.constant 0 : index
      %c0_74 = arith.constant 0 : index
      %195 = vector.load %arg15[%c0_73, %c0_74] : memref<1x128xf32, #tpu.memory_space<vmem>>, vector<1x128xf32>
      %cst_75 = arith.constant 0.000000e+00 : f32
      %196 = vector.broadcast %cst_75 : f32 to vector<128x128xf32>
      %197 = arith.select %6, %187, %196 : vector<128x128xi1>, vector<128x128xf32>
      %cst_76 = arith.constant dense<0.000000e+00> : vector<128xf32>
      %198 = vector.multi_reduction <add>, %197, %cst_76 [1] : vector<128x128xf32> to vector<128xf32>
      %199 = vector.shape_cast %198 : vector<128xf32> to vector<128x1xf32>
      %cst_77 = arith.constant 0.000000e+00 : f32
      %200 = vector.broadcast %cst_77 : f32 to vector<128x128xf32>
      %201 = arith.select %6, %200, %187 : vector<128x128xi1>, vector<128x128xf32>
      %cst_78 = arith.constant dense<0.000000e+00> : vector<128xf32>
      %202 = vector.multi_reduction <add>, %201, %cst_78 [1] : vector<128x128xf32> to vector<128xf32>
      %203 = vector.shape_cast %202 : vector<128xf32> to vector<128x1xf32>
      %204 = vector.shape_cast %199 : vector<128x1xf32> to vector<128x1xf32>
      %205 = vector.broadcast %204 : vector<128x1xf32> to vector<128x128xf32>
      %206 = vector.shape_cast %203 : vector<128x1xf32> to vector<128x1xf32>
      %207 = vector.broadcast %206 : vector<128x1xf32> to vector<128x128xf32>
      %208 = arith.select %6, %205, %207 : vector<128x128xi1>, vector<128x128xf32>
      %cst_79 = arith.constant 1.562500e-02 : f32
      %209 = vector.broadcast %cst_79 : f32 to vector<128x128xf32>
      %210 = arith.mulf %208, %209 : vector<128x128xf32>
      %211 = arith.subf %187, %210 : vector<128x128xf32>
      %212 = arith.mulf %211, %211 : vector<128x128xf32>
      %cst_80 = arith.constant 0.000000e+00 : f32
      %213 = vector.broadcast %cst_80 : f32 to vector<128x128xf32>
      %214 = arith.select %6, %212, %213 : vector<128x128xi1>, vector<128x128xf32>
      %cst_81 = arith.constant dense<0.000000e+00> : vector<128xf32>
      %215 = vector.multi_reduction <add>, %214, %cst_81 [1] : vector<128x128xf32> to vector<128xf32>
      %216 = vector.shape_cast %215 : vector<128xf32> to vector<128x1xf32>
      %cst_82 = arith.constant 0.000000e+00 : f32
      %217 = vector.broadcast %cst_82 : f32 to vector<128x128xf32>
      %218 = arith.select %6, %217, %212 : vector<128x128xi1>, vector<128x128xf32>
      %cst_83 = arith.constant dense<0.000000e+00> : vector<128xf32>
      %219 = vector.multi_reduction <add>, %218, %cst_83 [1] : vector<128x128xf32> to vector<128xf32>
      %220 = vector.shape_cast %219 : vector<128xf32> to vector<128x1xf32>
      %221 = vector.shape_cast %216 : vector<128x1xf32> to vector<128x1xf32>
      %222 = vector.broadcast %221 : vector<128x1xf32> to vector<128x128xf32>
      %223 = vector.shape_cast %220 : vector<128x1xf32> to vector<128x1xf32>
      %224 = vector.broadcast %223 : vector<128x1xf32> to vector<128x128xf32>
      %225 = arith.select %6, %222, %224 : vector<128x128xi1>, vector<128x128xf32>
      %cst_84 = arith.constant 1.562500e-02 : f32
      %226 = vector.broadcast %cst_84 : f32 to vector<128x128xf32>
      %227 = arith.mulf %225, %226 : vector<128x128xf32>
      %cst_85 = arith.constant 9.99999974E-6 : f32
      %228 = vector.broadcast %cst_85 : f32 to vector<128x128xf32>
      %229 = arith.addf %227, %228 : vector<128x128xf32>
      %230 = math.rsqrt %229 : vector<128x128xf32>
      %231 = arith.mulf %211, %230 : vector<128x128xf32>
      %232 = vector.broadcast %194 : vector<1x128xf32> to vector<128x128xf32>
      %233 = arith.mulf %231, %232 : vector<128x128xf32>
      %234 = vector.broadcast %195 : vector<1x128xf32> to vector<128x128xf32>
      %235 = arith.addf %233, %234 : vector<128x128xf32>
      %c0_86 = arith.constant 0 : index
      %c0_87 = arith.constant 0 : index
      %236 = vector.load %arg16[%c0_86, %c0_87] : memref<128x128xf32, #tpu.memory_space<vmem>>, vector<128x128xf32>
      tpu.vector_store %arg16[%c0_86, %c0_87], %235 {strides = array<i32>} : memref<128x128xf32, #tpu.memory_space<vmem>>, vector<128x128xf32>,
    } else {
    }
    return
  }
  func.func @transform_0(%arg0: i32, %arg1: i32) -> (i32, i32) {
    %c0_i32 = arith.constant 0 : i32
    %c0_i32_0 = arith.constant 0 : i32
    return %arg0, %c0_i32 : i32, i32
  }
  func.func @transform_1(%arg0: i32, %arg1: i32) -> (i32, i32, i32) {
    %c0_i32 = arith.constant 0 : i32
    %c0_i32_0 = arith.constant 0 : i32
    %c0_i32_1 = arith.constant 0 : i32
    return %arg1, %c0_i32, %c0_i32_0 : i32, i32, i32
  }
  func.func @transform_2(%arg0: i32, %arg1: i32) -> (i32, i32, i32) {
    %c0_i32 = arith.constant 0 : i32
    %c0_i32_0 = arith.constant 0 : i32
    %c0_i32_1 = arith.constant 0 : i32
    return %arg1, %c0_i32, %c0_i32_0 : i32, i32, i32
  }
  func.func @transform_3(%arg0: i32, %arg1: i32) -> (i32, i32, i32) {
    %c0_i32 = arith.constant 0 : i32
    %c0_i32_0 = arith.constant 0 : i32
    %c0_i32_1 = arith.constant 0 : i32
    return %arg1, %c0_i32, %c0_i32_0 : i32, i32, i32
  }
  func.func @transform_4(%arg0: i32, %arg1: i32) -> (i32, i32, i32) {
    %c0_i32 = arith.constant 0 : i32
    %c0_i32_0 = arith.constant 0 : i32
    %c0_i32_1 = arith.constant 0 : i32
    return %arg1, %c0_i32, %c0_i32_0 : i32, i32, i32
  }
  func.func @transform_5(%arg0: i32, %arg1: i32) -> (i32, i32, i32) {
    %c0_i32 = arith.constant 0 : i32
    %c0_i32_0 = arith.constant 0 : i32
    %c0_i32_1 = arith.constant 0 : i32
    return %arg1, %c0_i32, %c0_i32_0 : i32, i32, i32
  }
  func.func @transform_6(%arg0: i32, %arg1: i32) -> (i32, i32, i32) {
    %c0_i32 = arith.constant 0 : i32
    %c0_i32_0 = arith.constant 0 : i32
    %c0_i32_1 = arith.constant 0 : i32
    return %arg1, %c0_i32, %c0_i32_0 : i32, i32, i32
  }
  func.func @transform_7(%arg0: i32, %arg1: i32) -> (i32, i32, i32) {
    %c0_i32 = arith.constant 0 : i32
    %c0_i32_0 = arith.constant 0 : i32
    %c0_i32_1 = arith.constant 0 : i32
    return %arg1, %c0_i32, %c0_i32_0 : i32, i32, i32
  }
  func.func @transform_8(%arg0: i32, %arg1: i32) -> (i32, i32, i32) {
    %c0_i32 = arith.constant 0 : i32
    %c0_i32_0 = arith.constant 0 : i32
    %c0_i32_1 = arith.constant 0 : i32
    return %arg1, %c0_i32, %c0_i32_0 : i32, i32, i32
  }
  func.func @transform_9(%arg0: i32, %arg1: i32) -> (i32, i32, i32) {
    %c0_i32 = arith.constant 0 : i32
    %c0_i32_0 = arith.constant 0 : i32
    %c0_i32_1 = arith.constant 0 : i32
    return %arg1, %c0_i32, %c0_i32_0 : i32, i32, i32
  }
  func.func @transform_10(%arg0: i32, %arg1: i32) -> (i32, i32, i32) {
    %c0_i32 = arith.constant 0 : i32
    %c0_i32_0 = arith.constant 0 : i32
    %c0_i32_1 = arith.constant 0 : i32
    return %arg1, %c0_i32, %c0_i32_0 : i32, i32, i32
  }
  func.func @transform_11(%arg0: i32, %arg1: i32) -> (i32, i32, i32) {
    %c0_i32 = arith.constant 0 : i32
    %c0_i32_0 = arith.constant 0 : i32
    %c0_i32_1 = arith.constant 0 : i32
    return %arg1, %c0_i32, %c0_i32_0 : i32, i32, i32
  }
  func.func @transform_12(%arg0: i32, %arg1: i32) -> (i32, i32) {
    %c0_i32 = arith.constant 0 : i32
    %c0_i32_0 = arith.constant 0 : i32
    %c0_i32_1 = arith.constant 0 : i32
    return %c0_i32, %c0_i32_0 : i32, i32
  }
  func.func @transform_13(%arg0: i32, %arg1: i32) -> (i32, i32) {
    %c0_i32 = arith.constant 0 : i32
    %c0_i32_0 = arith.constant 0 : i32
    %c0_i32_1 = arith.constant 0 : i32
    return %c0_i32, %c0_i32_0 : i32, i32
  }
  func.func @transform_14(%arg0: i32, %arg1: i32) -> (i32, i32) {
    %c0_i32 = arith.constant 0 : i32
    %c0_i32_0 = arith.constant 0 : i32
    return %arg0, %c0_i32 : i32, i32
  }
}

</mosaic_0001>

<llo_original>
// kernel: cross_vit_forward.1
$region0: #{cross_vit_forward.1}
  #allocation0 [shape = 'u32[]', space=smem, size = 0x4, offset = 0x4, fixed_abs, tag = 'smem constant byte address 0x4 - core index']
  #allocation1 [shape = 'u32[144,128]{1,0:T(1,128)}', space=vmem, size = 0x12000, scoped, tag = 'internal scratch']
  %s0 = inlined_call_operand.vmem [shape: f32[128,128], index: 0, kind: input, shape index: {}, may-alias: {0,14}]
  %s1 = inlined_call_operand.vmem [shape: f32[2,1,128], index: 1, kind: input, shape index: {}]
  %s2 = inlined_call_operand.vmem [shape: f32[2,1,128], index: 2, kind: input, shape index: {}]
  %s3 = inlined_call_operand.vmem [shape: bf16[2,128,192], index: 3, kind: input, shape index: {}]
  %s4 = inlined_call_operand.vmem [shape: bf16[2,64,128], index: 4, kind: input, shape index: {}]
  %s5 = inlined_call_operand.vmem [shape: f32[2,1,128], index: 5, kind: input, shape index: {}]
  %s6 = inlined_call_operand.vmem [shape: f32[2,1,128], index: 6, kind: input, shape index: {}]
  %s7 = inlined_call_operand.vmem [shape: f32[2,1,128], index: 7, kind: input, shape index: {}]
  %s8 = inlined_call_operand.vmem [shape: bf16[2,128,256], index: 8, kind: input, shape index: {}]
  %s9 = inlined_call_operand.vmem [shape: f32[2,1,256], index: 9, kind: input, shape index: {}]
  %s10 = inlined_call_operand.vmem [shape: bf16[2,256,128], index: 10, kind: input, shape index: {}]
  %s11 = inlined_call_operand.vmem [shape: f32[2,1,128], index: 11, kind: input, shape index: {}]
  %s12 = inlined_call_operand.vmem [shape: f32[1,128], index: 12, kind: input, shape index: {}]
  %s13 = inlined_call_operand.vmem [shape: f32[1,128], index: 13, kind: input, shape index: {}]
  %s14 = inlined_call_operand.vmem [shape: f32[128,128], index: 14, kind: output, shape index: {}, may-alias: {0,14}]
  %s15 = sld [smem:[#allocation0]]
  $region101: #{cross_vit_forward.1} parent=0
    _
  %s17 = ssub.s32 1, %s15
  %s18 = scalar_select 0, %s17, %s15
  loop: start=0, step=1, limit=4
  $region2: #{cross_vit_forward.1} parent=0 // loop_pre_header
    _
  $region3: #{cross_vit_forward.1} parent=0 // loop_header
    %s20 = sphi 0, %s24
    %p21 = scmp.ge.s32.totalorder %s20, 4
    %s27 = sphi 0, %s39
    %s28 = sphi 0, %s35
    %s29 = sphi 0, %s27
    %s30 = sphi 0, %s28
    %s31 = sphi 0, %s29
    %s32 = sphi 0, %s30
    %s42 = sphi 0, %s44
    %s45 = sphi 0, %s42
    %s46 = sphi 0, %s45
    %s62 = sphi 0, %s46
    %s68 = sphi 0, %s70
    %s71 = sphi 0, %s68
    %s72 = sphi 0, %s71
    %s88 = sphi 0, %s72
    %s94 = sphi 0, %s96
    %s97 = sphi 0, %s94
    %s98 = sphi 0, %s97
    %s114 = sphi 0, %s98
    %s120 = sphi 0, %s122
    %s123 = sphi 0, %s120
    %s124 = sphi 0, %s123
    %s140 = sphi 0, %s124
    %s146 = sphi 0, %s148
    %s149 = sphi 0, %s146
    %s150 = sphi 0, %s149
    %s166 = sphi 0, %s150
    %s172 = sphi 0, %s174
    %s175 = sphi 0, %s172
    %s176 = sphi 0, %s175
    %s192 = sphi 0, %s176
    %s198 = sphi 0, %s200
    %s201 = sphi 0, %s198
    %s202 = sphi 0, %s201
    %s218 = sphi 0, %s202
    %s224 = sphi 0, %s226
    %s227 = sphi 0, %s224
    %s228 = sphi 0, %s227
    %s244 = sphi 0, %s228
    %s250 = sphi 0, %s252
    %s253 = sphi 0, %s250
    %s254 = sphi 0, %s253
    %s270 = sphi 0, %s254
    %s276 = sphi 0, %s278
    %s279 = sphi 0, %s276
    %s280 = sphi 0, %s279
    %s296 = sphi 0, %s280
    %s302 = sphi 0, %s304
    %s305 = sphi 0, %s302
    %s306 = sphi 0, %s305
    %s322 = sphi 0, %s306
    %s328 = sphi 0, %s330
    %s331 = sphi 0, %s328
    %s332 = sphi 0, %s331
    %s348 = sphi 0, %s332
    %s352 = sphi 0, %s352
    %s354 = sphi 0, %s352
    %s355 = sphi 0, %s354
    %s369 = sphi 0, %s355
    %s373 = sphi 0, %s373
    %s375 = sphi 0, %s373
    %s376 = sphi 0, %s375
    %s390 = sphi 0, %s376
    %s396 = sphi 0, %s398
    %s399 = sphi 0, %s396
    %s400 = sphi 0, %s399
    %s416 = sphi 0, %s400
  $region4: #{cross_vit_forward.1} parent=0 // loop_header_branch
    %23 = sbr.rel (%p21) target = $region8
  $region5: #{cross_vit_forward.1} parent=0 // loop_body
    %s25 = ssub.s32 %s20, 1
    %s26 = ssub.s32 %s20, 2
    %s33 = sadd.s32 1, %s28
    %p34 = scmp.ge.s32.totalorder %s33, 2
    %s35 = scalar_select %p34, 0, %s33
    %s36 = sadd.s32 1, %s27
    %s37 = scalar_select %p34, %s36, %s27
    %p38 = scmp.ge.s32.totalorder %s37, 1
    %s39 = scalar_select %p38, 0, %s37
    %s40 = ssub.s32 %s27, %s39
    %p41 = scmp.eq.s32.totalorder %s40, 0
    %s43 = sadd.s32 %s42, 1
    %s44 = scalar_select %p41, %s42, %s43
    %p47 = pneg %p41
    %p48 = scmp.eq.s32.totalorder %s20, 1
    %p49 = por %p47, %p48
    %p50 = scmp.ne.s32.totalorder %s42, %s45
    %p51 = scmp.eq.s32.totalorder %s20, 0
    %p52 = por %p50, %p51
    %p53 = scmp.ne.s32.totalorder %s42, %s45
    %p54 = scmp.eq.s32.totalorder %s25, 1
    %p55 = por %p53, %p54
    %p56 = scmp.ne.s32.totalorder %s45, %s46
    %p57 = scmp.eq.s32.totalorder %s25, 0
    %p58 = por %p56, %p57
    %p59 = scmp.ne.s32.totalorder %s45, %s46
    %p60 = scmp.eq.s32.totalorder %s26, 1
    %p61 = por %p59, %p60
    %p63 = scmp.ne.s32.totalorder %s46, %s62
    %p64 = scmp.eq.s32.totalorder %s26, 0
    %p65 = por %p63, %p64
    %s66 = ssub.s32 %s28, %s35
    %p67 = scmp.eq.s32.totalorder %s66, 0
    %s69 = sadd.s32 %s68, 1
    %s70 = scalar_select %p67, %s68, %s69
    %p73 = pneg %p67
    %p74 = scmp.eq.s32.totalorder %s20, 1
    %p75 = por %p73, %p74
    %p76 = scmp.ne.s32.totalorder %s68, %s71
    %p77 = scmp.eq.s32.totalorder %s20, 0
    %p78 = por %p76, %p77
    %p79 = scmp.ne.s32.totalorder %s68, %s71
    %p80 = scmp.eq.s32.totalorder %s25, 1
    %p81 = por %p79, %p80
    %p82 = scmp.ne.s32.totalorder %s71, %s72
    %p83 = scmp.eq.s32.totalorder %s25, 0
    %p84 = por %p82, %p83
    %p85 = scmp.ne.s32.totalorder %s71, %s72
    %p86 = scmp.eq.s32.totalorder %s26, 1
    %p87 = por %p85, %p86
    %p89 = scmp.ne.s32.totalorder %s72, %s88
    %p90 = scmp.eq.s32.totalorder %s26, 0
    %p91 = por %p89, %p90
    %s92 = ssub.s32 %s28, %s35
    %p93 = scmp.eq.s32.totalorder %s92, 0
    %s95 = sadd.s32 %s94, 1
    %s96 = scalar_select %p93, %s94, %s95
    %p99 = pneg %p93
    %p100 = scmp.eq.s32.totalorder %s20, 1
    %p101 = por %p99, %p100
    %p102 = scmp.ne.s32.totalorder %s94, %s97
    %p103 = scmp.eq.s32.totalorder %s20, 0
    %p104 = por %p102, %p103
    %p105 = scmp.ne.s32.totalorder %s94, %s97
    %p106 = scmp.eq.s32.totalorder %s25, 1
    %p107 = por %p105, %p106
    %p108 = scmp.ne.s32.totalorder %s97, %s98
    %p109 = scmp.eq.s32.totalorder %s25, 0
    %p110 = por %p108, %p109
    %p111 = scmp.ne.s32.totalorder %s97, %s98
    %p112 = scmp.eq.s32.totalorder %s26, 1
    %p113 = por %p111, %p112
    %p115 = scmp.ne.s32.totalorder %s98, %s114
    %p116 = scmp.eq.s32.totalorder %s26, 0
    %p117 = por %p115, %p116
    %s118 = ssub.s32 %s28, %s35
    %p119 = scmp.eq.s32.totalorder %s118, 0
    %s121 = sadd.s32 %s120, 1
    %s122 = scalar_select %p119, %s120, %s121
    %p125 = pneg %p119
    %p126 = scmp.eq.s32.totalorder %s20, 1
    %p127 = por %p125, %p126
    %p128 = scmp.ne.s32.totalorder %s120, %s123
    %p129 = scmp.eq.s32.totalorder %s20, 0
    %p130 = por %p128, %p129
    %p131 = scmp.ne.s32.totalorder %s120, %s123
    %p132 = scmp.eq.s32.totalorder %s25, 1
    %p133 = por %p131, %p132
    %p134 = scmp.ne.s32.totalorder %s123, %s124
    %p135 = scmp.eq.s32.totalorder %s25, 0
    %p136 = por %p134, %p135
    %p137 = scmp.ne.s32.totalorder %s123, %s124
    %p138 = scmp.eq.s32.totalorder %s26, 1
    %p139 = por %p137, %p138
    %p141 = scmp.ne.s32.totalorder %s124, %s140
    %p142 = scmp.eq.s32.totalorder %s26, 0
    %p143 = por %p141, %p142
    %s144 = ssub.s32 %s28, %s35
    %p145 = scmp.eq.s32.totalorder %s144, 0
    %s147 = sadd.s32 %s146, 1
    %s148 = scalar_select %p145, %s146, %s147
    %p151 = pneg %p145
    %p152 = scmp.eq.s32.totalorder %s20, 1
    %p153 = por %p151, %p152
    %p154 = scmp.ne.s32.totalorder %s146, %s149
    %p155 = scmp.eq.s32.totalorder %s20, 0
    %p156 = por %p154, %p155
    %p157 = scmp.ne.s32.totalorder %s146, %s149
    %p158 = scmp.eq.s32.totalorder %s25, 1
    %p159 = por %p157, %p158
    %p160 = scmp.ne.s32.totalorder %s149, %s150
    %p161 = scmp.eq.s32.totalorder %s25, 0
    %p162 = por %p160, %p161
    %p163 = scmp.ne.s32.totalorder %s149, %s150
    %p164 = scmp.eq.s32.totalorder %s26, 1
    %p165 = por %p163, %p164
    %p167 = scmp.ne.s32.totalorder %s150, %s166
    %p168 = scmp.eq.s32.totalorder %s26, 0
    %p169 = por %p167, %p168
    %s170 = ssub.s32 %s28, %s35
    %p171 = scmp.eq.s32.totalorder %s170, 0
    %s173 = sadd.s32 %s172, 1
    %s174 = scalar_select %p171, %s172, %s173
    %p177 = pneg %p171
    %p178 = scmp.eq.s32.totalorder %s20, 1
    %p179 = por %p177, %p178
    %p180 = scmp.ne.s32.totalorder %s172, %s175
    %p181 = scmp.eq.s32.totalorder %s20, 0
    %p182 = por %p180, %p181
    %p183 = scmp.ne.s32.totalorder %s172, %s175
    %p184 = scmp.eq.s32.totalorder %s25, 1
    %p185 = por %p183, %p184
    %p186 = scmp.ne.s32.totalorder %s175, %s176
    %p187 = scmp.eq.s32.totalorder %s25, 0
    %p188 = por %p186, %p187
    %p189 = scmp.ne.s32.totalorder %s175, %s176
    %p190 = scmp.eq.s32.totalorder %s26, 1
    %p191 = por %p189, %p190
    %p193 = scmp.ne.s32.totalorder %s176, %s192
    %p194 = scmp.eq.s32.totalorder %s26, 0
    %p195 = por %p193, %p194
    %s196 = ssub.s32 %s28, %s35
    %p197 = scmp.eq.s32.totalorder %s196, 0
    %s199 = sadd.s32 %s198, 1
    %s200 = scalar_select %p197, %s198, %s199
    %p203 = pneg %p197
    %p204 = scmp.eq.s32.totalorder %s20, 1
    %p205 = por %p203, %p204
    %p206 = scmp.ne.s32.totalorder %s198, %s201
    %p207 = scmp.eq.s32.totalorder %s20, 0
    %p208 = por %p206, %p207
    %p209 = scmp.ne.s32.totalorder %s198, %s201
    %p210 = scmp.eq.s32.totalorder %s25, 1
    %p211 = por %p209, %p210
    %p212 = scmp.ne.s32.totalorder %s201, %s202
    %p213 = scmp.eq.s32.totalorder %s25, 0
    %p214 = por %p212, %p213
    %p215 = scmp.ne.s32.totalorder %s201, %s202
    %p216 = scmp.eq.s32.totalorder %s26, 1
    %p217 = por %p215, %p216
    %p219 = scmp.ne.s32.totalorder %s202, %s218
    %p220 = scmp.eq.s32.totalorder %s26, 0
    %p221 = por %p219, %p220
    %s222 = ssub.s32 %s28, %s35
    %p223 = scmp.eq.s32.totalorder %s222, 0
    %s225 = sadd.s32 %s224, 1
    %s226 = scalar_select %p223, %s224, %s225
    %p229 = pneg %p223
    %p230 = scmp.eq.s32.totalorder %s20, 1
    %p231 = por %p229, %p230
    %p232 = scmp.ne.s32.totalorder %s224, %s227
    %p233 = scmp.eq.s32.totalorder %s20, 0
    %p234 = por %p232, %p233
    %p235 = scmp.ne.s32.totalorder %s224, %s227
    %p236 = scmp.eq.s32.totalorder %s25, 1
    %p237 = por %p235, %p236
    %p238 = scmp.ne.s32.totalorder %s227, %s228
    %p239 = scmp.eq.s32.totalorder %s25, 0
    %p240 = por %p238, %p239
    %p241 = scmp.ne.s32.totalorder %s227, %s228
    %p242 = scmp.eq.s32.totalorder %s26, 1
    %p243 = por %p241, %p242
    %p245 = scmp.ne.s32.totalorder %s228, %s244
    %p246 = scmp.eq.s32.totalorder %s26, 0
    %p247 = por %p245, %p246
    %s248 = ssub.s32 %s28, %s35
    %p249 = scmp.eq.s32.totalorder %s248, 0
    %s251 = sadd.s32 %s250, 1
    %s252 = scalar_select %p249, %s250, %s251
    %p255 = pneg %p249
    %p256 = scmp.eq.s32.totalorder %s20, 1
    %p257 = por %p255, %p256
    %p258 = scmp.ne.s32.totalorder %s250, %s253
    %p259 = scmp.eq.s32.totalorder %s20, 0
    %p260 = por %p258, %p259
    %p261 = scmp.ne.s32.totalorder %s250, %s253
    %p262 = scmp.eq.s32.totalorder %s25, 1
    %p263 = por %p261, %p262
    %p264 = scmp.ne.s32.totalorder %s253, %s254
    %p265 = scmp.eq.s32.totalorder %s25, 0
    %p266 = por %p264, %p265
    %p267 = scmp.ne.s32.totalorder %s253, %s254
    %p268 = scmp.eq.s32.totalorder %s26, 1
    %p269 = por %p267, %p268
    %p271 = scmp.ne.s32.totalorder %s254, %s270
    %p272 = scmp.eq.s32.totalorder %s26, 0
    %p273 = por %p271, %p272
    %s274 = ssub.s32 %s28, %s35
    %p275 = scmp.eq.s32.totalorder %s274, 0
    %s277 = sadd.s32 %s276, 1
    %s278 = scalar_select %p275, %s276, %s277
    %p281 = pneg %p275
    %p282 = scmp.eq.s32.totalorder %s20, 1
    %p283 = por %p281, %p282
    %p284 = scmp.ne.s32.totalorder %s276, %s279
    %p285 = scmp.eq.s32.totalorder %s20, 0
    %p286 = por %p284, %p285
    %p287 = scmp.ne.s32.totalorder %s276, %s279
    %p288 = scmp.eq.s32.totalorder %s25, 1
    %p289 = por %p287, %p288
    %p290 = scmp.ne.s32.totalorder %s279, %s280
    %p291 = scmp.eq.s32.totalorder %s25, 0
    %p292 = por %p290, %p291
    %p293 = scmp.ne.s32.totalorder %s279, %s280
    %p294 = scmp.eq.s32.totalorder %s26, 1
    %p295 = por %p293, %p294
    %p297 = scmp.ne.s32.totalorder %s280, %s296
    %p298 = scmp.eq.s32.totalorder %s26, 0
    %p299 = por %p297, %p298
    %s300 = ssub.s32 %s28, %s35
    %p301 = scmp.eq.s32.totalorder %s300, 0
    %s303 = sadd.s32 %s302, 1
    %s304 = scalar_select %p301, %s302, %s303
    %p307 = pneg %p301
    %p308 = scmp.eq.s32.totalorder %s20, 1
    %p309 = por %p307, %p308
    %p310 = scmp.ne.s32.totalorder %s302, %s305
    %p311 = scmp.eq.s32.totalorder %s20, 0
    %p312 = por %p310, %p311
    %p313 = scmp.ne.s32.totalorder %s302, %s305
    %p314 = scmp.eq.s32.totalorder %s25, 1
    %p315 = por %p313, %p314
    %p316 = scmp.ne.s32.totalorder %s305, %s306
    %p317 = scmp.eq.s32.totalorder %s25, 0
    %p318 = por %p316, %p317
    %p319 = scmp.ne.s32.totalorder %s305, %s306
    %p320 = scmp.eq.s32.totalorder %s26, 1
    %p321 = por %p319, %p320
    %p323 = scmp.ne.s32.totalorder %s306, %s322
    %p324 = scmp.eq.s32.totalorder %s26, 0
    %p325 = por %p323, %p324
    %s326 = ssub.s32 %s28, %s35
    %p327 = scmp.eq.s32.totalorder %s326, 0
    %s329 = sadd.s32 %s328, 1
    %s330 = scalar_select %p327, %s328, %s329
    %p333 = pneg %p327
    %p334 = scmp.eq.s32.totalorder %s20, 1
    %p335 = por %p333, %p334
    %p336 = scmp.ne.s32.totalorder %s328, %s331
    %p337 = scmp.eq.s32.totalorder %s20, 0
    %p338 = por %p336, %p337
    %p339 = scmp.ne.s32.totalorder %s328, %s331
    %p340 = scmp.eq.s32.totalorder %s25, 1
    %p341 = por %p339, %p340
    %p342 = scmp.ne.s32.totalorder %s331, %s332
    %p343 = scmp.eq.s32.totalorder %s25, 0
    %p344 = por %p342, %p343
    %p345 = scmp.ne.s32.totalorder %s331, %s332
    %p346 = scmp.eq.s32.totalorder %s26, 1
    %p347 = por %p345, %p346
    %p349 = scmp.ne.s32.totalorder %s332, %s348
    %p350 = scmp.eq.s32.totalorder %s26, 0
    %p351 = por %p349, %p350
    %s353 = sadd.s32 %s352, 1
    %p356 = scmp.eq.s32.totalorder %s20, 1
    %p357 = scmp.ne.s32.totalorder %s352, %s354
    %p358 = scmp.eq.s32.totalorder %s20, 0
    %p359 = por %p357, %p358
    %p360 = scmp.ne.s32.totalorder %s352, %s354
    %p361 = scmp.eq.s32.totalorder %s25, 1
    %p362 = por %p360, %p361
    %p363 = scmp.ne.s32.totalorder %s354, %s355
    %p364 = scmp.eq.s32.totalorder %s25, 0
    %p365 = por %p363, %p364
    %p366 = scmp.ne.s32.totalorder %s354, %s355
    %p367 = scmp.eq.s32.totalorder %s26, 1
    %p368 = por %p366, %p367
    %p370 = scmp.ne.s32.totalorder %s355, %s369
    %p371 = scmp.eq.s32.totalorder %s26, 0
    %p372 = por %p370, %p371
    %s374 = sadd.s32 %s373, 1
    %p377 = scmp.eq.s32.totalorder %s20, 1
    %p378 = scmp.ne.s32.totalorder %s373, %s375
    %p379 = scmp.eq.s32.totalorder %s20, 0
    %p380 = por %p378, %p379
    %p381 = scmp.ne.s32.totalorder %s373, %s375
    %p382 = scmp.eq.s32.totalorder %s25, 1
    %p383 = por %p381, %p382
    %p384 = scmp.ne.s32.totalorder %s375, %s376
    %p385 = scmp.eq.s32.totalorder %s25, 0
    %p386 = por %p384, %p385
    %p387 = scmp.ne.s32.totalorder %s375, %s376
    %p388 = scmp.eq.s32.totalorder %s26, 1
    %p389 = por %p387, %p388
    %p391 = scmp.ne.s32.totalorder %s376, %s390
    %p392 = scmp.eq.s32.totalorder %s26, 0
    %p393 = por %p391, %p392
    %s394 = ssub.s32 %s27, %s39
    %p395 = scmp.eq.s32.totalorder %s394, 0
    %s397 = sadd.s32 %s396, 1
    %s398 = scalar_select %p395, %s396, %s397
    %p401 = pneg %p395
    %p402 = scmp.eq.s32.totalorder %s20, 1
    %p403 = por %p401, %p402
    %p404 = scmp.ne.s32.totalorder %s396, %s399
    %p405 = scmp.eq.s32.totalorder %s20, 0
    %p406 = por %p404, %p405
    %p407 = scmp.ne.s32.totalorder %s396, %s399
    %p408 = scmp.eq.s32.totalorder %s25, 1
    %p409 = por %p407, %p408
    %p410 = scmp.ne.s32.totalorder %s399, %s400
    %p411 = scmp.eq.s32.totalorder %s25, 0
    %p412 = por %p410, %p411
    %p413 = scmp.ne.s32.totalorder %s399, %s400
    %p414 = scmp.eq.s32.totalorder %s26, 1
    %p415 = por %p413, %p414
    %p417 = scmp.ne.s32.totalorder %s400, %s416
    %p418 = scmp.eq.s32.totalorder %s26, 0
    %p419 = por %p417, %p418
    %p420 = scmp.le.s32.totalorder 1, %s20
    %p421 = scmp.lt.s32.totalorder %s20, 3
    %p422 = pnand %p420, %p421
    %p423 = pneg %p422
    // Predicated region
    $region9: #{cross_vit_forward.1} parent=5 // pred_check
      _
    $region10: #{cross_vit_forward.1} parent=5 // pred_check_branch
      %425 = sbr.rel (%p422) target = $region12
    $region11: #{cross_vit_forward.1} parent=5 // pred_region
      %s426 = ssub.s32 %s20, 1
      // Predicated region
      $region13: #{cross_vit_forward.1} parent=11 // pred_check
        %p427 = pneg %p58
      $region14: #{cross_vit_forward.1} parent=11 // pred_check_branch
        %429 = sbr.rel (%p427) target = $region16
      $region15: #{cross_vit_forward.1} parent=11 // pred_region
        %s430 = smul.u32 16, %s29
        %p431 = scmp.lt.s32.totalorder %s430, 15
        %s432 = scalar_select %p431, %s430, 15
        %s433 = smul.addr %s432, 8
        %s434 = scalar_lea.vmem %s0, %s433
        %s435 = smul.u32 16, %s29
      $region16: #{cross_vit_forward.1} parent=11 // pred_fallthru
        _
      // Predicated region
      $region17: #{cross_vit_forward.1} parent=11 // pred_check
        %p436 = pneg %p365
      $region18: #{cross_vit_forward.1} parent=11 // pred_check_branch
        %438 = sbr.rel (%p436) target = $region20
      $region19: #{cross_vit_forward.1} parent=11 // pred_region
        _
      $region20: #{cross_vit_forward.1} parent=11 // pred_fallthru
        _
      // Predicated region
      $region21: #{cross_vit_forward.1} parent=11 // pred_check
        %p439 = pneg %p386
      $region22: #{cross_vit_forward.1} parent=11 // pred_check_branch
        %441 = sbr.rel (%p439) target = $region24
      $region23: #{cross_vit_forward.1} parent=11 // pred_region
        _
      $region24: #{cross_vit_forward.1} parent=11 // pred_fallthru
        _
    $region12: #{cross_vit_forward.1} parent=5 // pred_fallthru
      _
    %p442 = scmp.lt.s32.totalorder %s20, 2
    // Predicated region
    $region25: #{cross_vit_forward.1} parent=5 // pred_check
      %p443 = pneg %p442
    $region26: #{cross_vit_forward.1} parent=5 // pred_check_branch
      %445 = sbr.rel (%p443) target = $region28
    $region27: #{cross_vit_forward.1} parent=5 // pred_region
      // Predicated region
      $region29: #{cross_vit_forward.1} parent=27 // pred_check
        %p446 = pneg %p78
      $region30: #{cross_vit_forward.1} parent=27 // pred_check_branch
        %448 = sbr.rel (%p446) target = $region32
      $region31: #{cross_vit_forward.1} parent=27 // pred_region
        %p449 = scmp.lt.s32.totalorder %s28, 1
        %s450 = scalar_select %p449, %s28, 1
        %s451 = scalar_lea.vmem %s1, %s450
      $region32: #{cross_vit_forward.1} parent=27 // pred_fallthru
        _
      // Predicated region
      $region33: #{cross_vit_forward.1} parent=27 // pred_check
        %p452 = pneg %p104
      $region34: #{cross_vit_forward.1} parent=27 // pred_check_branch
        %454 = sbr.rel (%p452) target = $region36
      $region35: #{cross_vit_forward.1} parent=27 // pred_region
        %p455 = scmp.lt.s32.totalorder %s28, 1
        %s456 = scalar_select %p455, %s28, 1
        %s457 = scalar_lea.vmem %s2, %s456
      $region36: #{cross_vit_forward.1} parent=27 // pred_fallthru
        _
      // Predicated region
      $region37: #{cross_vit_forward.1} parent=27 // pred_check
        %p458 = pneg %p130
      $region38: #{cross_vit_forward.1} parent=27 // pred_check_branch
        %460 = sbr.rel (%p458) target = $region40
      $region39: #{cross_vit_forward.1} parent=27 // pred_region
        %p461 = scmp.lt.s32.totalorder %s28, 1
        %s462 = scalar_select %p461, %s28, 1
        %s463 = smul.addr %s462, 32
        %s464 = smul.addr %s463, 4
        %s465 = scalar_lea.vmem %s3, %s464
      $region40: #{cross_vit_forward.1} parent=27 // pred_fallthru
        _
      // Predicated region
      $region41: #{cross_vit_forward.1} parent=27 // pred_check
        %p466 = pneg %p156
      $region42: #{cross_vit_forward.1} parent=27 // pred_check_branch
        %468 = sbr.rel (%p466) target = $region44
      $region43: #{cross_vit_forward.1} parent=27 // pred_region
        %p469 = scmp.lt.s32.totalorder %s28, 1
        %s470 = scalar_select %p469, %s28, 1
        %s471 = smul.addr %s470, 8
        %s472 = smul.addr %s471, 4
        %s473 = scalar_lea.vmem %s4, %s472
      $region44: #{cross_vit_forward.1} parent=27 // pred_fallthru
        _
      // Predicated region
      $region45: #{cross_vit_forward.1} parent=27 // pred_check
        %p474 = pneg %p182
      $region46: #{cross_vit_forward.1} parent=27 // pred_check_branch
        %476 = sbr.rel (%p474) target = $region48
      $region47: #{cross_vit_forward.1} parent=27 // pred_region
        %p477 = scmp.lt.s32.totalorder %s28, 1
        %s478 = scalar_select %p477, %s28, 1
        %s479 = scalar_lea.vmem %s5, %s478
      $region48: #{cross_vit_forward.1} parent=27 // pred_fallthru
        _
      // Predicated region
      $region49: #{cross_vit_forward.1} parent=27 // pred_check
        %p480 = pneg %p208
      $region50: #{cross_vit_forward.1} parent=27 // pred_check_branch
        %482 = sbr.rel (%p480) target = $region52
      $region51: #{cross_vit_forward.1} parent=27 // pred_region
        %p483 = scmp.lt.s32.totalorder %s28, 1
        %s484 = scalar_select %p483, %s28, 1
        %s485 = scalar_lea.vmem %s6, %s484
      $region52: #{cross_vit_forward.1} parent=27 // pred_fallthru
        _
      // Predicated region
      $region53: #{cross_vit_forward.1} parent=27 // pred_check
        %p486 = pneg %p234
      $region54: #{cross_vit_forward.1} parent=27 // pred_check_branch
        %488 = sbr.rel (%p486) target = $region56
      $region55: #{cross_vit_forward.1} parent=27 // pred_region
        %p489 = scmp.lt.s32.totalorder %s28, 1
        %s490 = scalar_select %p489, %s28, 1
        %s491 = scalar_lea.vmem %s7, %s490
      $region56: #{cross_vit_forward.1} parent=27 // pred_fallthru
        _
      // Predicated region
      $region57: #{cross_vit_forward.1} parent=27 // pred_check
        %p492 = pneg %p260
      $region58: #{cross_vit_forward.1} parent=27 // pred_check_branch
        %494 = sbr.rel (%p492) target = $region60
      $region59: #{cross_vit_forward.1} parent=27 // pred_region
        %p495 = scmp.lt.s32.totalorder %s28, 1
        %s496 = scalar_select %p495, %s28, 1
        %s497 = smul.addr %s496, 32
        %s498 = smul.addr %s497, 4
        %s499 = scalar_lea.vmem %s8, %s498
      $region60: #{cross_vit_forward.1} parent=27 // pred_fallthru
        _
      // Predicated region
      $region61: #{cross_vit_forward.1} parent=27 // pred_check
        %p500 = pneg %p286
      $region62: #{cross_vit_forward.1} parent=27 // pred_check_branch
        %502 = sbr.rel (%p500) target = $region64
      $region63: #{cross_vit_forward.1} parent=27 // pred_region
        %p503 = scmp.lt.s32.totalorder %s28, 1
        %s504 = scalar_select %p503, %s28, 1
        %s505 = smul.addr %s504, 2
        %s506 = scalar_lea.vmem %s9, %s505
      $region64: #{cross_vit_forward.1} parent=27 // pred_fallthru
        _
      // Predicated region
      $region65: #{cross_vit_forward.1} parent=27 // pred_check
        %p507 = pneg %p312
      $region66: #{cross_vit_forward.1} parent=27 // pred_check_branch
        %509 = sbr.rel (%p507) target = $region68
      $region67: #{cross_vit_forward.1} parent=27 // pred_region
        %p510 = scmp.lt.s32.totalorder %s28, 1
        %s511 = scalar_select %p510, %s28, 1
        %s512 = smul.addr %s511, 32
        %s513 = smul.addr %s512, 4
        %s514 = scalar_lea.vmem %s10, %s513
      $region68: #{cross_vit_forward.1} parent=27 // pred_fallthru
        _
      // Predicated region
      $region69: #{cross_vit_forward.1} parent=27 // pred_check
        %p515 = pneg %p338
      $region70: #{cross_vit_forward.1} parent=27 // pred_check_branch
        %517 = sbr.rel (%p515) target = $region72
      $region71: #{cross_vit_forward.1} parent=27 // pred_region
        %p518 = scmp.lt.s32.totalorder %s28, 1
        %s519 = scalar_select %p518, %s28, 1
        %s520 = scalar_lea.vmem %s11, %s519
      $region72: #{cross_vit_forward.1} parent=27 // pred_fallthru
        _
    $region28: #{cross_vit_forward.1} parent=5 // pred_fallthru
      _
    %p521 = scmp.le.s32.totalorder 1, %s20
    %p522 = scmp.lt.s32.totalorder %s20, 3
    %p523 = pnand %p521, %p522
    %p524 = pneg %p523
    // Predicated region
    $region73: #{cross_vit_forward.1} parent=5 // pred_check
      _
    $region74: #{cross_vit_forward.1} parent=5 // pred_check_branch
      %526 = sbr.rel (%p523) target = $region76
    $region75: #{cross_vit_forward.1} parent=5 // pred_region
      %s527 = ssub.s32 %s20, 1
      %s528 = smul.u32 16, %s29
      %p529 = scmp.lt.s32.totalorder %s528, 15
      %s530 = scalar_select %p529, %s528, 15
      %s531 = smul.addr %s530, 8
      %s532 = scalar_lea.vmem %s0, %s531
      %p533 = pneg %p58
      %p534 = pneg %p55
      %p535 = scmp.lt.s32.totalorder %s30, 1
      %s536 = scalar_select %p535, %s30, 1
      %s537 = scalar_lea.vmem %s1, %s536
      %p538 = pneg %p84
      %p539 = pneg %p81
      %p540 = scmp.lt.s32.totalorder %s30, 1
      %s541 = scalar_select %p540, %s30, 1
      %s542 = scalar_lea.vmem %s2, %s541
      %p543 = pneg %p110
      %p544 = pneg %p107
      %p545 = scmp.lt.s32.totalorder %s30, 1
      %s546 = scalar_select %p545, %s30, 1
      %s547 = smul.addr %s546, 32
      %s548 = smul.addr %s547, 4
      %s549 = scalar_lea.vmem %s3, %s548
      %p550 = pneg %p136
      %p551 = pneg %p133
      %p552 = scmp.lt.s32.totalorder %s30, 1
      %s553 = scalar_select %p552, %s30, 1
      %s554 = smul.addr %s553, 8
      %s555 = smul.addr %s554, 4
      %s556 = scalar_lea.vmem %s4, %s555
      %p557 = pneg %p162
      %p558 = pneg %p159
      %p559 = scmp.lt.s32.totalorder %s30, 1
      %s560 = scalar_select %p559, %s30, 1
      %s561 = scalar_lea.vmem %s5, %s560
      %p562 = pneg %p188
      %p563 = pneg %p185
      %p564 = scmp.lt.s32.totalorder %s30, 1
      %s565 = scalar_select %p564, %s30, 1
      %s566 = scalar_lea.vmem %s6, %s565
      %p567 = pneg %p214
      %p568 = pneg %p211
      %p569 = scmp.lt.s32.totalorder %s30, 1
      %s570 = scalar_select %p569, %s30, 1
      %s571 = scalar_lea.vmem %s7, %s570
      %p572 = pneg %p240
      %p573 = pneg %p237
      %p574 = scmp.lt.s32.totalorder %s30, 1
      %s575 = scalar_select %p574, %s30, 1
      %s576 = smul.addr %s575, 32
      %s577 = smul.addr %s576, 4
      %s578 = scalar_lea.vmem %s8, %s577
      %p579 = pneg %p266
      %p580 = pneg %p263
      %p581 = scmp.lt.s32.totalorder %s30, 1
      %s582 = scalar_select %p581, %s30, 1
      %s583 = smul.addr %s582, 2
      %s584 = scalar_lea.vmem %s9, %s583
      %p585 = pneg %p292
      %p586 = pneg %p289
      %p587 = scmp.lt.s32.totalorder %s30, 1
      %s588 = scalar_select %p587, %s30, 1
      %s589 = smul.addr %s588, 32
      %s590 = smul.addr %s589, 4
      %s591 = scalar_lea.vmem %s10, %s590
      %p592 = pneg %p318
      %p593 = pneg %p315
      %p594 = scmp.lt.s32.totalorder %s30, 1
      %s595 = scalar_select %p594, %s30, 1
      %s596 = scalar_lea.vmem %s11, %s595
      %p597 = pneg %p344
      %p598 = pneg %p341
      %p599 = pneg %p365
      %p600 = pneg %p362
      %p601 = pneg %p386
      %p602 = pneg %p383
      %p603 = pneg %p412
      %p604 = pneg %p409
      %s605 = smul.u32 16, %s29
      %p606 = scmp.lt.s32.totalorder %s605, 15
      %s607 = scalar_select %p606, %s605, 15
      %s608 = smul.addr %s607, 8
      %s609 = scalar_lea.vmem %s14, %s608
      %s610 = smul.u32 16, %s29
      %p611 = scmp.lt.s32.totalorder %s610, 15
      %s612 = scalar_select %p611, %s610, 15
      %s613 = smul.addr %s612, 8
      %s614 = scalar_lea.vmem %s0, %s613
      %s615 = smul.u32 16, %s29
      %p616 = scmp.lt.s32.totalorder %s30, 1
      %s617 = scalar_select %p616, %s30, 1
      %s618 = scalar_lea.vmem %s1, %s617
      %p619 = scmp.lt.s32.totalorder %s30, 1
      %s620 = scalar_select %p619, %s30, 1
      %s621 = scalar_lea.vmem %s2, %s620
      %p622 = scmp.lt.s32.totalorder %s30, 1
      %s623 = scalar_select %p622, %s30, 1
      %s624 = smul.addr %s623, 32
      %s625 = smul.addr %s624, 4
      %s626 = scalar_lea.vmem %s3, %s625
      %p627 = scmp.lt.s32.totalorder %s30, 1
      %s628 = scalar_select %p627, %s30, 1
      %s629 = smul.addr %s628, 8
      %s630 = smul.addr %s629, 4
      %s631 = scalar_lea.vmem %s4, %s630
      %p632 = scmp.lt.s32.totalorder %s30, 1
      %s633 = scalar_select %p632, %s30, 1
      %s634 = scalar_lea.vmem %s5, %s633
      %p635 = scmp.lt.s32.totalorder %s30, 1
      %s636 = scalar_select %p635, %s30, 1
      %s637 = scalar_lea.vmem %s6, %s636
      %p638 = scmp.lt.s32.totalorder %s30, 1
      %s639 = scalar_select %p638, %s30, 1
      %s640 = scalar_lea.vmem %s7, %s639
      %p641 = scmp.lt.s32.totalorder %s30, 1
      %s642 = scalar_select %p641, %s30, 1
      %s643 = smul.addr %s642, 32
      %s644 = smul.addr %s643, 4
      %s645 = scalar_lea.vmem %s8, %s644
      %p646 = scmp.lt.s32.totalorder %s30, 1
      %s647 = scalar_select %p646, %s30, 1
      %s648 = smul.addr %s647, 2
      %s649 = scalar_lea.vmem %s9, %s648
      %p650 = scmp.lt.s32.totalorder %s30, 1
      %s651 = scalar_select %p650, %s30, 1
      %s652 = smul.addr %s651, 32
      %s653 = smul.addr %s652, 4
      %s654 = scalar_lea.vmem %s10, %s653
      %p655 = scmp.lt.s32.totalorder %s30, 1
      %s656 = scalar_select %p655, %s30, 1
      %s657 = scalar_lea.vmem %s11, %s656
      %s658 = smul.u32 16, %s29
      %p659 = scmp.lt.s32.totalorder %s658, 15
      %s660 = scalar_select %p659, %s658, 15
      %s661 = smul.addr %s660, 8
      %s662 = scalar_lea.vmem %s14, %s661
      %s663 = smul.u32 16, %s29
      %p665 = scmp.eq.s32.totalorder %s30, 0
      // Predicated region
      $region77: #{cross_vit_forward.1} parent=75 // pred_check
        %p666 = pneg %p665
      $region78: #{cross_vit_forward.1} parent=75 // pred_check_branch
        %668 = sbr.rel (%p666) target = $region80
      $region79: #{cross_vit_forward.1} parent=75 // pred_region
        %v669 = vld [vmem:[%s614] sm:$0xff]
        %v670 = vld [vmem:[%s614 + $0x8] sm:$0xff]
        %v671 = vld [vmem:[%s614 + $0x10] sm:$0xff]
        %v672 = vld [vmem:[%s614 + $0x18] sm:$0xff]
        %v673 = vld [vmem:[%s614 + $0x20] sm:$0xff]
        %v674 = vld [vmem:[%s614 + $0x28] sm:$0xff]
        %v675 = vld [vmem:[%s614 + $0x30] sm:$0xff]
        %v676 = vld [vmem:[%s614 + $0x38] sm:$0xff]
        %v677 = vld [vmem:[%s614 + $0x40] sm:$0xff]
        %v678 = vld [vmem:[%s614 + $0x48] sm:$0xff]
        %v679 = vld [vmem:[%s614 + $0x50] sm:$0xff]
        %v680 = vld [vmem:[%s614 + $0x58] sm:$0xff]
        %v681 = vld [vmem:[%s614 + $0x60] sm:$0xff]
        %v682 = vld [vmem:[%s614 + $0x68] sm:$0xff]
        %v683 = vld [vmem:[%s614 + $0x70] sm:$0xff]
        %v684 = vld [vmem:[%s614 + $0x78] sm:$0xff]
        %685 = vst [vmem:[%s662] sm:$0xff] %v669
        %686 = vst [vmem:[%s662 + $0x8] sm:$0xff] %v670
        %687 = vst [vmem:[%s662 + $0x10] sm:$0xff] %v671
        %688 = vst [vmem:[%s662 + $0x18] sm:$0xff] %v672
        %689 = vst [vmem:[%s662 + $0x20] sm:$0xff] %v673
        %690 = vst [vmem:[%s662 + $0x28] sm:$0xff] %v674
        %691 = vst [vmem:[%s662 + $0x30] sm:$0xff] %v675
        %692 = vst [vmem:[%s662 + $0x38] sm:$0xff] %v676
        %693 = vst [vmem:[%s662 + $0x40] sm:$0xff] %v677
        %694 = vst [vmem:[%s662 + $0x48] sm:$0xff] %v678
        %695 = vst [vmem:[%s662 + $0x50] sm:$0xff] %v679
        %696 = vst [vmem:[%s662 + $0x58] sm:$0xff] %v680
        %697 = vst [vmem:[%s662 + $0x60] sm:$0xff] %v681
        %698 = vst [vmem:[%s662 + $0x68] sm:$0xff] %v682
        %699 = vst [vmem:[%s662 + $0x70] sm:$0xff] %v683
        %700 = vst [vmem:[%s662 + $0x78] sm:$0xff] %v684
      $region80: #{cross_vit_forward.1} parent=75 // pred_fallthru
        _
      %v701 = vld [vmem:[%s662] sm:$0xff]
      %v702 = vld [vmem:[%s662 + $0x8] sm:$0xff]
      %v703 = vld [vmem:[%s662 + $0x10] sm:$0xff]
      %v704 = vld [vmem:[%s662 + $0x18] sm:$0xff]
      %v705 = vld [vmem:[%s662 + $0x20] sm:$0xff]
      %v706 = vld [vmem:[%s662 + $0x28] sm:$0xff]
      %v707 = vld [vmem:[%s662 + $0x30] sm:$0xff]
      %v708 = vld [vmem:[%s662 + $0x38] sm:$0xff]
      %v709 = vld [vmem:[%s662 + $0x40] sm:$0xff]
      %v710 = vld [vmem:[%s662 + $0x48] sm:$0xff]
      %v711 = vld [vmem:[%s662 + $0x50] sm:$0xff]
      %v712 = vld [vmem:[%s662 + $0x58] sm:$0xff]
      %v713 = vld [vmem:[%s662 + $0x60] sm:$0xff]
      %v714 = vld [vmem:[%s662 + $0x68] sm:$0xff]
      %v715 = vld [vmem:[%s662 + $0x70] sm:$0xff]
      %v716 = vld [vmem:[%s662 + $0x78] sm:$0xff]
      %v717 = vlaneseq
      %v718 = vand.u32 %v717, 127
      %vm719 = vcmp.lt.s32.totalorder %v718, 64
      %v720 = vld [vmem:[%s618] sm:$0x1]
      %v721 = vld [vmem:[%s621] sm:$0x1]
      %v722 = vsel %vm719, %v701, 0.0
      %v723 = vsel %vm719, %v702, 0.0
      %v724 = vsel %vm719, %v703, 0.0
      %v725 = vsel %vm719, %v704, 0.0
      %v726 = vsel %vm719, %v705, 0.0
      %v727 = vsel %vm719, %v706, 0.0
      %v728 = vsel %vm719, %v707, 0.0
      %v729 = vsel %vm719, %v708, 0.0
      %v730 = vsel %vm719, %v709, 0.0
      %v731 = vsel %vm719, %v710, 0.0
      %v732 = vsel %vm719, %v711, 0.0
      %v733 = vsel %vm719, %v712, 0.0
      %v734 = vsel %vm719, %v713, 0.0
      %v735 = vsel %vm719, %v714, 0.0
      %v736 = vsel %vm719, %v715, 0.0
      %v737 = vsel %vm719, %v716, 0.0
      %738 = vadd.xlane.f32.xlu0 %v722
      %v739 = vpop.xlane.xlu0 %738
      %740 = vadd.xlane.f32.xlu0 %v723
      %v741 = vpop.xlane.xlu0 %740
      %742 = vadd.xlane.f32.xlu0 %v724
      %v743 = vpop.xlane.xlu0 %742
      %744 = vadd.xlane.f32.xlu0 %v725
      %v745 = vpop.xlane.xlu0 %744
      %746 = vadd.xlane.f32.xlu0 %v726
      %v747 = vpop.xlane.xlu0 %746
      %748 = vadd.xlane.f32.xlu0 %v727
      %v749 = vpop.xlane.xlu0 %748
      %750 = vadd.xlane.f32.xlu0 %v728
      %v751 = vpop.xlane.xlu0 %750
      %752 = vadd.xlane.f32.xlu0 %v729
      %v753 = vpop.xlane.xlu0 %752
      %754 = vadd.xlane.f32.xlu0 %v730
      %v755 = vpop.xlane.xlu0 %754
      %756 = vadd.xlane.f32.xlu0 %v731
      %v757 = vpop.xlane.xlu0 %756
      %758 = vadd.xlane.f32.xlu0 %v732
      %v759 = vpop.xlane.xlu0 %758
      %760 = vadd.xlane.f32.xlu0 %v733
      %v761 = vpop.xlane.xlu0 %760
      %762 = vadd.xlane.f32.xlu0 %v734
      %v763 = vpop.xlane.xlu0 %762
      %764 = vadd.xlane.f32.xlu0 %v735
      %v765 = vpop.xlane.xlu0 %764
      %766 = vadd.xlane.f32.xlu0 %v736
      %v767 = vpop.xlane.xlu0 %766
      %768 = vadd.xlane.f32.xlu0 %v737
      %v769 = vpop.xlane.xlu0 %768
      %v770 = vsel %vm719, 0.0, %v701
      %v771 = vsel %vm719, 0.0, %v702
      %v772 = vsel %vm719, 0.0, %v703
      %v773 = vsel %vm719, 0.0, %v704
      %v774 = vsel %vm719, 0.0, %v705
      %v775 = vsel %vm719, 0.0, %v706
      %v776 = vsel %vm719, 0.0, %v707
      %v777 = vsel %vm719, 0.0, %v708
      %v778 = vsel %vm719, 0.0, %v709
      %v779 = vsel %vm719, 0.0, %v710
      %v780 = vsel %vm719, 0.0, %v711
      %v781 = vsel %vm719, 0.0, %v712
      %v782 = vsel %vm719, 0.0, %v713
      %v783 = vsel %vm719, 0.0, %v714
      %v784 = vsel %vm719, 0.0, %v715
      %v785 = vsel %vm719, 0.0, %v716
      %786 = vadd.xlane.f32.xlu0 %v770
      %v787 = vpop.xlane.xlu0 %786
      %788 = vadd.xlane.f32.xlu0 %v771
      %v789 = vpop.xlane.xlu0 %788
      %790 = vadd.xlane.f32.xlu0 %v772
      %v791 = vpop.xlane.xlu0 %790
      %792 = vadd.xlane.f32.xlu0 %v773
      %v793 = vpop.xlane.xlu0 %792
      %794 = vadd.xlane.f32.xlu0 %v774
      %v795 = vpop.xlane.xlu0 %794
      %796 = vadd.xlane.f32.xlu0 %v775
      %v797 = vpop.xlane.xlu0 %796
      %798 = vadd.xlane.f32.xlu0 %v776
      %v799 = vpop.xlane.xlu0 %798
      %800 = vadd.xlane.f32.xlu0 %v777
      %v801 = vpop.xlane.xlu0 %800
      %802 = vadd.xlane.f32.xlu0 %v778
      %v803 = vpop.xlane.xlu0 %802
      %804 = vadd.xlane.f32.xlu0 %v779
      %v805 = vpop.xlane.xlu0 %804
      %806 = vadd.xlane.f32.xlu0 %v780
      %v807 = vpop.xlane.xlu0 %806
      %808 = vadd.xlane.f32.xlu0 %v781
      %v809 = vpop.xlane.xlu0 %808
      %810 = vadd.xlane.f32.xlu0 %v782
      %v811 = vpop.xlane.xlu0 %810
      %812 = vadd.xlane.f32.xlu0 %v783
      %v813 = vpop.xlane.xlu0 %812
      %814 = vadd.xlane.f32.xlu0 %v784
      %v815 = vpop.xlane.xlu0 %814
      %816 = vadd.xlane.f32.xlu0 %v785
      %v817 = vpop.xlane.xlu0 %816
      %v818 = vsel %vm719, %v739, %v787
      %v819 = vsel %vm719, %v741, %v789
      %v820 = vsel %vm719, %v743, %v791
      %v821 = vsel %vm719, %v745, %v793
      %v822 = vsel %vm719, %v747, %v795
      %v823 = vsel %vm719, %v749, %v797
      %v824 = vsel %vm719, %v751, %v799
      %v825 = vsel %vm719, %v753, %v801
      %v826 = vsel %vm719, %v755, %v803
      %v827 = vsel %vm719, %v757, %v805
      %v828 = vsel %vm719, %v759, %v807
      %v829 = vsel %vm719, %v761, %v809
      %v830 = vsel %vm719, %v763, %v811
      %v831 = vsel %vm719, %v765, %v813
      %v832 = vsel %vm719, %v767, %v815
      %v833 = vsel %vm719, %v769, %v817
      %v834 = vmul.f32 %v818, 0.015625
      %v835 = vmul.f32 %v819, 0.015625
      %v836 = vmul.f32 %v820, 0.015625
      %v837 = vmul.f32 %v821, 0.015625
      %v838 = vmul.f32 %v822, 0.015625
      %v839 = vmul.f32 %v823, 0.015625
      %v840 = vmul.f32 %v824, 0.015625
      %v841 = vmul.f32 %v825, 0.015625
      %v842 = vmul.f32 %v826, 0.015625
      %v843 = vmul.f32 %v827, 0.015625
      %v844 = vmul.f32 %v828, 0.015625
      %v845 = vmul.f32 %v829, 0.015625
      %v846 = vmul.f32 %v830, 0.015625
      %v847 = vmul.f32 %v831, 0.015625
      %v848 = vmul.f32 %v832, 0.015625
      %v849 = vmul.f32 %v833, 0.015625
      %v850 = vsub.f32 %v701, %v834
      %v851 = vsub.f32 %v702, %v835
      %v852 = vsub.f32 %v703, %v836
      %v853 = vsub.f32 %v704, %v837
      %v854 = vsub.f32 %v705, %v838
      %v855 = vsub.f32 %v706, %v839
      %v856 = vsub.f32 %v707, %v840
      %v857 = vsub.f32 %v708, %v841
      %v858 = vsub.f32 %v709, %v842
      %v859 = vsub.f32 %v710, %v843
      %v860 = vsub.f32 %v711, %v844
      %v861 = vsub.f32 %v712, %v845
      %v862 = vsub.f32 %v713, %v846
      %v863 = vsub.f32 %v714, %v847
      %v864 = vsub.f32 %v715, %v848
      %v865 = vsub.f32 %v716, %v849
      %v866 = vmul.f32 %v850, %v850
      %v867 = vmul.f32 %v851, %v851
      %v868 = vmul.f32 %v852, %v852
      %v869 = vmul.f32 %v853, %v853
      %v870 = vmul.f32 %v854, %v854
      %v871 = vmul.f32 %v855, %v855
      %v872 = vmul.f32 %v856, %v856
      %v873 = vmul.f32 %v857, %v857
      %v874 = vmul.f32 %v858, %v858
      %v875 = vmul.f32 %v859, %v859
      %v876 = vmul.f32 %v860, %v860
      %v877 = vmul.f32 %v861, %v861
      %v878 = vmul.f32 %v862, %v862
      %v879 = vmul.f32 %v863, %v863
      %v880 = vmul.f32 %v864, %v864
      %v881 = vmul.f32 %v865, %v865
      %v882 = vsel %vm719, %v866, 0.0
      %v883 = vsel %vm719, %v867, 0.0
      %v884 = vsel %vm719, %v868, 0.0
      %v885 = vsel %vm719, %v869, 0.0
      %v886 = vsel %vm719, %v870, 0.0
      %v887 = vsel %vm719, %v871, 0.0
      %v888 = vsel %vm719, %v872, 0.0
      %v889 = vsel %vm719, %v873, 0.0
      %v890 = vsel %vm719, %v874, 0.0
      %v891 = vsel %vm719, %v875, 0.0
      %v892 = vsel %vm719, %v876, 0.0
      %v893 = vsel %vm719, %v877, 0.0
      %v894 = vsel %vm719, %v878, 0.0
      %v895 = vsel %vm719, %v879, 0.0
      %v896 = vsel %vm719, %v880, 0.0
      %v897 = vsel %vm719, %v881, 0.0
      %898 = vadd.xlane.f32.xlu0 %v882
      %v899 = vpop.xlane.xlu0 %898
      %900 = vadd.xlane.f32.xlu0 %v883
      %v901 = vpop.xlane.xlu0 %900
      %902 = vadd.xlane.f32.xlu0 %v884
      %v903 = vpop.xlane.xlu0 %902
      %904 = vadd.xlane.f32.xlu0 %v885
      %v905 = vpop.xlane.xlu0 %904
      %906 = vadd.xlane.f32.xlu0 %v886
      %v907 = vpop.xlane.xlu0 %906
      %908 = vadd.xlane.f32.xlu0 %v887
      %v909 = vpop.xlane.xlu0 %908
      %910 = vadd.xlane.f32.xlu0 %v888
      %v911 = vpop.xlane.xlu0 %910
      %912 = vadd.xlane.f32.xlu0 %v889
      %v913 = vpop.xlane.xlu0 %912
      %914 = vadd.xlane.f32.xlu0 %v890
      %v915 = vpop.xlane.xlu0 %914
      %916 = vadd.xlane.f32.xlu0 %v891
      %v917 = vpop.xlane.xlu0 %916
      %918 = vadd.xlane.f32.xlu0 %v892
      %v919 = vpop.xlane.xlu0 %918
      %920 = vadd.xlane.f32.xlu0 %v893
      %v921 = vpop.xlane.xlu0 %920
      %922 = vadd.xlane.f32.xlu0 %v894
      %v923 = vpop.xlane.xlu0 %922
      %924 = vadd.xlane.f32.xlu0 %v895
      %v925 = vpop.xlane.xlu0 %924
      %926 = vadd.xlane.f32.xlu0 %v896
      %v927 = vpop.xlane.xlu0 %926
      %928 = vadd.xlane.f32.xlu0 %v897
      %v929 = vpop.xlane.xlu0 %928
      %v930 = vsel %vm719, 0.0, %v866
      %v931 = vsel %vm719, 0.0, %v867
      %v932 = vsel %vm719, 0.0, %v868
      %v933 = vsel %vm719, 0.0, %v869
      %v934 = vsel %vm719, 0.0, %v870
      %v935 = vsel %vm719, 0.0, %v871
      %v936 = vsel %vm719, 0.0, %v872
      %v937 = vsel %vm719, 0.0, %v873
      %v938 = vsel %vm719, 0.0, %v874
      %v939 = vsel %vm719, 0.0, %v875
      %v940 = vsel %vm719, 0.0, %v876
      %v941 = vsel %vm719, 0.0, %v877
      %v942 = vsel %vm719, 0.0, %v878
      %v943 = vsel %vm719, 0.0, %v879
      %v944 = vsel %vm719, 0.0, %v880
      %v945 = vsel %vm719, 0.0, %v881
      %946 = vadd.xlane.f32.xlu0 %v930
      %v947 = vpop.xlane.xlu0 %946
      %948 = vadd.xlane.f32.xlu0 %v931
      %v949 = vpop.xlane.xlu0 %948
      %950 = vadd.xlane.f32.xlu0 %v932
      %v951 = vpop.xlane.xlu0 %950
      %952 = vadd.xlane.f32.xlu0 %v933
      %v953 = vpop.xlane.xlu0 %952
      %954 = vadd.xlane.f32.xlu0 %v934
      %v955 = vpop.xlane.xlu0 %954
      %956 = vadd.xlane.f32.xlu0 %v935
      %v957 = vpop.xlane.xlu0 %956
      %958 = vadd.xlane.f32.xlu0 %v936
      %v959 = vpop.xlane.xlu0 %958
      %960 = vadd.xlane.f32.xlu0 %v937
      %v961 = vpop.xlane.xlu0 %960
      %962 = vadd.xlane.f32.xlu0 %v938
      %v963 = vpop.xlane.xlu0 %962
      %964 = vadd.xlane.f32.xlu0 %v939
      %v965 = vpop.xlane.xlu0 %964
      %966 = vadd.xlane.f32.xlu0 %v940
      %v967 = vpop.xlane.xlu0 %966
      %968 = vadd.xlane.f32.xlu0 %v941
      %v969 = vpop.xlane.xlu0 %968
      %970 = vadd.xlane.f32.xlu0 %v942
      %v971 = vpop.xlane.xlu0 %970
      %972 = vadd.xlane.f32.xlu0 %v943
      %v973 = vpop.xlane.xlu0 %972
      %974 = vadd.xlane.f32.xlu0 %v944
      %v975 = vpop.xlane.xlu0 %974
      %976 = vadd.xlane.f32.xlu0 %v945
      %v977 = vpop.xlane.xlu0 %976
      %v978 = vsel %vm719, %v899, %v947
      %v979 = vsel %vm719, %v901, %v949
      %v980 = vsel %vm719, %v903, %v951
      %v981 = vsel %vm719, %v905, %v953
      %v982 = vsel %vm719, %v907, %v955
      %v983 = vsel %vm719, %v909, %v957
      %v984 = vsel %vm719, %v911, %v959
      %v985 = vsel %vm719, %v913, %v961
      %v986 = vsel %vm719, %v915, %v963
      %v987 = vsel %vm719, %v917, %v965
      %v988 = vsel %vm719, %v919, %v967
      %v989 = vsel %vm719, %v921, %v969
      %v990 = vsel %vm719, %v923, %v971
      %v991 = vsel %vm719, %v925, %v973
      %v992 = vsel %vm719, %v927, %v975
      %v993 = vsel %vm719, %v929, %v977
      %v994 = vmul.f32 %v978, 0.015625
      %v995 = vmul.f32 %v979, 0.015625
      %v996 = vmul.f32 %v980, 0.015625
      %v997 = vmul.f32 %v981, 0.015625
      %v998 = vmul.f32 %v982, 0.015625
      %v999 = vmul.f32 %v983, 0.015625
      %v1000 = vmul.f32 %v984, 0.015625
      %v1001 = vmul.f32 %v985, 0.015625
      %v1002 = vmul.f32 %v986, 0.015625
      %v1003 = vmul.f32 %v987, 0.015625
      %v1004 = vmul.f32 %v988, 0.015625
      %v1005 = vmul.f32 %v989, 0.015625
      %v1006 = vmul.f32 %v990, 0.015625
      %v1007 = vmul.f32 %v991, 0.015625
      %v1008 = vmul.f32 %v992, 0.015625
      %v1009 = vmul.f32 %v993, 0.015625
      %v1010 = vadd.f32 %v994, 1e-05
      %v1011 = vadd.f32 %v995, 1e-05
      %v1012 = vadd.f32 %v996, 1e-05
      %v1013 = vadd.f32 %v997, 1e-05
      %v1014 = vadd.f32 %v998, 1e-05
      %v1015 = vadd.f32 %v999, 1e-05
      %v1016 = vadd.f32 %v1000, 1e-05
      %v1017 = vadd.f32 %v1001, 1e-05
      %v1018 = vadd.f32 %v1002, 1e-05
      %v1019 = vadd.f32 %v1003, 1e-05
      %v1020 = vadd.f32 %v1004, 1e-05
      %v1021 = vadd.f32 %v1005, 1e-05
      %v1022 = vadd.f32 %v1006, 1e-05
      %v1023 = vadd.f32 %v1007, 1e-05
      %v1024 = vadd.f32 %v1008, 1e-05
      %v1025 = vadd.f32 %v1009, 1e-05
      %v1026 = vrsqrt.pop %v1010
      %v1027 = vrsqrt.pop %v1011
      %v1028 = vrsqrt.pop %v1012
      %v1029 = vrsqrt.pop %v1013
      %v1030 = vrsqrt.pop %v1014
      %v1031 = vrsqrt.pop %v1015
      %v1032 = vrsqrt.pop %v1016
      %v1033 = vrsqrt.pop %v1017
      %v1034 = vrsqrt.pop %v1018
      %v1035 = vrsqrt.pop %v1019
      %v1036 = vrsqrt.pop %v1020
      %v1037 = vrsqrt.pop %v1021
      %v1038 = vrsqrt.pop %v1022
      %v1039 = vrsqrt.pop %v1023
      %v1040 = vrsqrt.pop %v1024
      %v1041 = vrsqrt.pop %v1025
      %v1042 = vmul.f32 %v850, %v1026
      %v1043 = vmul.f32 %v851, %v1027
      %v1044 = vmul.f32 %v852, %v1028
      %v1045 = vmul.f32 %v853, %v1029
      %v1046 = vmul.f32 %v854, %v1030
      %v1047 = vmul.f32 %v855, %v1031
      %v1048 = vmul.f32 %v856, %v1032
      %v1049 = vmul.f32 %v857, %v1033
      %v1050 = vmul.f32 %v858, %v1034
      %v1051 = vmul.f32 %v859, %v1035
      %v1052 = vmul.f32 %v860, %v1036
      %v1053 = vmul.f32 %v861, %v1037
      %v1054 = vmul.f32 %v862, %v1038
      %v1055 = vmul.f32 %v863, %v1039
      %v1056 = vmul.f32 %v864, %v1040
      %v1057 = vmul.f32 %v865, %v1041
      %v1059 = vlaneseq
      %v1060 = vshrl.u32 %v1059, 7
      %v1061 = vsub.s32 0, %v1060
      %v1062 = vrot.slane %v720, %v1061
      %v1064 = vmul.f32 %v1042, %v1062
      %v1065 = vmul.f32 %v1043, %v1062
      %v1066 = vmul.f32 %v1044, %v1062
      %v1067 = vmul.f32 %v1045, %v1062
      %v1068 = vmul.f32 %v1046, %v1062
      %v1069 = vmul.f32 %v1047, %v1062
      %v1070 = vmul.f32 %v1048, %v1062
      %v1071 = vmul.f32 %v1049, %v1062
      %v1072 = vmul.f32 %v1050, %v1062
      %v1073 = vmul.f32 %v1051, %v1062
      %v1074 = vmul.f32 %v1052, %v1062
      %v1075 = vmul.f32 %v1053, %v1062
      %v1076 = vmul.f32 %v1054, %v1062
      %v1077 = vmul.f32 %v1055, %v1062
      %v1078 = vmul.f32 %v1056, %v1062
      %v1079 = vmul.f32 %v1057, %v1062
      %v1081 = vlaneseq
      %v1082 = vshrl.u32 %v1081, 7
      %v1083 = vsub.s32 0, %v1082
      %v1084 = vrot.slane %v721, %v1083
      %v1086 = vadd.f32 %v1064, %v1084
      %v1087 = vadd.f32 %v1065, %v1084
      %v1088 = vadd.f32 %v1066, %v1084
      %v1089 = vadd.f32 %v1067, %v1084
      %v1090 = vadd.f32 %v1068, %v1084
      %v1091 = vadd.f32 %v1069, %v1084
      %v1092 = vadd.f32 %v1070, %v1084
      %v1093 = vadd.f32 %v1071, %v1084
      %v1094 = vadd.f32 %v1072, %v1084
      %v1095 = vadd.f32 %v1073, %v1084
      %v1096 = vadd.f32 %v1074, %v1084
      %v1097 = vadd.f32 %v1075, %v1084
      %v1098 = vadd.f32 %v1076, %v1084
      %v1099 = vadd.f32 %v1077, %v1084
      %v1100 = vadd.f32 %v1078, %v1084
      %v1101 = vadd.f32 %v1079, %v1084
      %v1102 = vpack.c.bf16 %v1087, %v1086
      %v1103 = vpack.c.bf16 %v1089, %v1088
      %v1104 = vpack.c.bf16 %v1091, %v1090
      %v1105 = vpack.c.bf16 %v1093, %v1092
      %v1106 = vpack.c.bf16 %v1095, %v1094
      %v1107 = vpack.c.bf16 %v1097, %v1096
      %v1108 = vpack.c.bf16 %v1099, %v1098
      %v1109 = vpack.c.bf16 %v1101, %v1100
      %v1110 = vld [vmem:[%s626] sm:$0xff]
      %v1111 = vld [vmem:[%s626 + $0x8] sm:$0xff]
      %v1112 = vld [vmem:[%s626 + $0x10] sm:$0xff]
      %v1113 = vld [vmem:[%s626 + $0x18] sm:$0xff]
      %v1114 = vld [vmem:[%s626 + $0x20] sm:$0xff]
      %v1115 = vld [vmem:[%s626 + $0x28] sm:$0xff]
      %v1116 = vld [vmem:[%s626 + $0x30] sm:$0xff]
      %v1117 = vld [vmem:[%s626 + $0x38] sm:$0xff]
      %v1118 = vld [vmem:[%s626 + $0x40] sm:$0xff]
      %v1119 = vld [vmem:[%s626 + $0x48] sm:$0xff]
      %v1120 = vld [vmem:[%s626 + $0x50] sm:$0xff]
      %v1121 = vld [vmem:[%s626 + $0x58] sm:$0xff]
      %v1122 = vld [vmem:[%s626 + $0x60] sm:$0xff]
      %v1123 = vld [vmem:[%s626 + $0x68] sm:$0xff]
      %v1124 = vld [vmem:[%s626 + $0x70] sm:$0xff]
      %v1125 = vld [vmem:[%s626 + $0x78] sm:$0xff]
      %v1142 = vunpack.c.l.b16 %v1110
      %v1143 = vunpack.c.h.b16 %v1110
      %v1144 = vunpack.c.l.b16 %v1111
      %v1145 = vunpack.c.h.b16 %v1111
      %v1146 = vunpack.c.l.b16 %v1112
      %v1147 = vunpack.c.h.b16 %v1112
      %v1148 = vunpack.c.l.b16 %v1113
      %v1149 = vunpack.c.h.b16 %v1113
      %v1150 = vunpack.c.l.b16 %v1114
      %v1151 = vunpack.c.h.b16 %v1114
      %v1152 = vunpack.c.l.b16 %v1115
      %v1153 = vunpack.c.h.b16 %v1115
      %v1154 = vunpack.c.l.b16 %v1116
      %v1155 = vunpack.c.h.b16 %v1116
      %v1156 = vunpack.c.l.b16 %v1117
      %v1157 = vunpack.c.h.b16 %v1117
      %v1158 = vunpack.c.l.b16 %v1118
      %v1159 = vunpack.c.h.b16 %v1118
      %v1160 = vunpack.c.l.b16 %v1119
      %v1161 = vunpack.c.h.b16 %v1119
      %v1162 = vunpack.c.l.b16 %v1120
      %v1163 = vunpack.c.h.b16 %v1120
      %v1164 = vunpack.c.l.b16 %v1121
      %v1165 = vunpack.c.h.b16 %v1121
      %v1166 = vunpack.c.l.b16 %v1122
      %v1167 = vunpack.c.h.b16 %v1122
      %v1168 = vunpack.c.l.b16 %v1123
      %v1169 = vunpack.c.h.b16 %v1123
      %v1170 = vunpack.c.l.b16 %v1124
      %v1171 = vunpack.c.h.b16 %v1124
      %v1172 = vunpack.c.l.b16 %v1125
      %v1173 = vunpack.c.h.b16 %v1125
      %v1174 = vpack.c.b16 %v1144, %v1142
      %v1175 = vpack.c.b16 %v1145, %v1143
      %v1176 = vpack.c.b16 %v1148, %v1146
      %v1177 = vpack.c.b16 %v1149, %v1147
      %v1178 = vpack.c.b16 %v1152, %v1150
      %v1179 = vpack.c.b16 %v1153, %v1151
      %v1180 = vpack.c.b16 %v1156, %v1154
      %v1181 = vpack.c.b16 %v1157, %v1155
      %v1182 = vpack.c.b16 %v1160, %v1158
      %v1183 = vpack.c.b16 %v1161, %v1159
      %v1184 = vpack.c.b16 %v1164, %v1162
      %v1185 = vpack.c.b16 %v1165, %v1163
      %v1186 = vpack.c.b16 %v1168, %v1166
      %v1187 = vpack.c.b16 %v1169, %v1167
      %v1188 = vpack.c.b16 %v1172, %v1170
      %v1189 = vpack.c.b16 %v1173, %v1171
      %1206 = vmatprep.subr.bf16.mxu0 %v1175
      %1207 = vmatpush1.bf16.msra.mxu0 %v1174
      %1208 = vmatprep.subr.bf16.mxu0 %v1177
      %1209 = vmatpush1.bf16.msra.mxu0 %v1176
      %1210 = vmatprep.subr.bf16.mxu0 %v1179
      %1211 = vmatpush1.bf16.msra.mxu0 %v1178
      %1212 = vmatprep.subr.bf16.mxu0 %v1181
      %1213 = vmatpush1.bf16.msra.mxu0 %v1180
      %1214 = vmatprep.subr.bf16.mxu0 %v1183
      %1215 = vmatpush1.bf16.msra.mxu0 %v1182
      %1216 = vmatprep.subr.bf16.mxu0 %v1185
      %1217 = vmatpush1.bf16.msra.mxu0 %v1184
      %1218 = vmatprep.subr.bf16.mxu0 %v1187
      %1219 = vmatpush1.bf16.msra.mxu0 %v1186
      %1220 = vmatprep.subr.bf16.mxu0 %v1189
      %1221 = vmatpush1.bf16.msra.mxu0 %v1188
      %1222 = vmatprep.subr.bf16.mxu0 0
      %1223 = vmatpush1.bf16.msra.mxu0 0
      %1224 = vmatprep.subr.bf16.mxu0 0
      %1225 = vmatpush1.bf16.msra.mxu0 0
      %1226 = vmatprep.subr.bf16.mxu0 0
      %1227 = vmatpush1.bf16.msra.mxu0 0
      %1228 = vmatprep.subr.bf16.mxu0 0
      %1229 = vmatpush1.bf16.msra.mxu0 0
      %1230 = vmatprep.subr.bf16.mxu0 0
      %1231 = vmatpush1.bf16.msra.mxu0 0
      %1232 = vmatprep.subr.bf16.mxu0 0
      %1233 = vmatpush1.bf16.msra.mxu0 0
      %1234 = vmatprep.subr.bf16.mxu0 0
      %1235 = vmatpush1.bf16.msra.mxu0 0
      %1236 = vmatprep.subr.bf16.mxu0 0
      %1237 = vmatpush1.bf16.msra.mxu0 0
      %1238 = vmatprep.mubr.bf16.mxu0 0
      %1239 = vmatmul.mubr.bf16.gmra.mrb[0].mxu0 %v1102
      %v1240 = vpop.f32.mrb[0].mxu0
      %v1241 = vadd.f32 0.0, %v1240
      %v1242 = vpop.f32.mrb[0].mxu0
      %v1243 = vadd.f32 0.0, %v1242
      %v1244 = vpop.f32.mrb[0].mxu0
      %v1245 = vadd.f32 0.0, %v1244
      %v1246 = vpop.f32.mrb[0].mxu0
      %v1247 = vadd.f32 0.0, %v1246
      %1248 = vmatprep.mubr.bf16.mxu0 0
      %1249 = vmatmul.mubr.bf16.gmra.mrb[0].mxu0 %v1103
      %v1250 = vpop.f32.mrb[0].mxu0
      %v1251 = vadd.f32 0.0, %v1250
      %v1252 = vpop.f32.mrb[0].mxu0
      %v1253 = vadd.f32 0.0, %v1252
      %v1254 = vpop.f32.mrb[0].mxu0
      %v1255 = vadd.f32 0.0, %v1254
      %v1256 = vpop.f32.mrb[0].mxu0
      %v1257 = vadd.f32 0.0, %v1256
      %1258 = vmatprep.mubr.bf16.mxu0 0
      %1259 = vmatmul.mubr.bf16.gmra.mrb[0].mxu0 %v1104
      %v1260 = vpop.f32.mrb[0].mxu0
      %v1261 = vadd.f32 0.0, %v1260
      %v1262 = vpop.f32.mrb[0].mxu0
      %v1263 = vadd.f32 0.0, %v1262
      %v1264 = vpop.f32.mrb[0].mxu0
      %v1265 = vadd.f32 0.0, %v1264
      %v1266 = vpop.f32.mrb[0].mxu0
      %v1267 = vadd.f32 0.0, %v1266
      %1268 = vmatprep.mubr.bf16.mxu0 0
      %1269 = vmatmul.mubr.bf16.gmra.mrb[0].mxu0 %v1105
      %v1270 = vpop.f32.mrb[0].mxu0
      %v1271 = vadd.f32 0.0, %v1270
      %v1272 = vpop.f32.mrb[0].mxu0
      %v1273 = vadd.f32 0.0, %v1272
      %v1274 = vpop.f32.mrb[0].mxu0
      %v1275 = vadd.f32 0.0, %v1274
      %v1276 = vpop.f32.mrb[0].mxu0
      %v1277 = vadd.f32 0.0, %v1276
      %1278 = vmatprep.mubr.bf16.mxu0 0
      %1279 = vmatmul.mubr.bf16.gmra.mrb[0].mxu0 %v1106
      %v1280 = vpop.f32.mrb[0].mxu0
      %v1281 = vadd.f32 0.0, %v1280
      %v1282 = vpop.f32.mrb[0].mxu0
      %v1283 = vadd.f32 0.0, %v1282
      %v1284 = vpop.f32.mrb[0].mxu0
      %v1285 = vadd.f32 0.0, %v1284
      %v1286 = vpop.f32.mrb[0].mxu0
      %v1287 = vadd.f32 0.0, %v1286
      %1288 = vmatprep.mubr.bf16.mxu0 0
      %1289 = vmatmul.mubr.bf16.gmra.mrb[0].mxu0 %v1107
      %v1290 = vpop.f32.mrb[0].mxu0
      %v1291 = vadd.f32 0.0, %v1290
      %v1292 = vpop.f32.mrb[0].mxu0
      %v1293 = vadd.f32 0.0, %v1292
      %v1294 = vpop.f32.mrb[0].mxu0
      %v1295 = vadd.f32 0.0, %v1294
      %v1296 = vpop.f32.mrb[0].mxu0
      %v1297 = vadd.f32 0.0, %v1296
      %1298 = vmatprep.mubr.bf16.mxu0 0
      %1299 = vmatmul.mubr.bf16.gmra.mrb[0].mxu0 %v1108
      %v1300 = vpop.f32.mrb[0].mxu0
      %v1301 = vadd.f32 0.0, %v1300
      %v1302 = vpop.f32.mrb[0].mxu0
      %v1303 = vadd.f32 0.0, %v1302
      %v1304 = vpop.f32.mrb[0].mxu0
      %v1305 = vadd.f32 0.0, %v1304
      %v1306 = vpop.f32.mrb[0].mxu0
      %v1307 = vadd.f32 0.0, %v1306
      %1308 = vmatprep.mubr.bf16.mxu0 0
      %1309 = vmatmul.mubr.bf16.gmra.mrb[0].mxu0 %v1109
      %v1310 = vpop.f32.mrb[0].mxu0
      %v1311 = vadd.f32 0.0, %v1310
      %v1312 = vpop.f32.mrb[0].mxu0
      %v1313 = vadd.f32 0.0, %v1312
      %v1314 = vpop.f32.mrb[0].mxu0
      %v1315 = vadd.f32 0.0, %v1314
      %v1316 = vpop.f32.mrb[0].mxu0
      %v1317 = vadd.f32 0.0, %v1316
      %1318 = vdwg.mxu0
      %v1319 = vpack.c.bf16 %v1245, %v1241
      %v1320 = vpack.c.bf16 %v1247, %v1243
      %v1321 = vpack.c.bf16 %v1255, %v1251
      %v1322 = vpack.c.bf16 %v1257, %v1253
      %v1323 = vpack.c.bf16 %v1265, %v1261
      %v1324 = vpack.c.bf16 %v1267, %v1263
      %v1325 = vpack.c.bf16 %v1275, %v1271
      %v1326 = vpack.c.bf16 %v1277, %v1273
      %v1327 = vpack.c.bf16 %v1285, %v1281
      %v1328 = vpack.c.bf16 %v1287, %v1283
      %v1329 = vpack.c.bf16 %v1295, %v1291
      %v1330 = vpack.c.bf16 %v1297, %v1293
      %v1331 = vpack.c.bf16 %v1305, %v1301
      %v1332 = vpack.c.bf16 %v1307, %v1303
      %v1333 = vpack.c.bf16 %v1315, %v1311
      %v1334 = vpack.c.bf16 %v1317, %v1313
      %1343 = vrot.lane.b32.xlu0 %v1319, 112
      %v1344 = vpop.permute.xlu0 %1343
      %1345 = vrot.lane.b32.xlu0 %v1321, 112
      %v1346 = vpop.permute.xlu0 %1345
      %1347 = vrot.lane.b32.xlu0 %v1323, 112
      %v1348 = vpop.permute.xlu0 %1347
      %1349 = vrot.lane.b32.xlu0 %v1325, 112
      %v1350 = vpop.permute.xlu0 %1349
      %1351 = vrot.lane.b32.xlu0 %v1327, 112
      %v1352 = vpop.permute.xlu0 %1351
      %1353 = vrot.lane.b32.xlu0 %v1329, 112
      %v1354 = vpop.permute.xlu0 %1353
      %1355 = vrot.lane.b32.xlu0 %v1331, 112
      %v1356 = vpop.permute.xlu0 %1355
      %1357 = vrot.lane.b32.xlu0 %v1333, 112
      %v1358 = vpop.permute.xlu0 %1357
      %1359 = vrot.lane.b32.xlu0 %v1319, 32
      %v1360 = vpop.permute.xlu0 %1359
      %1361 = vrot.lane.b32.xlu0 %v1321, 32
      %v1362 = vpop.permute.xlu0 %1361
      %1363 = vrot.lane.b32.xlu0 %v1323, 32
      %v1364 = vpop.permute.xlu0 %1363
      %1365 = vrot.lane.b32.xlu0 %v1325, 32
      %v1366 = vpop.permute.xlu0 %1365
      %1367 = vrot.lane.b32.xlu0 %v1327, 32
      %v1368 = vpop.permute.xlu0 %1367
      %1369 = vrot.lane.b32.xlu0 %v1329, 32
      %v1370 = vpop.permute.xlu0 %1369
      %1371 = vrot.lane.b32.xlu0 %v1331, 32
      %v1372 = vpop.permute.xlu0 %1371
      %1373 = vrot.lane.b32.xlu0 %v1333, 32
      %v1374 = vpop.permute.xlu0 %1373
      %1375 = vrot.lane.b32.xlu0 %v1319, 16
      %v1376 = vpop.permute.xlu0 %1375
      %1377 = vrot.lane.b32.xlu0 %v1321, 16
      %v1378 = vpop.permute.xlu0 %1377
      %1379 = vrot.lane.b32.xlu0 %v1323, 16
      %v1380 = vpop.permute.xlu0 %1379
      %1381 = vrot.lane.b32.xlu0 %v1325, 16
      %v1382 = vpop.permute.xlu0 %1381
      %1383 = vrot.lane.b32.xlu0 %v1327, 16
      %v1384 = vpop.permute.xlu0 %1383
      %1385 = vrot.lane.b32.xlu0 %v1329, 16
      %v1386 = vpop.permute.xlu0 %1385
      %1387 = vrot.lane.b32.xlu0 %v1331, 16
      %v1388 = vpop.permute.xlu0 %1387
      %1389 = vrot.lane.b32.xlu0 %v1333, 16
      %v1390 = vpop.permute.xlu0 %1389
      %1399 = vrot.lane.b32.xlu0 %v1320, 112
      %v1400 = vpop.permute.xlu0 %1399
      %1401 = vrot.lane.b32.xlu0 %v1322, 112
      %v1402 = vpop.permute.xlu0 %1401
      %1403 = vrot.lane.b32.xlu0 %v1324, 112
      %v1404 = vpop.permute.xlu0 %1403
      %1405 = vrot.lane.b32.xlu0 %v1326, 112
      %v1406 = vpop.permute.xlu0 %1405
      %1407 = vrot.lane.b32.xlu0 %v1328, 112
      %v1408 = vpop.permute.xlu0 %1407
      %1409 = vrot.lane.b32.xlu0 %v1330, 112
      %v1410 = vpop.permute.xlu0 %1409
      %1411 = vrot.lane.b32.xlu0 %v1332, 112
      %v1412 = vpop.permute.xlu0 %1411
      %1413 = vrot.lane.b32.xlu0 %v1334, 112
      %v1414 = vpop.permute.xlu0 %1413
      %1415 = vrot.lane.b32.xlu0 %v1319, 96
      %v1416 = vpop.permute.xlu0 %1415
      %1417 = vrot.lane.b32.xlu0 %v1321, 96
      %v1418 = vpop.permute.xlu0 %1417
      %1419 = vrot.lane.b32.xlu0 %v1323, 96
      %v1420 = vpop.permute.xlu0 %1419
      %1421 = vrot.lane.b32.xlu0 %v1325, 96
      %v1422 = vpop.permute.xlu0 %1421
      %1423 = vrot.lane.b32.xlu0 %v1327, 96
      %v1424 = vpop.permute.xlu0 %1423
      %1425 = vrot.lane.b32.xlu0 %v1329, 96
      %v1426 = vpop.permute.xlu0 %1425
      %1427 = vrot.lane.b32.xlu0 %v1331, 96
      %v1428 = vpop.permute.xlu0 %1427
      %1429 = vrot.lane.b32.xlu0 %v1333, 96
      %v1430 = vpop.permute.xlu0 %1429
      %1431 = vrot.lane.b32.xlu0 %v1319, 80
      %v1432 = vpop.permute.xlu0 %1431
      %1433 = vrot.lane.b32.xlu0 %v1321, 80
      %v1434 = vpop.permute.xlu0 %1433
      %1435 = vrot.lane.b32.xlu0 %v1323, 80
      %v1436 = vpop.permute.xlu0 %1435
      %1437 = vrot.lane.b32.xlu0 %v1325, 80
      %v1438 = vpop.permute.xlu0 %1437
      %1439 = vrot.lane.b32.xlu0 %v1327, 80
      %v1440 = vpop.permute.xlu0 %1439
      %1441 = vrot.lane.b32.xlu0 %v1329, 80
      %v1442 = vpop.permute.xlu0 %1441
      %1443 = vrot.lane.b32.xlu0 %v1331, 80
      %v1444 = vpop.permute.xlu0 %1443
      %1445 = vrot.lane.b32.xlu0 %v1333, 80
      %v1446 = vpop.permute.xlu0 %1445
      %vm1447 = vcmask 130048
      %v1449 = vsel %vm1447, %v1319, 0
      %v1452 = vsel %vm1447, %v1321, 0
      %v1455 = vsel %vm1447, %v1323, 0
      %v1458 = vsel %vm1447, %v1325, 0
      %v1461 = vsel %vm1447, %v1320, 0
      %v1464 = vsel %vm1447, %v1322, 0
      %v1467 = vsel %vm1447, %v1324, 0
      %v1470 = vsel %vm1447, %v1326, 0
      %1472 = vmatprep.subr.bf16.mxu0 0
      %1473 = vmatpush1.bf16.xpose.msra.mxu0 %v1461
      %1474 = vmatprep.subr.bf16.mxu0 0
      %1475 = vmatpush1.bf16.xpose.msra.mxu0 %v1464
      %1476 = vmatprep.subr.bf16.mxu0 0
      %1477 = vmatpush1.bf16.xpose.msra.mxu0 %v1467
      %1478 = vmatprep.subr.bf16.mxu0 0
      %1479 = vmatpush1.bf16.xpose.msra.mxu0 %v1470
      %1480 = vmatprep.subr.bf16.mxu0 0
      %1481 = vmatpush1.bf16.xpose.msra.mxu0 0
      %1482 = vmatprep.subr.bf16.mxu0 0
      %1483 = vmatpush1.bf16.xpose.msra.mxu0 0
      %1484 = vmatprep.subr.bf16.mxu0 0
      %1485 = vmatpush1.bf16.xpose.msra.mxu0 0
      %1486 = vmatprep.subr.bf16.mxu0 0
      %1487 = vmatpush1.bf16.xpose.msra.mxu0 0
      %1488 = vmatprep.subr.bf16.mxu0 0
      %1489 = vmatpush1.bf16.xpose.msra.mxu0 0
      %1490 = vmatprep.subr.bf16.mxu0 0
      %1491 = vmatpush1.bf16.xpose.msra.mxu0 0
      %1492 = vmatprep.subr.bf16.mxu0 0
      %1493 = vmatpush1.bf16.xpose.msra.mxu0 0
      %1494 = vmatprep.subr.bf16.mxu0 0
      %1495 = vmatpush1.bf16.xpose.msra.mxu0 0
      %1496 = vmatprep.subr.bf16.mxu0 0
      %1497 = vmatpush1.bf16.xpose.msra.mxu0 0
      %1498 = vmatprep.subr.bf16.mxu0 0
      %1499 = vmatpush1.bf16.xpose.msra.mxu0 0
      %1500 = vmatprep.subr.bf16.mxu0 0
      %1501 = vmatpush1.bf16.xpose.msra.mxu0 0
      %1502 = vmatprep.subr.bf16.mxu0 0
      %1503 = vmatpush1.bf16.xpose.msra.mxu0 0
      %1504 = vmatprep.mubr.bf16.mxu0 0
      %1505 = vmatmul.mubr.bf16.gmra.mrb[0].mxu0 %v1449
      %v1506 = vpop.f32.mrb[0].mxu0
      %v1507 = vadd.f32 0.0, %v1506
      %v1508 = vpop.f32.mrb[0].mxu0
      %v1509 = vpop.f32.mrb[0].mxu0
      %v1510 = vadd.f32 0.0, %v1509
      %v1511 = vpop.f32.mrb[0].mxu0
      %1512 = vmatprep.mubr.bf16.mxu0 0
      %1513 = vmatmul.mubr.bf16.gmra.mrb[0].mxu0 %v1452
      %v1514 = vpop.f32.mrb[0].mxu0
      %v1515 = vadd.f32 0.0, %v1514
      %v1516 = vpop.f32.mrb[0].mxu0
      %v1517 = vpop.f32.mrb[0].mxu0
      %v1518 = vadd.f32 0.0, %v1517
      %v1519 = vpop.f32.mrb[0].mxu0
      %1520 = vmatprep.mubr.bf16.mxu0 0
      %1521 = vmatmul.mubr.bf16.gmra.mrb[0].mxu0 %v1455
      %v1522 = vpop.f32.mrb[0].mxu0
      %v1523 = vadd.f32 0.0, %v1522
      %v1524 = vpop.f32.mrb[0].mxu0
      %v1525 = vpop.f32.mrb[0].mxu0
      %v1526 = vadd.f32 0.0, %v1525
      %v1527 = vpop.f32.mrb[0].mxu0
      %1528 = vmatprep.mubr.bf16.mxu0 0
      %1529 = vmatmul.mubr.bf16.gmra.mrb[0].mxu0 %v1458
      %v1530 = vpop.f32.mrb[0].mxu0
      %v1531 = vadd.f32 0.0, %v1530
      %v1532 = vpop.f32.mrb[0].mxu0
      %v1533 = vpop.f32.mrb[0].mxu0
      %v1534 = vadd.f32 0.0, %v1533
      %v1535 = vpop.f32.mrb[0].mxu0
      %1536 = vdwg.mxu0
      %v1538 = vsel %vm1447, %v1327, 0
      %v1541 = vsel %vm1447, %v1329, 0
      %v1544 = vsel %vm1447, %v1331, 0
      %v1547 = vsel %vm1447, %v1333, 0
      %v1550 = vsel %vm1447, %v1328, 0
      %v1553 = vsel %vm1447, %v1330, 0
      %v1556 = vsel %vm1447, %v1332, 0
      %v1559 = vsel %vm1447, %v1334, 0
      %1561 = vmatprep.subr.bf16.mxu0 0
      %1562 = vmatpush1.bf16.xpose.msra.mxu0 %v1550
      %1563 = vmatprep.subr.bf16.mxu0 0
      %1564 = vmatpush1.bf16.xpose.msra.mxu0 %v1553
      %1565 = vmatprep.subr.bf16.mxu0 0
      %1566 = vmatpush1.bf16.xpose.msra.mxu0 %v1556
      %1567 = vmatprep.subr.bf16.mxu0 0
      %1568 = vmatpush1.bf16.xpose.msra.mxu0 %v1559
      %1569 = vmatprep.subr.bf16.mxu0 0
      %1570 = vmatpush1.bf16.xpose.msra.mxu0 0
      %1571 = vmatprep.subr.bf16.mxu0 0
      %1572 = vmatpush1.bf16.xpose.msra.mxu0 0
      %1573 = vmatprep.subr.bf16.mxu0 0
      %1574 = vmatpush1.bf16.xpose.msra.mxu0 0
      %1575 = vmatprep.subr.bf16.mxu0 0
      %1576 = vmatpush1.bf16.xpose.msra.mxu0 0
      %1577 = vmatprep.subr.bf16.mxu0 0
      %1578 = vmatpush1.bf16.xpose.msra.mxu0 0
      %1579 = vmatprep.subr.bf16.mxu0 0
      %1580 = vmatpush1.bf16.xpose.msra.mxu0 0
      %1581 = vmatprep.subr.bf16.mxu0 0
      %1582 = vmatpush1.bf16.xpose.msra.mxu0 0
      %1583 = vmatprep.subr.bf16.mxu0 0
      %1584 = vmatpush1.bf16.xpose.msra.mxu0 0
      %1585 = vmatprep.subr.bf16.mxu0 0
      %1586 = vmatpush1.bf16.xpose.msra.mxu0 0
      %1587 = vmatprep.subr.bf16.mxu0 0
      %1588 = vmatpush1.bf16.xpose.msra.mxu0 0
      %1589 = vmatprep.subr.bf16.mxu0 0
      %1590 = vmatpush1.bf16.xpose.msra.mxu0 0
      %1591 = vmatprep.subr.bf16.mxu0 0
      %1592 = vmatpush1.bf16.xpose.msra.mxu0 0
      %1593 = vmatprep.mubr.bf16.mxu0 0
      %1594 = vmatmul.mubr.bf16.gmra.mrb[0].mxu0 %v1538
      %v1595 = vpop.f32.mrb[0].mxu0
      %v1596 = vadd.f32 0.0, %v1595
      %v1597 = vpop.f32.mrb[0].mxu0
      %v1598 = vpop.f32.mrb[0].mxu0
      %v1599 = vadd.f32 0.0, %v1598
      %v1600 = vpop.f32.mrb[0].mxu0
      %1601 = vmatprep.mubr.bf16.mxu0 0
      %1602 = vmatmul.mubr.bf16.gmra.mrb[0].mxu0 %v1541
      %v1603 = vpop.f32.mrb[0].mxu0
      %v1604 = vadd.f32 0.0, %v1603
      %v1605 = vpop.f32.mrb[0].mxu0
      %v1606 = vpop.f32.mrb[0].mxu0
      %v1607 = vadd.f32 0.0, %v1606
      %v1608 = vpop.f32.mrb[0].mxu0
      %1609 = vmatprep.mubr.bf16.mxu0 0
      %1610 = vmatmul.mubr.bf16.gmra.mrb[0].mxu0 %v1544
      %v1611 = vpop.f32.mrb[0].mxu0
      %v1612 = vadd.f32 0.0, %v1611
      %v1613 = vpop.f32.mrb[0].mxu0
      %v1614 = vpop.f32.mrb[0].mxu0
      %v1615 = vadd.f32 0.0, %v1614
      %v1616 = vpop.f32.mrb[0].mxu0
      %1617 = vmatprep.mubr.bf16.mxu0 0
      %1618 = vmatmul.mubr.bf16.gmra.mrb[0].mxu0 %v1547
      %v1619 = vpop.f32.mrb[0].mxu0
      %v1620 = vadd.f32 0.0, %v1619
      %v1621 = vpop.f32.mrb[0].mxu0
      %v1622 = vpop.f32.mrb[0].mxu0
      %v1623 = vadd.f32 0.0, %v1622
      %v1624 = vpop.f32.mrb[0].mxu0
      %1625 = vdwg.mxu0
      %v1627 = vsel %vm1447, %v1344, 0
      %v1630 = vsel %vm1447, %v1346, 0
      %v1633 = vsel %vm1447, %v1348, 0
      %v1636 = vsel %vm1447, %v1350, 0
      %v1639 = vsel %vm1447, %v1400, 0
      %v1642 = vsel %vm1447, %v1402, 0
      %v1645 = vsel %vm1447, %v1404, 0
      %v1648 = vsel %vm1447, %v1406, 0
      %1650 = vmatprep.subr.bf16.mxu0 0
      %1651 = vmatpush1.bf16.xpose.msra.mxu0 %v1639
      %1652 = vmatprep.subr.bf16.mxu0 0
      %1653 = vmatpush1.bf16.xpose.msra.mxu0 %v1642
      %1654 = vmatprep.subr.bf16.mxu0 0
      %1655 = vmatpush1.bf16.xpose.msra.mxu0 %v1645
      %1656 = vmatprep.subr.bf16.mxu0 0
      %1657 = vmatpush1.bf16.xpose.msra.mxu0 %v1648
      %1658 = vmatprep.subr.bf16.mxu0 0
      %1659 = vmatpush1.bf16.xpose.msra.mxu0 0
      %1660 = vmatprep.subr.bf16.mxu0 0
      %1661 = vmatpush1.bf16.xpose.msra.mxu0 0
      %1662 = vmatprep.subr.bf16.mxu0 0
      %1663 = vmatpush1.bf16.xpose.msra.mxu0 0
      %1664 = vmatprep.subr.bf16.mxu0 0
      %1665 = vmatpush1.bf16.xpose.msra.mxu0 0
      %1666 = vmatprep.subr.bf16.mxu0 0
      %1667 = vmatpush1.bf16.xpose.msra.mxu0 0
      %1668 = vmatprep.subr.bf16.mxu0 0
      %1669 = vmatpush1.bf16.xpose.msra.mxu0 0
      %1670 = vmatprep.subr.bf16.mxu0 0
      %1671 = vmatpush1.bf16.xpose.msra.mxu0 0
      %1672 = vmatprep.subr.bf16.mxu0 0
      %1673 = vmatpush1.bf16.xpose.msra.mxu0 0
      %1674 = vmatprep.subr.bf16.mxu0 0
      %1675 = vmatpush1.bf16.xpose.msra.mxu0 0
      %1676 = vmatprep.subr.bf16.mxu0 0
      %1677 = vmatpush1.bf16.xpose.msra.mxu0 0
      %1678 = vmatprep.subr.bf16.mxu0 0
      %1679 = vmatpush1.bf16.xpose.msra.mxu0 0
      %1680 = vmatprep.subr.bf16.mxu0 0
      %1681 = vmatpush1.bf16.xpose.msra.mxu0 0
      %1682 = vmatprep.mubr.bf16.mxu0 0
      %1683 = vmatmul.mubr.bf16.gmra.mrb[0].mxu0 %v1627
      %v1684 = vpop.f32.mrb[0].mxu0
      %v1685 = vadd.f32 0.0, %v1684
      %v1686 = vpop.f32.mrb[0].mxu0
      %v1687 = vpop.f32.mrb[0].mxu0
      %v1688 = vadd.f32 0.0, %v1687
      %v1689 = vpop.f32.mrb[0].mxu0
      %1690 = vmatprep.mubr.bf16.mxu0 0
      %1691 = vmatmul.mubr.bf16.gmra.mrb[0].mxu0 %v1630
      %v1692 = vpop.f32.mrb[0].mxu0
      %v1693 = vadd.f32 0.0, %v1692
      %v1694 = vpop.f32.mrb[0].mxu0
      %v1695 = vpop.f32.mrb[0].mxu0
      %v1696 = vadd.f32 0.0, %v1695
      %v1697 = vpop.f32.mrb[0].mxu0
      %1698 = vmatprep.mubr.bf16.mxu0 0
      %1699 = vmatmul.mubr.bf16.gmra.mrb[0].mxu0 %v1633
      %v1700 = vpop.f32.mrb[0].mxu0
      %v1701 = vadd.f32 0.0, %v1700
      %v1702 = vpop.f32.mrb[0].mxu0
      %v1703 = vpop.f32.mrb[0].mxu0
      %v1704 = vadd.f32 0.0, %v1703
      %v1705 = vpop.f32.mrb[0].mxu0
      %1706 = vmatprep.mubr.bf16.mxu0 0
      %1707 = vmatmul.mubr.bf16.gmra.mrb[0].mxu0 %v1636
      %v1708 = vpop.f32.mrb[0].mxu0
      %v1709 = vadd.f32 0.0, %v1708
      %v1710 = vpop.f32.mrb[0].mxu0
      %v1711 = vpop.f32.mrb[0].mxu0
      %v1712 = vadd.f32 0.0, %v1711
      %v1713 = vpop.f32.mrb[0].mxu0
      %1714 = vdwg.mxu0
      %v1716 = vsel %vm1447, %v1352, 0
      %v1719 = vsel %vm1447, %v1354, 0
      %v1722 = vsel %vm1447, %v1356, 0
      %v1725 = vsel %vm1447, %v1358, 0
      %v1728 = vsel %vm1447, %v1408, 0
      %v1731 = vsel %vm1447, %v1410, 0
      %v1734 = vsel %vm1447, %v1412, 0
      %v1737 = vsel %vm1447, %v1414, 0
      %1739 = vmatprep.subr.bf16.mxu0 0
      %1740 = vmatpush1.bf16.xpose.msra.mxu0 %v1728
      %1741 = vmatprep.subr.bf16.mxu0 0
      %1742 = vmatpush1.bf16.xpose.msra.mxu0 %v1731
      %1743 = vmatprep.subr.bf16.mxu0 0
      %1744 = vmatpush1.bf16.xpose.msra.mxu0 %v1734
      %1745 = vmatprep.subr.bf16.mxu0 0
      %1746 = vmatpush1.bf16.xpose.msra.mxu0 %v1737
      %1747 = vmatprep.subr.bf16.mxu0 0
      %1748 = vmatpush1.bf16.xpose.msra.mxu0 0
      %1749 = vmatprep.subr.bf16.mxu0 0
      %1750 = vmatpush1.bf16.xpose.msra.mxu0 0
      %1751 = vmatprep.subr.bf16.mxu0 0
      %1752 = vmatpush1.bf16.xpose.msra.mxu0 0
      %1753 = vmatprep.subr.bf16.mxu0 0
      %1754 = vmatpush1.bf16.xpose.msra.mxu0 0
      %1755 = vmatprep.subr.bf16.mxu0 0
      %1756 = vmatpush1.bf16.xpose.msra.mxu0 0
      %1757 = vmatprep.subr.bf16.mxu0 0
      %1758 = vmatpush1.bf16.xpose.msra.mxu0 0
      %1759 = vmatprep.subr.bf16.mxu0 0
      %1760 = vmatpush1.bf16.xpose.msra.mxu0 0
      %1761 = vmatprep.subr.bf16.mxu0 0
      %1762 = vmatpush1.bf16.xpose.msra.mxu0 0
      %1763 = vmatprep.subr.bf16.mxu0 0
      %1764 = vmatpush1.bf16.xpose.msra.mxu0 0
      %1765 = vmatprep.subr.bf16.mxu0 0
      %1766 = vmatpush1.bf16.xpose.msra.mxu0 0
      %1767 = vmatprep.subr.bf16.mxu0 0
      %1768 = vmatpush1.bf16.xpose.msra.mxu0 0
      %1769 = vmatprep.subr.bf16.mxu0 0
      %1770 = vmatpush1.bf16.xpose.msra.mxu0 0
      %1771 = vmatprep.mubr.bf16.mxu0 0
      %1772 = vmatmul.mubr.bf16.gmra.mrb[0].mxu0 %v1716
      %v1773 = vpop.f32.mrb[0].mxu0
      %v1774 = vadd.f32 0.0, %v1773
      %v1775 = vpop.f32.mrb[0].mxu0
      %v1776 = vpop.f32.mrb[0].mxu0
      %v1777 = vadd.f32 0.0, %v1776
      %v1778 = vpop.f32.mrb[0].mxu0
      %1779 = vmatprep.mubr.bf16.mxu0 0
      %1780 = vmatmul.mubr.bf16.gmra.mrb[0].mxu0 %v1719
      %v1781 = vpop.f32.mrb[0].mxu0
      %v1782 = vadd.f32 0.0, %v1781
      %v1783 = vpop.f32.mrb[0].mxu0
      %v1784 = vpop.f32.mrb[0].mxu0
      %v1785 = vadd.f32 0.0, %v1784
      %v1786 = vpop.f32.mrb[0].mxu0
      %1787 = vmatprep.mubr.bf16.mxu0 0
      %1788 = vmatmul.mubr.bf16.gmra.mrb[0].mxu0 %v1722
      %v1789 = vpop.f32.mrb[0].mxu0
      %v1790 = vadd.f32 0.0, %v1789
      %v1791 = vpop.f32.mrb[0].mxu0
      %v1792 = vpop.f32.mrb[0].mxu0
      %v1793 = vadd.f32 0.0, %v1792
      %v1794 = vpop.f32.mrb[0].mxu0
      %1795 = vmatprep.mubr.bf16.mxu0 0
      %1796 = vmatmul.mubr.bf16.gmra.mrb[0].mxu0 %v1725
      %v1797 = vpop.f32.mrb[0].mxu0
      %v1798 = vadd.f32 0.0, %v1797
      %v1799 = vpop.f32.mrb[0].mxu0
      %v1800 = vpop.f32.mrb[0].mxu0
      %v1801 = vadd.f32 0.0, %v1800
      %v1802 = vpop.f32.mrb[0].mxu0
      %1803 = vdwg.mxu0
      %v1805 = vsel %vm1447, %v1360, 0
      %v1808 = vsel %vm1447, %v1362, 0
      %v1811 = vsel %vm1447, %v1364, 0
      %v1814 = vsel %vm1447, %v1366, 0
      %v1817 = vsel %vm1447, %v1416, 0
      %v1820 = vsel %vm1447, %v1418, 0
      %v1823 = vsel %vm1447, %v1420, 0
      %v1826 = vsel %vm1447, %v1422, 0
      %1828 = vmatprep.subr.bf16.mxu0 0
      %1829 = vmatpush1.bf16.xpose.msra.mxu0 %v1817
      %1830 = vmatprep.subr.bf16.mxu0 0
      %1831 = vmatpush1.bf16.xpose.msra.mxu0 %v1820
      %1832 = vmatprep.subr.bf16.mxu0 0
      %1833 = vmatpush1.bf16.xpose.msra.mxu0 %v1823
      %1834 = vmatprep.subr.bf16.mxu0 0
      %1835 = vmatpush1.bf16.xpose.msra.mxu0 %v1826
      %1836 = vmatprep.subr.bf16.mxu0 0
      %1837 = vmatpush1.bf16.xpose.msra.mxu0 0
      %1838 = vmatprep.subr.bf16.mxu0 0
      %1839 = vmatpush1.bf16.xpose.msra.mxu0 0
      %1840 = vmatprep.subr.bf16.mxu0 0
      %1841 = vmatpush1.bf16.xpose.msra.mxu0 0
      %1842 = vmatprep.subr.bf16.mxu0 0
      %1843 = vmatpush1.bf16.xpose.msra.mxu0 0
      %1844 = vmatprep.subr.bf16.mxu0 0
      %1845 = vmatpush1.bf16.xpose.msra.mxu0 0
      %1846 = vmatprep.subr.bf16.mxu0 0
      %1847 = vmatpush1.bf16.xpose.msra.mxu0 0
      %1848 = vmatprep.subr.bf16.mxu0 0
      %1849 = vmatpush1.bf16.xpose.msra.mxu0 0
      %1850 = vmatprep.subr.bf16.mxu0 0
      %1851 = vmatpush1.bf16.xpose.msra.mxu0 0
      %1852 = vmatprep.subr.bf16.mxu0 0
      %1853 = vmatpush1.bf16.xpose.msra.mxu0 0
      %1854 = vmatprep.subr.bf16.mxu0 0
      %1855 = vmatpush1.bf16.xpose.msra.mxu0 0
      %1856 = vmatprep.subr.bf16.mxu0 0
      %1857 = vmatpush1.bf16.xpose.msra.mxu0 0
      %1858 = vmatprep.subr.bf16.mxu0 0
      %1859 = vmatpush1.bf16.xpose.msra.mxu0 0
      %1860 = vmatprep.mubr.bf16.mxu0 0
      %1861 = vmatmul.mubr.bf16.gmra.mrb[0].mxu0 %v1805
      %v1862 = vpop.f32.mrb[0].mxu0
      %v1863 = vadd.f32 0.0, %v1862
      %v1864 = vpop.f32.mrb[0].mxu0
      %v1865 = vpop.f32.mrb[0].mxu0
      %v1866 = vadd.f32 0.0, %v1865
      %v1867 = vpop.f32.mrb[0].mxu0
      %1868 = vmatprep.mubr.bf16.mxu0 0
      %1869 = vmatmul.mubr.bf16.gmra.mrb[0].mxu0 %v1808
      %v1870 = vpop.f32.mrb[0].mxu0
      %v1871 = vadd.f32 0.0, %v1870
      %v1872 = vpop.f32.mrb[0].mxu0
      %v1873 = vpop.f32.mrb[0].mxu0
      %v1874 = vadd.f32 0.0, %v1873
      %v1875 = vpop.f32.mrb[0].mxu0
      %1876 = vmatprep.mubr.bf16.mxu0 0
      %1877 = vmatmul.mubr.bf16.gmra.mrb[0].mxu0 %v1811
      %v1878 = vpop.f32.mrb[0].mxu0
      %v1879 = vadd.f32 0.0, %v1878
      %v1880 = vpop.f32.mrb[0].mxu0
      %v1881 = vpop.f32.mrb[0].mxu0
      %v1882 = vadd.f32 0.0, %v1881
      %v1883 = vpop.f32.mrb[0].mxu0
      %1884 = vmatprep.mubr.bf16.mxu0 0
      %1885 = vmatmul.mubr.bf16.gmra.mrb[0].mxu0 %v1814
      %v1886 = vpop.f32.mrb[0].mxu0
      %v1887 = vadd.f32 0.0, %v1886
      %v1888 = vpop.f32.mrb[0].mxu0
      %v1889 = vpop.f32.mrb[0].mxu0
      %v1890 = vadd.f32 0.0, %v1889
      %v1891 = vpop.f32.mrb[0].mxu0
      %1892 = vdwg.mxu0
      %v1894 = vsel %vm1447, %v1368, 0
      %v1897 = vsel %vm1447, %v1370, 0
      %v1900 = vsel %vm1447, %v1372, 0
      %v1903 = vsel %vm1447, %v1374, 0
      %v1906 = vsel %vm1447, %v1424, 0
      %v1909 = vsel %vm1447, %v1426, 0
      %v1912 = vsel %vm1447, %v1428, 0
      %v1915 = vsel %vm1447, %v1430, 0
      %1917 = vmatprep.subr.bf16.mxu0 0
      %1918 = vmatpush1.bf16.xpose.msra.mxu0 %v1906
      %1919 = vmatprep.subr.bf16.mxu0 0
      %1920 = vmatpush1.bf16.xpose.msra.mxu0 %v1909
      %1921 = vmatprep.subr.bf16.mxu0 0
      %1922 = vmatpush1.bf16.xpose.msra.mxu0 %v1912
      %1923 = vmatprep.subr.bf16.mxu0 0
      %1924 = vmatpush1.bf16.xpose.msra.mxu0 %v1915
      %1925 = vmatprep.subr.bf16.mxu0 0
      %1926 = vmatpush1.bf16.xpose.msra.mxu0 0
      %1927 = vmatprep.subr.bf16.mxu0 0
      %1928 = vmatpush1.bf16.xpose.msra.mxu0 0
      %1929 = vmatprep.subr.bf16.mxu0 0
      %1930 = vmatpush1.bf16.xpose.msra.mxu0 0
      %1931 = vmatprep.subr.bf16.mxu0 0
      %1932 = vmatpush1.bf16.xpose.msra.mxu0 0
      %1933 = vmatprep.subr.bf16.mxu0 0
      %1934 = vmatpush1.bf16.xpose.msra.mxu0 0
      %1935 = vmatprep.subr.bf16.mxu0 0
      %1936 = vmatpush1.bf16.xpose.msra.mxu0 0
      %1937 = vmatprep.subr.bf16.mxu0 0
      %1938 = vmatpush1.bf16.xpose.msra.mxu0 0
      %1939 = vmatprep.subr.bf16.mxu0 0
      %1940 = vmatpush1.bf16.xpose.msra.mxu0 0
      %1941 = vmatprep.subr.bf16.mxu0 0
      %1942 = vmatpush1.bf16.xpose.msra.mxu0 0
      %1943 = vmatprep.subr.bf16.mxu0 0
      %1944 = vmatpush1.bf16.xpose.msra.mxu0 0
      %1945 = vmatprep.subr.bf16.mxu0 0
      %1946 = vmatpush1.bf16.xpose.msra.mxu0 0
      %1947 = vmatprep.subr.bf16.mxu0 0
      %1948 = vmatpush1.bf16.xpose.msra.mxu0 0
      %1949 = vmatprep.mubr.bf16.mxu0 0
      %1950 = vmatmul.mubr.bf16.gmra.mrb[0].mxu0 %v1894
      %v1951 = vpop.f32.mrb[0].mxu0
      %v1952 = vadd.f32 0.0, %v1951
      %v1953 = vpop.f32.mrb[0].mxu0
      %v1954 = vpop.f32.mrb[0].mxu0
      %v1955 = vadd.f32 0.0, %v1954
      %v1956 = vpop.f32.mrb[0].mxu0
      %1957 = vmatprep.mubr.bf16.mxu0 0
      %1958 = vmatmul.mubr.bf16.gmra.mrb[0].mxu0 %v1897
      %v1959 = vpop.f32.mrb[0].mxu0
      %v1960 = vadd.f32 0.0, %v1959
      %v1961 = vpop.f32.mrb[0].mxu0
      %v1962 = vpop.f32.mrb[0].mxu0
      %v1963 = vadd.f32 0.0, %v1962
      %v1964 = vpop.f32.mrb[0].mxu0
      %1965 = vmatprep.mubr.bf16.mxu0 0
      %1966 = vmatmul.mubr.bf16.gmra.mrb[0].mxu0 %v1900
      %v1967 = vpop.f32.mrb[0].mxu0
      %v1968 = vadd.f32 0.0, %v1967
      %v1969 = vpop.f32.mrb[0].mxu0
      %v1970 = vpop.f32.mrb[0].mxu0
      %v1971 = vadd.f32 0.0, %v1970
      %v1972 = vpop.f32.mrb[0].mxu0
      %1973 = vmatprep.mubr.bf16.mxu0 0
      %1974 = vmatmul.mubr.bf16.gmra.mrb[0].mxu0 %v1903
      %v1975 = vpop.f32.mrb[0].mxu0
      %v1976 = vadd.f32 0.0, %v1975
      %v1977 = vpop.f32.mrb[0].mxu0
      %v1978 = vpop.f32.mrb[0].mxu0
      %v1979 = vadd.f32 0.0, %v1978
      %v1980 = vpop.f32.mrb[0].mxu0
      %1981 = vdwg.mxu0
      %v1983 = vsel %vm1447, %v1376, 0
      %v1986 = vsel %vm1447, %v1378, 0
      %v1989 = vsel %vm1447, %v1380, 0
      %v1992 = vsel %vm1447, %v1382, 0
      %v1995 = vsel %vm1447, %v1432, 0
      %v1998 = vsel %vm1447, %v1434, 0
      %v2001 = vsel %vm1447, %v1436, 0
      %v2004 = vsel %vm1447, %v1438, 0
      %2006 = vmatprep.subr.bf16.mxu0 0
      %2007 = vmatpush1.bf16.xpose.msra.mxu0 %v1995
      %2008 = vmatprep.subr.bf16.mxu0 0
      %2009 = vmatpush1.bf16.xpose.msra.mxu0 %v1998
      %2010 = vmatprep.subr.bf16.mxu0 0
      %2011 = vmatpush1.bf16.xpose.msra.mxu0 %v2001
      %2012 = vmatprep.subr.bf16.mxu0 0
      %2013 = vmatpush1.bf16.xpose.msra.mxu0 %v2004
      %2014 = vmatprep.subr.bf16.mxu0 0
      %2015 = vmatpush1.bf16.xpose.msra.mxu0 0
      %2016 = vmatprep.subr.bf16.mxu0 0
      %2017 = vmatpush1.bf16.xpose.msra.mxu0 0
      %2018 = vmatprep.subr.bf16.mxu0 0
      %2019 = vmatpush1.bf16.xpose.msra.mxu0 0
      %2020 = vmatprep.subr.bf16.mxu0 0
      %2021 = vmatpush1.bf16.xpose.msra.mxu0 0
      %2022 = vmatprep.subr.bf16.mxu0 0
      %2023 = vmatpush1.bf16.xpose.msra.mxu0 0
      %2024 = vmatprep.subr.bf16.mxu0 0
      %2025 = vmatpush1.bf16.xpose.msra.mxu0 0
      %2026 = vmatprep.subr.bf16.mxu0 0
      %2027 = vmatpush1.bf16.xpose.msra.mxu0 0
      %2028 = vmatprep.subr.bf16.mxu0 0
      %2029 = vmatpush1.bf16.xpose.msra.mxu0 0
      %2030 = vmatprep.subr.bf16.mxu0 0
      %2031 = vmatpush1.bf16.xpose.msra.mxu0 0
      %2032 = vmatprep.subr.bf16.mxu0 0
      %2033 = vmatpush1.bf16.xpose.msra.mxu0 0
      %2034 = vmatprep.subr.bf16.mxu0 0
      %2035 = vmatpush1.bf16.xpose.msra.mxu0 0
      %2036 = vmatprep.subr.bf16.mxu0 0
      %2037 = vmatpush1.bf16.xpose.msra.mxu0 0
      %2038 = vmatprep.mubr.bf16.mxu0 0
      %2039 = vmatmul.mubr.bf16.gmra.mrb[0].mxu0 %v1983
      %v2040 = vpop.f32.mrb[0].mxu0
      %v2041 = vadd.f32 0.0, %v2040
      %v2042 = vpop.f32.mrb[0].mxu0
      %v2043 = vpop.f32.mrb[0].mxu0
      %v2044 = vadd.f32 0.0, %v2043
      %v2045 = vpop.f32.mrb[0].mxu0
      %2046 = vmatprep.mubr.bf16.mxu0 0
      %2047 = vmatmul.mubr.bf16.gmra.mrb[0].mxu0 %v1986
      %v2048 = vpop.f32.mrb[0].mxu0
      %v2049 = vadd.f32 0.0, %v2048
      %v2050 = vpop.f32.mrb[0].mxu0
      %v2051 = vpop.f32.mrb[0].mxu0
      %v2052 = vadd.f32 0.0, %v2051
      %v2053 = vpop.f32.mrb[0].mxu0
      %2054 = vmatprep.mubr.bf16.mxu0 0
      %2055 = vmatmul.mubr.bf16.gmra.mrb[0].mxu0 %v1989
      %v2056 = vpop.f32.mrb[0].mxu0
      %v2057 = vadd.f32 0.0, %v2056
      %v2058 = vpop.f32.mrb[0].mxu0
      %v2059 = vpop.f32.mrb[0].mxu0
      %v2060 = vadd.f32 0.0, %v2059
      %v2061 = vpop.f32.mrb[0].mxu0
      %2062 = vmatprep.mubr.bf16.mxu0 0
      %2063 = vmatmul.mubr.bf16.gmra.mrb[0].mxu0 %v1992
      %v2064 = vpop.f32.mrb[0].mxu0
      %v2065 = vadd.f32 0.0, %v2064
      %v2066 = vpop.f32.mrb[0].mxu0
      %v2067 = vpop.f32.mrb[0].mxu0
      %v2068 = vadd.f32 0.0, %v2067
      %v2069 = vpop.f32.mrb[0].mxu0
      %2070 = vdwg.mxu0
      %v2072 = vsel %vm1447, %v1384, 0
      %v2075 = vsel %vm1447, %v1386, 0
      %v2078 = vsel %vm1447, %v1388, 0
      %v2081 = vsel %vm1447, %v1390, 0
      %v2084 = vsel %vm1447, %v1440, 0
      %v2087 = vsel %vm1447, %v1442, 0
      %v2090 = vsel %vm1447, %v1444, 0
      %v2093 = vsel %vm1447, %v1446, 0
      %2095 = vmatprep.subr.bf16.mxu0 0
      %2096 = vmatpush1.bf16.xpose.msra.mxu0 %v2084
      %2097 = vmatprep.subr.bf16.mxu0 0
      %2098 = vmatpush1.bf16.xpose.msra.mxu0 %v2087
      %2099 = vmatprep.subr.bf16.mxu0 0
      %2100 = vmatpush1.bf16.xpose.msra.mxu0 %v2090
      %2101 = vmatprep.subr.bf16.mxu0 0
      %2102 = vmatpush1.bf16.xpose.msra.mxu0 %v2093
      %2103 = vmatprep.subr.bf16.mxu0 0
      %2104 = vmatpush1.bf16.xpose.msra.mxu0 0
      %2105 = vmatprep.subr.bf16.mxu0 0
      %2106 = vmatpush1.bf16.xpose.msra.mxu0 0
      %2107 = vmatprep.subr.bf16.mxu0 0
      %2108 = vmatpush1.bf16.xpose.msra.mxu0 0
      %2109 = vmatprep.subr.bf16.mxu0 0
      %2110 = vmatpush1.bf16.xpose.msra.mxu0 0
      %2111 = vmatprep.subr.bf16.mxu0 0
      %2112 = vmatpush1.bf16.xpose.msra.mxu0 0
      %2113 = vmatprep.subr.bf16.mxu0 0
      %2114 = vmatpush1.bf16.xpose.msra.mxu0 0
      %2115 = vmatprep.subr.bf16.mxu0 0
      %2116 = vmatpush1.bf16.xpose.msra.mxu0 0
      %2117 = vmatprep.subr.bf16.mxu0 0
      %2118 = vmatpush1.bf16.xpose.msra.mxu0 0
      %2119 = vmatprep.subr.bf16.mxu0 0
      %2120 = vmatpush1.bf16.xpose.msra.mxu0 0
      %2121 = vmatprep.subr.bf16.mxu0 0
      %2122 = vmatpush1.bf16.xpose.msra.mxu0 0
      %2123 = vmatprep.subr.bf16.mxu0 0
      %2124 = vmatpush1.bf16.xpose.msra.mxu0 0
      %2125 = vmatprep.subr.bf16.mxu0 0
      %2126 = vmatpush1.bf16.xpose.msra.mxu0 0
      %2127 = vmatprep.mubr.bf16.mxu0 0
      %2128 = vmatmul.mubr.bf16.gmra.mrb[0].mxu0 %v2072
      %v2129 = vpop.f32.mrb[0].mxu0
      %v2130 = vadd.f32 0.0, %v2129
      %v2131 = vpop.f32.mrb[0].mxu0
      %v2132 = vpop.f32.mrb[0].mxu0
      %v2133 = vadd.f32 0.0, %v2132
      %v2134 = vpop.f32.mrb[0].mxu0
      %2135 = vmatprep.mubr.bf16.mxu0 0
      %2136 = vmatmul.mubr.bf16.gmra.mrb[0].mxu0 %v2075
      %v2137 = vpop.f32.mrb[0].mxu0
      %v2138 = vadd.f32 0.0, %v2137
      %v2139 = vpop.f32.mrb[0].mxu0
      %v2140 = vpop.f32.mrb[0].mxu0
      %v2141 = vadd.f32 0.0, %v2140
      %v2142 = vpop.f32.mrb[0].mxu0
      %2143 = vmatprep.mubr.bf16.mxu0 0
      %2144 = vmatmul.mubr.bf16.gmra.mrb[0].mxu0 %v2078
      %v2145 = vpop.f32.mrb[0].mxu0
      %v2146 = vadd.f32 0.0, %v2145
      %v2147 = vpop.f32.mrb[0].mxu0
      %v2148 = vpop.f32.mrb[0].mxu0
      %v2149 = vadd.f32 0.0, %v2148
      %v2150 = vpop.f32.mrb[0].mxu0
      %2151 = vmatprep.mubr.bf16.mxu0 0
      %2152 = vmatmul.mubr.bf16.gmra.mrb[0].mxu0 %v2081
      %v2153 = vpop.f32.mrb[0].mxu0
      %v2154 = vadd.f32 0.0, %v2153
      %v2155 = vpop.f32.mrb[0].mxu0
      %v2156 = vpop.f32.mrb[0].mxu0
      %v2157 = vadd.f32 0.0, %v2156
      %v2158 = vpop.f32.mrb[0].mxu0
      %2159 = vdwg.mxu0
      %vm2160 = vcmask 523264
      %v2161 = vsel %vm2160, %v1507, -inf
      %2162 = vmax.xlane.f32.xlu0 %v2161
      %v2163 = vpop.xlane.xlu0 %2162
      %v2164 = vsel %vm2160, %v1510, -inf
      %2165 = vmax.xlane.f32.xlu0 %v2164
      %v2166 = vpop.xlane.xlu0 %2165
      %v2167 = vsel %vm2160, %v1515, -inf
      %2168 = vmax.xlane.f32.xlu0 %v2167
      %v2169 = vpop.xlane.xlu0 %2168
      %v2170 = vsel %vm2160, %v1518, -inf
      %2171 = vmax.xlane.f32.xlu0 %v2170
      %v2172 = vpop.xlane.xlu0 %2171
      %v2173 = vsel %vm2160, %v1523, -inf
      %2174 = vmax.xlane.f32.xlu0 %v2173
      %v2175 = vpop.xlane.xlu0 %2174
      %v2176 = vsel %vm2160, %v1526, -inf
      %2177 = vmax.xlane.f32.xlu0 %v2176
      %v2178 = vpop.xlane.xlu0 %2177
      %v2179 = vsel %vm2160, %v1531, -inf
      %2180 = vmax.xlane.f32.xlu0 %v2179
      %v2181 = vpop.xlane.xlu0 %2180
      %v2182 = vsel %vm2160, %v1534, -inf
      %2183 = vmax.xlane.f32.xlu0 %v2182
      %v2184 = vpop.xlane.xlu0 %2183
      %v2185 = vsel %vm2160, %v1596, -inf
      %2186 = vmax.xlane.f32.xlu0 %v2185
      %v2187 = vpop.xlane.xlu0 %2186
      %v2188 = vsel %vm2160, %v1599, -inf
      %2189 = vmax.xlane.f32.xlu0 %v2188
      %v2190 = vpop.xlane.xlu0 %2189
      %v2191 = vsel %vm2160, %v1604, -inf
      %2192 = vmax.xlane.f32.xlu0 %v2191
      %v2193 = vpop.xlane.xlu0 %2192
      %v2194 = vsel %vm2160, %v1607, -inf
      %2195 = vmax.xlane.f32.xlu0 %v2194
      %v2196 = vpop.xlane.xlu0 %2195
      %v2197 = vsel %vm2160, %v1612, -inf
      %2198 = vmax.xlane.f32.xlu0 %v2197
      %v2199 = vpop.xlane.xlu0 %2198
      %v2200 = vsel %vm2160, %v1615, -inf
      %2201 = vmax.xlane.f32.xlu0 %v2200
      %v2202 = vpop.xlane.xlu0 %2201
      %v2203 = vsel %vm2160, %v1620, -inf
      %2204 = vmax.xlane.f32.xlu0 %v2203
      %v2205 = vpop.xlane.xlu0 %2204
      %v2206 = vsel %vm2160, %v1623, -inf
      %2207 = vmax.xlane.f32.xlu0 %v2206
      %v2208 = vpop.xlane.xlu0 %2207
      %v2209 = vsel %vm2160, %v1685, -inf
      %2210 = vmax.xlane.f32.xlu0 %v2209
      %v2211 = vpop.xlane.xlu0 %2210
      %v2212 = vsel %vm2160, %v1688, -inf
      %2213 = vmax.xlane.f32.xlu0 %v2212
      %v2214 = vpop.xlane.xlu0 %2213
      %v2215 = vsel %vm2160, %v1693, -inf
      %2216 = vmax.xlane.f32.xlu0 %v2215
      %v2217 = vpop.xlane.xlu0 %2216
      %v2218 = vsel %vm2160, %v1696, -inf
      %2219 = vmax.xlane.f32.xlu0 %v2218
      %v2220 = vpop.xlane.xlu0 %2219
      %v2221 = vsel %vm2160, %v1701, -inf
      %2222 = vmax.xlane.f32.xlu0 %v2221
      %v2223 = vpop.xlane.xlu0 %2222
      %v2224 = vsel %vm2160, %v1704, -inf
      %2225 = vmax.xlane.f32.xlu0 %v2224
      %v2226 = vpop.xlane.xlu0 %2225
      %v2227 = vsel %vm2160, %v1709, -inf
      %2228 = vmax.xlane.f32.xlu0 %v2227
      %v2229 = vpop.xlane.xlu0 %2228
      %v2230 = vsel %vm2160, %v1712, -inf
      %2231 = vmax.xlane.f32.xlu0 %v2230
      %v2232 = vpop.xlane.xlu0 %2231
      %v2233 = vsel %vm2160, %v1774, -inf
      %2234 = vmax.xlane.f32.xlu0 %v2233
      %v2235 = vpop.xlane.xlu0 %2234
      %v2236 = vsel %vm2160, %v1777, -inf
      %2237 = vmax.xlane.f32.xlu0 %v2236
      %v2238 = vpop.xlane.xlu0 %2237
      %v2239 = vsel %vm2160, %v1782, -inf
      %2240 = vmax.xlane.f32.xlu0 %v2239
      %v2241 = vpop.xlane.xlu0 %2240
      %v2242 = vsel %vm2160, %v1785, -inf
      %2243 = vmax.xlane.f32.xlu0 %v2242
      %v2244 = vpop.xlane.xlu0 %2243
      %v2245 = vsel %vm2160, %v1790, -inf
      %2246 = vmax.xlane.f32.xlu0 %v2245
      %v2247 = vpop.xlane.xlu0 %2246
      %v2248 = vsel %vm2160, %v1793, -inf
      %2249 = vmax.xlane.f32.xlu0 %v2248
      %v2250 = vpop.xlane.xlu0 %2249
      %v2251 = vsel %vm2160, %v1798, -inf
      %2252 = vmax.xlane.f32.xlu0 %v2251
      %v2253 = vpop.xlane.xlu0 %2252
      %v2254 = vsel %vm2160, %v1801, -inf
      %2255 = vmax.xlane.f32.xlu0 %v2254
      %v2256 = vpop.xlane.xlu0 %2255
      %v2257 = vsel %vm2160, %v1863, -inf
      %2258 = vmax.xlane.f32.xlu0 %v2257
      %v2259 = vpop.xlane.xlu0 %2258
      %v2260 = vsel %vm2160, %v1866, -inf
      %2261 = vmax.xlane.f32.xlu0 %v2260
      %v2262 = vpop.xlane.xlu0 %2261
      %v2263 = vsel %vm2160, %v1871, -inf
      %2264 = vmax.xlane.f32.xlu0 %v2263
      %v2265 = vpop.xlane.xlu0 %2264
      %v2266 = vsel %vm2160, %v1874, -inf
      %2267 = vmax.xlane.f32.xlu0 %v2266
      %v2268 = vpop.xlane.xlu0 %2267
      %v2269 = vsel %vm2160, %v1879, -inf
      %2270 = vmax.xlane.f32.xlu0 %v2269
      %v2271 = vpop.xlane.xlu0 %2270
      %v2272 = vsel %vm2160, %v1882, -inf
      %2273 = vmax.xlane.f32.xlu0 %v2272
      %v2274 = vpop.xlane.xlu0 %2273
      %v2275 = vsel %vm2160, %v1887, -inf
      %2276 = vmax.xlane.f32.xlu0 %v2275
      %v2277 = vpop.xlane.xlu0 %2276
      %v2278 = vsel %vm2160, %v1890, -inf
      %2279 = vmax.xlane.f32.xlu0 %v2278
      %v2280 = vpop.xlane.xlu0 %2279
      %v2281 = vsel %vm2160, %v1952, -inf
      %2282 = vmax.xlane.f32.xlu0 %v2281
      %v2283 = vpop.xlane.xlu0 %2282
      %v2284 = vsel %vm2160, %v1955, -inf
      %2285 = vmax.xlane.f32.xlu0 %v2284
      %v2286 = vpop.xlane.xlu0 %2285
      %v2287 = vsel %vm2160, %v1960, -inf
      %2288 = vmax.xlane.f32.xlu0 %v2287
      %v2289 = vpop.xlane.xlu0 %2288
      %v2290 = vsel %vm2160, %v1963, -inf
      %2291 = vmax.xlane.f32.xlu0 %v2290
      %v2292 = vpop.xlane.xlu0 %2291
      %v2293 = vsel %vm2160, %v1968, -inf
      %2294 = vmax.xlane.f32.xlu0 %v2293
      %v2295 = vpop.xlane.xlu0 %2294
      %v2296 = vsel %vm2160, %v1971, -inf
      %2297 = vmax.xlane.f32.xlu0 %v2296
      %v2298 = vpop.xlane.xlu0 %2297
      %v2299 = vsel %vm2160, %v1976, -inf
      %2300 = vmax.xlane.f32.xlu0 %v2299
      %v2301 = vpop.xlane.xlu0 %2300
      %v2302 = vsel %vm2160, %v1979, -inf
      %2303 = vmax.xlane.f32.xlu0 %v2302
      %v2304 = vpop.xlane.xlu0 %2303
      %v2305 = vsel %vm2160, %v2041, -inf
      %2306 = vmax.xlane.f32.xlu0 %v2305
      %v2307 = vpop.xlane.xlu0 %2306
      %v2308 = vsel %vm2160, %v2044, -inf
      %2309 = vmax.xlane.f32.xlu0 %v2308
      %v2310 = vpop.xlane.xlu0 %2309
      %v2311 = vsel %vm2160, %v2049, -inf
      %2312 = vmax.xlane.f32.xlu0 %v2311
      %v2313 = vpop.xlane.xlu0 %2312
      %v2314 = vsel %vm2160, %v2052, -inf
      %2315 = vmax.xlane.f32.xlu0 %v2314
      %v2316 = vpop.xlane.xlu0 %2315
      %v2317 = vsel %vm2160, %v2057, -inf
      %2318 = vmax.xlane.f32.xlu0 %v2317
      %v2319 = vpop.xlane.xlu0 %2318
      %v2320 = vsel %vm2160, %v2060, -inf
      %2321 = vmax.xlane.f32.xlu0 %v2320
      %v2322 = vpop.xlane.xlu0 %2321
      %v2323 = vsel %vm2160, %v2065, -inf
      %2324 = vmax.xlane.f32.xlu0 %v2323
      %v2325 = vpop.xlane.xlu0 %2324
      %v2326 = vsel %vm2160, %v2068, -inf
      %2327 = vmax.xlane.f32.xlu0 %v2326
      %v2328 = vpop.xlane.xlu0 %2327
      %v2329 = vsel %vm2160, %v2130, -inf
      %2330 = vmax.xlane.f32.xlu0 %v2329
      %v2331 = vpop.xlane.xlu0 %2330
      %v2332 = vsel %vm2160, %v2133, -inf
      %2333 = vmax.xlane.f32.xlu0 %v2332
      %v2334 = vpop.xlane.xlu0 %2333
      %v2335 = vsel %vm2160, %v2138, -inf
      %2336 = vmax.xlane.f32.xlu0 %v2335
      %v2337 = vpop.xlane.xlu0 %2336
      %v2338 = vsel %vm2160, %v2141, -inf
      %2339 = vmax.xlane.f32.xlu0 %v2338
      %v2340 = vpop.xlane.xlu0 %2339
      %v2341 = vsel %vm2160, %v2146, -inf
      %2342 = vmax.xlane.f32.xlu0 %v2341
      %v2343 = vpop.xlane.xlu0 %2342
      %v2344 = vsel %vm2160, %v2149, -inf
      %2345 = vmax.xlane.f32.xlu0 %v2344
      %v2346 = vpop.xlane.xlu0 %2345
      %v2347 = vsel %vm2160, %v2154, -inf
      %2348 = vmax.xlane.f32.xlu0 %v2347
      %v2349 = vpop.xlane.xlu0 %2348
      %v2350 = vsel %vm2160, %v2157, -inf
      %2351 = vmax.xlane.f32.xlu0 %v2350
      %v2352 = vpop.xlane.xlu0 %2351
      %v2353 = vsub.f32 %v1507, %v2163
      %v2354 = vsub.f32 %v1510, %v2166
      %v2355 = vsub.f32 %v1515, %v2169
      %v2356 = vsub.f32 %v1518, %v2172
      %v2357 = vsub.f32 %v1523, %v2175
      %v2358 = vsub.f32 %v1526, %v2178
      %v2359 = vsub.f32 %v1531, %v2181
      %v2360 = vsub.f32 %v1534, %v2184
      %v2361 = vsub.f32 %v1596, %v2187
      %v2362 = vsub.f32 %v1599, %v2190
      %v2363 = vsub.f32 %v1604, %v2193
      %v2364 = vsub.f32 %v1607, %v2196
      %v2365 = vsub.f32 %v1612, %v2199
      %v2366 = vsub.f32 %v1615, %v2202
      %v2367 = vsub.f32 %v1620, %v2205
      %v2368 = vsub.f32 %v1623, %v2208
      %v2369 = vsub.f32 %v1685, %v2211
      %v2370 = vsub.f32 %v1688, %v2214
      %v2371 = vsub.f32 %v1693, %v2217
      %v2372 = vsub.f32 %v1696, %v2220
      %v2373 = vsub.f32 %v1701, %v2223
      %v2374 = vsub.f32 %v1704, %v2226
      %v2375 = vsub.f32 %v1709, %v2229
      %v2376 = vsub.f32 %v1712, %v2232
      %v2377 = vsub.f32 %v1774, %v2235
      %v2378 = vsub.f32 %v1777, %v2238
      %v2379 = vsub.f32 %v1782, %v2241
      %v2380 = vsub.f32 %v1785, %v2244
      %v2381 = vsub.f32 %v1790, %v2247
      %v2382 = vsub.f32 %v1793, %v2250
      %v2383 = vsub.f32 %v1798, %v2253
      %v2384 = vsub.f32 %v1801, %v2256
      %v2385 = vsub.f32 %v1863, %v2259
      %v2386 = vsub.f32 %v1866, %v2262
      %v2387 = vsub.f32 %v1871, %v2265
      %v2388 = vsub.f32 %v1874, %v2268
      %v2389 = vsub.f32 %v1879, %v2271
      %v2390 = vsub.f32 %v1882, %v2274
      %v2391 = vsub.f32 %v1887, %v2277
      %v2392 = vsub.f32 %v1890, %v2280
      %v2393 = vsub.f32 %v1952, %v2283
      %v2394 = vsub.f32 %v1955, %v2286
      %v2395 = vsub.f32 %v1960, %v2289
      %v2396 = vsub.f32 %v1963, %v2292
      %v2397 = vsub.f32 %v1968, %v2295
      %v2398 = vsub.f32 %v1971, %v2298
      %v2399 = vsub.f32 %v1976, %v2301
      %v2400 = vsub.f32 %v1979, %v2304
      %v2401 = vsub.f32 %v2041, %v2307
      %v2402 = vsub.f32 %v2044, %v2310
      %v2403 = vsub.f32 %v2049, %v2313
      %v2404 = vsub.f32 %v2052, %v2316
      %v2405 = vsub.f32 %v2057, %v2319
      %v2406 = vsub.f32 %v2060, %v2322
      %v2407 = vsub.f32 %v2065, %v2325
      %v2408 = vsub.f32 %v2068, %v2328
      %v2409 = vsub.f32 %v2130, %v2331
      %v2410 = vsub.f32 %v2133, %v2334
      %v2411 = vsub.f32 %v2138, %v2337
      %v2412 = vsub.f32 %v2141, %v2340
      %v2413 = vsub.f32 %v2146, %v2343
      %v2414 = vsub.f32 %v2149, %v2346
      %v2415 = vsub.f32 %v2154, %v2349
      %v2416 = vsub.f32 %v2157, %v2352
      %v2417 = vmul.f32 %v2353, 1.442695
      %v2418 = vpow.pop %v2417
      %v2419 = vmul.f32 %v2354, 1.442695
      %v2420 = vpow.pop %v2419
      %v2421 = vmul.f32 %v2355, 1.442695
      %v2422 = vpow.pop %v2421
      %v2423 = vmul.f32 %v2356, 1.442695
      %v2424 = vpow.pop %v2423
      %v2425 = vmul.f32 %v2357, 1.442695
      %v2426 = vpow.pop %v2425
      %v2427 = vmul.f32 %v2358, 1.442695
      %v2428 = vpow.pop %v2427
      %v2429 = vmul.f32 %v2359, 1.442695
      %v2430 = vpow.pop %v2429
      %v2431 = vmul.f32 %v2360, 1.442695
      %v2432 = vpow.pop %v2431
      %v2433 = vmul.f32 %v2361, 1.442695
      %v2434 = vpow.pop %v2433
      %v2435 = vmul.f32 %v2362, 1.442695
      %v2436 = vpow.pop %v2435
      %v2437 = vmul.f32 %v2363, 1.442695
      %v2438 = vpow.pop %v2437
      %v2439 = vmul.f32 %v2364, 1.442695
      %v2440 = vpow.pop %v2439
      %v2441 = vmul.f32 %v2365, 1.442695
      %v2442 = vpow.pop %v2441
      %v2443 = vmul.f32 %v2366, 1.442695
      %v2444 = vpow.pop %v2443
      %v2445 = vmul.f32 %v2367, 1.442695
      %v2446 = vpow.pop %v2445
      %v2447 = vmul.f32 %v2368, 1.442695
      %v2448 = vpow.pop %v2447
      %v2449 = vmul.f32 %v2369, 1.442695
      %v2450 = vpow.pop %v2449
      %v2451 = vmul.f32 %v2370, 1.442695
      %v2452 = vpow.pop %v2451
      %v2453 = vmul.f32 %v2371, 1.442695
      %v2454 = vpow.pop %v2453
      %v2455 = vmul.f32 %v2372, 1.442695
      %v2456 = vpow.pop %v2455
      %v2457 = vmul.f32 %v2373, 1.442695
      %v2458 = vpow.pop %v2457
      %v2459 = vmul.f32 %v2374, 1.442695
      %v2460 = vpow.pop %v2459
      %v2461 = vmul.f32 %v2375, 1.442695
      %v2462 = vpow.pop %v2461
      %v2463 = vmul.f32 %v2376, 1.442695
      %v2464 = vpow.pop %v2463
      %v2465 = vmul.f32 %v2377, 1.442695
      %v2466 = vpow.pop %v2465
      %v2467 = vmul.f32 %v2378, 1.442695
      %v2468 = vpow.pop %v2467
      %v2469 = vmul.f32 %v2379, 1.442695
      %v2470 = vpow.pop %v2469
      %v2471 = vmul.f32 %v2380, 1.442695
      %v2472 = vpow.pop %v2471
      %v2473 = vmul.f32 %v2381, 1.442695
      %v2474 = vpow.pop %v2473
      %v2475 = vmul.f32 %v2382, 1.442695
      %v2476 = vpow.pop %v2475
      %v2477 = vmul.f32 %v2383, 1.442695
      %v2478 = vpow.pop %v2477
      %v2479 = vmul.f32 %v2384, 1.442695
      %v2480 = vpow.pop %v2479
      %v2481 = vmul.f32 %v2385, 1.442695
      %v2482 = vpow.pop %v2481
      %v2483 = vmul.f32 %v2386, 1.442695
      %v2484 = vpow.pop %v2483
      %v2485 = vmul.f32 %v2387, 1.442695
      %v2486 = vpow.pop %v2485
      %v2487 = vmul.f32 %v2388, 1.442695
      %v2488 = vpow.pop %v2487
      %v2489 = vmul.f32 %v2389, 1.442695
      %v2490 = vpow.pop %v2489
      %v2491 = vmul.f32 %v2390, 1.442695
      %v2492 = vpow.pop %v2491
      %v2493 = vmul.f32 %v2391, 1.442695
      %v2494 = vpow.pop %v2493
      %v2495 = vmul.f32 %v2392, 1.442695
      %v2496 = vpow.pop %v2495
      %v2497 = vmul.f32 %v2393, 1.442695
      %v2498 = vpow.pop %v2497
      %v2499 = vmul.f32 %v2394, 1.442695
      %v2500 = vpow.pop %v2499
      %v2501 = vmul.f32 %v2395, 1.442695
      %v2502 = vpow.pop %v2501
      %v2503 = vmul.f32 %v2396, 1.442695
      %v2504 = vpow.pop %v2503
      %v2505 = vmul.f32 %v2397, 1.442695
      %v2506 = vpow.pop %v2505
      %v2507 = vmul.f32 %v2398, 1.442695
      %v2508 = vpow.pop %v2507
      %v2509 = vmul.f32 %v2399, 1.442695
      %v2510 = vpow.pop %v2509
      %v2511 = vmul.f32 %v2400, 1.442695
      %v2512 = vpow.pop %v2511
      %v2513 = vmul.f32 %v2401, 1.442695
      %v2514 = vpow.pop %v2513
      %v2515 = vmul.f32 %v2402, 1.442695
      %v2516 = vpow.pop %v2515
      %v2517 = vmul.f32 %v2403, 1.442695
      %v2518 = vpow.pop %v2517
      %v2519 = vmul.f32 %v2404, 1.442695
      %v2520 = vpow.pop %v2519
      %v2521 = vmul.f32 %v2405, 1.442695
      %v2522 = vpow.pop %v2521
      %v2523 = vmul.f32 %v2406, 1.442695
      %v2524 = vpow.pop %v2523
      %v2525 = vmul.f32 %v2407, 1.442695
      %v2526 = vpow.pop %v2525
      %v2527 = vmul.f32 %v2408, 1.442695
      %v2528 = vpow.pop %v2527
      %v2529 = vmul.f32 %v2409, 1.442695
      %v2530 = vpow.pop %v2529
      %v2531 = vmul.f32 %v2410, 1.442695
      %v2532 = vpow.pop %v2531
      %v2533 = vmul.f32 %v2411, 1.442695
      %v2534 = vpow.pop %v2533
      %v2535 = vmul.f32 %v2412, 1.442695
      %v2536 = vpow.pop %v2535
      %v2537 = vmul.f32 %v2413, 1.442695
      %v2538 = vpow.pop %v2537
      %v2539 = vmul.f32 %v2414, 1.442695
      %v2540 = vpow.pop %v2539
      %v2541 = vmul.f32 %v2415, 1.442695
      %v2542 = vpow.pop %v2541
      %v2543 = vmul.f32 %v2416, 1.442695
      %v2544 = vpow.pop %v2543
      %v2545 = vsel %vm2160, %v2418, 0.0
      %2546 = vadd.xlane.f32.xlu0 %v2545
      %v2547 = vpop.xlane.xlu0 %2546
      %v2548 = vsel %vm2160, %v2420, 0.0
      %2549 = vadd.xlane.f32.xlu0 %v2548
      %v2550 = vpop.xlane.xlu0 %2549
      %v2551 = vsel %vm2160, %v2422, 0.0
      %2552 = vadd.xlane.f32.xlu0 %v2551
      %v2553 = vpop.xlane.xlu0 %2552
      %v2554 = vsel %vm2160, %v2424, 0.0
      %2555 = vadd.xlane.f32.xlu0 %v2554
      %v2556 = vpop.xlane.xlu0 %2555
      %v2557 = vsel %vm2160, %v2426, 0.0
      %2558 = vadd.xlane.f32.xlu0 %v2557
      %v2559 = vpop.xlane.xlu0 %2558
      %v2560 = vsel %vm2160, %v2428, 0.0
      %2561 = vadd.xlane.f32.xlu0 %v2560
      %v2562 = vpop.xlane.xlu0 %2561
      %v2563 = vsel %vm2160, %v2430, 0.0
      %2564 = vadd.xlane.f32.xlu0 %v2563
      %v2565 = vpop.xlane.xlu0 %2564
      %v2566 = vsel %vm2160, %v2432, 0.0
      %2567 = vadd.xlane.f32.xlu0 %v2566
      %v2568 = vpop.xlane.xlu0 %2567
      %v2569 = vsel %vm2160, %v2434, 0.0
      %2570 = vadd.xlane.f32.xlu0 %v2569
      %v2571 = vpop.xlane.xlu0 %2570
      %v2572 = vsel %vm2160, %v2436, 0.0
      %2573 = vadd.xlane.f32.xlu0 %v2572
      %v2574 = vpop.xlane.xlu0 %2573
      %v2575 = vsel %vm2160, %v2438, 0.0
      %2576 = vadd.xlane.f32.xlu0 %v2575
      %v2577 = vpop.xlane.xlu0 %2576
      %v2578 = vsel %vm2160, %v2440, 0.0
      %2579 = vadd.xlane.f32.xlu0 %v2578
      %v2580 = vpop.xlane.xlu0 %2579
      %v2581 = vsel %vm2160, %v2442, 0.0
      %2582 = vadd.xlane.f32.xlu0 %v2581
      %v2583 = vpop.xlane.xlu0 %2582
      %v2584 = vsel %vm2160, %v2444, 0.0
      %2585 = vadd.xlane.f32.xlu0 %v2584
      %v2586 = vpop.xlane.xlu0 %2585
      %v2587 = vsel %vm2160, %v2446, 0.0
      %2588 = vadd.xlane.f32.xlu0 %v2587
      %v2589 = vpop.xlane.xlu0 %2588
      %v2590 = vsel %vm2160, %v2448, 0.0
      %2591 = vadd.xlane.f32.xlu0 %v2590
      %v2592 = vpop.xlane.xlu0 %2591
      %v2593 = vsel %vm2160, %v2450, 0.0
      %2594 = vadd.xlane.f32.xlu0 %v2593
      %v2595 = vpop.xlane.xlu0 %2594
      %v2596 = vsel %vm2160, %v2452, 0.0
      %2597 = vadd.xlane.f32.xlu0 %v2596
      %v2598 = vpop.xlane.xlu0 %2597
      %v2599 = vsel %vm2160, %v2454, 0.0
      %2600 = vadd.xlane.f32.xlu0 %v2599
      %v2601 = vpop.xlane.xlu0 %2600
      %v2602 = vsel %vm2160, %v2456, 0.0
      %2603 = vadd.xlane.f32.xlu0 %v2602
      %v2604 = vpop.xlane.xlu0 %2603
      %v2605 = vsel %vm2160, %v2458, 0.0
      %2606 = vadd.xlane.f32.xlu0 %v2605
      %v2607 = vpop.xlane.xlu0 %2606
      %v2608 = vsel %vm2160, %v2460, 0.0
      %2609 = vadd.xlane.f32.xlu0 %v2608
      %v2610 = vpop.xlane.xlu0 %2609
      %v2611 = vsel %vm2160, %v2462, 0.0
      %2612 = vadd.xlane.f32.xlu0 %v2611
      %v2613 = vpop.xlane.xlu0 %2612
      %v2614 = vsel %vm2160, %v2464, 0.0
      %2615 = vadd.xlane.f32.xlu0 %v2614
      %v2616 = vpop.xlane.xlu0 %2615
      %v2617 = vsel %vm2160, %v2466, 0.0
      %2618 = vadd.xlane.f32.xlu0 %v2617
      %v2619 = vpop.xlane.xlu0 %2618
      %v2620 = vsel %vm2160, %v2468, 0.0
      %2621 = vadd.xlane.f32.xlu0 %v2620
      %v2622 = vpop.xlane.xlu0 %2621
      %v2623 = vsel %vm2160, %v2470, 0.0
      %2624 = vadd.xlane.f32.xlu0 %v2623
      %v2625 = vpop.xlane.xlu0 %2624
      %v2626 = vsel %vm2160, %v2472, 0.0
      %2627 = vadd.xlane.f32.xlu0 %v2626
      %v2628 = vpop.xlane.xlu0 %2627
      %v2629 = vsel %vm2160, %v2474, 0.0
      %2630 = vadd.xlane.f32.xlu0 %v2629
      %v2631 = vpop.xlane.xlu0 %2630
      %v2632 = vsel %vm2160, %v2476, 0.0
      %2633 = vadd.xlane.f32.xlu0 %v2632
      %v2634 = vpop.xlane.xlu0 %2633
      %v2635 = vsel %vm2160, %v2478, 0.0
      %2636 = vadd.xlane.f32.xlu0 %v2635
      %v2637 = vpop.xlane.xlu0 %2636
      %v2638 = vsel %vm2160, %v2480, 0.0
      %2639 = vadd.xlane.f32.xlu0 %v2638
      %v2640 = vpop.xlane.xlu0 %2639
      %v2641 = vsel %vm2160, %v2482, 0.0
      %2642 = vadd.xlane.f32.xlu0 %v2641
      %v2643 = vpop.xlane.xlu0 %2642
      %v2644 = vsel %vm2160, %v2484, 0.0
      %2645 = vadd.xlane.f32.xlu0 %v2644
      %v2646 = vpop.xlane.xlu0 %2645
      %v2647 = vsel %vm2160, %v2486, 0.0
      %2648 = vadd.xlane.f32.xlu0 %v2647
      %v2649 = vpop.xlane.xlu0 %2648
      %v2650 = vsel %vm2160, %v2488, 0.0
      %2651 = vadd.xlane.f32.xlu0 %v2650
      %v2652 = vpop.xlane.xlu0 %2651
      %v2653 = vsel %vm2160, %v2490, 0.0
      %2654 = vadd.xlane.f32.xlu0 %v2653
      %v2655 = vpop.xlane.xlu0 %2654
      %v2656 = vsel %vm2160, %v2492, 0.0
      %2657 = vadd.xlane.f32.xlu0 %v2656
      %v2658 = vpop.xlane.xlu0 %2657
      %v2659 = vsel %vm2160, %v2494, 0.0
      %2660 = vadd.xlane.f32.xlu0 %v2659
      %v2661 = vpop.xlane.xlu0 %2660
      %v2662 = vsel %vm2160, %v2496, 0.0
      %2663 = vadd.xlane.f32.xlu0 %v2662
      %v2664 = vpop.xlane.xlu0 %2663
      %v2665 = vsel %vm2160, %v2498, 0.0
      %2666 = vadd.xlane.f32.xlu0 %v2665
      %v2667 = vpop.xlane.xlu0 %2666
      %v2668 = vsel %vm2160, %v2500, 0.0
      %2669 = vadd.xlane.f32.xlu0 %v2668
      %v2670 = vpop.xlane.xlu0 %2669
      %v2671 = vsel %vm2160, %v2502, 0.0
      %2672 = vadd.xlane.f32.xlu0 %v2671
      %v2673 = vpop.xlane.xlu0 %2672
      %v2674 = vsel %vm2160, %v2504, 0.0
      %2675 = vadd.xlane.f32.xlu0 %v2674
      %v2676 = vpop.xlane.xlu0 %2675
      %v2677 = vsel %vm2160, %v2506, 0.0
      %2678 = vadd.xlane.f32.xlu0 %v2677
      %v2679 = vpop.xlane.xlu0 %2678
      %v2680 = vsel %vm2160, %v2508, 0.0
      %2681 = vadd.xlane.f32.xlu0 %v2680
      %v2682 = vpop.xlane.xlu0 %2681
      %v2683 = vsel %vm2160, %v2510, 0.0
      %2684 = vadd.xlane.f32.xlu0 %v2683
      %v2685 = vpop.xlane.xlu0 %2684
      %v2686 = vsel %vm2160, %v2512, 0.0
      %2687 = vadd.xlane.f32.xlu0 %v2686
      %v2688 = vpop.xlane.xlu0 %2687
      %v2689 = vsel %vm2160, %v2514, 0.0
      %2690 = vadd.xlane.f32.xlu0 %v2689
      %v2691 = vpop.xlane.xlu0 %2690
      %v2692 = vsel %vm2160, %v2516, 0.0
      %2693 = vadd.xlane.f32.xlu0 %v2692
      %v2694 = vpop.xlane.xlu0 %2693
      %v2695 = vsel %vm2160, %v2518, 0.0
      %2696 = vadd.xlane.f32.xlu0 %v2695
      %v2697 = vpop.xlane.xlu0 %2696
      %v2698 = vsel %vm2160, %v2520, 0.0
      %2699 = vadd.xlane.f32.xlu0 %v2698
      %v2700 = vpop.xlane.xlu0 %2699
      %v2701 = vsel %vm2160, %v2522, 0.0
      %2702 = vadd.xlane.f32.xlu0 %v2701
      %v2703 = vpop.xlane.xlu0 %2702
      %v2704 = vsel %vm2160, %v2524, 0.0
      %2705 = vadd.xlane.f32.xlu0 %v2704
      %v2706 = vpop.xlane.xlu0 %2705
      %v2707 = vsel %vm2160, %v2526, 0.0
      %2708 = vadd.xlane.f32.xlu0 %v2707
      %v2709 = vpop.xlane.xlu0 %2708
      %v2710 = vsel %vm2160, %v2528, 0.0
      %2711 = vadd.xlane.f32.xlu0 %v2710
      %v2712 = vpop.xlane.xlu0 %2711
      %v2713 = vsel %vm2160, %v2530, 0.0
      %2714 = vadd.xlane.f32.xlu0 %v2713
      %v2715 = vpop.xlane.xlu0 %2714
      %v2716 = vsel %vm2160, %v2532, 0.0
      %2717 = vadd.xlane.f32.xlu0 %v2716
      %v2718 = vpop.xlane.xlu0 %2717
      %v2719 = vsel %vm2160, %v2534, 0.0
      %2720 = vadd.xlane.f32.xlu0 %v2719
      %v2721 = vpop.xlane.xlu0 %2720
      %v2722 = vsel %vm2160, %v2536, 0.0
      %2723 = vadd.xlane.f32.xlu0 %v2722
      %v2724 = vpop.xlane.xlu0 %2723
      %v2725 = vsel %vm2160, %v2538, 0.0
      %2726 = vadd.xlane.f32.xlu0 %v2725
      %v2727 = vpop.xlane.xlu0 %2726
      %v2728 = vsel %vm2160, %v2540, 0.0
      %2729 = vadd.xlane.f32.xlu0 %v2728
      %v2730 = vpop.xlane.xlu0 %2729
      %v2731 = vsel %vm2160, %v2542, 0.0
      %2732 = vadd.xlane.f32.xlu0 %v2731
      %v2733 = vpop.xlane.xlu0 %2732
      %v2734 = vsel %vm2160, %v2544, 0.0
      %2735 = vadd.xlane.f32.xlu0 %v2734
      %v2736 = vpop.xlane.xlu0 %2735
      %v2737 = vrcp.pop %v2547
      %v2738 = vrcp.pop %v2550
      %v2739 = vrcp.pop %v2553
      %v2740 = vrcp.pop %v2556
      %v2741 = vrcp.pop %v2559
      %v2742 = vrcp.pop %v2562
      %v2743 = vrcp.pop %v2565
      %v2744 = vrcp.pop %v2568
      %v2745 = vrcp.pop %v2571
      %v2746 = vrcp.pop %v2574
      %v2747 = vrcp.pop %v2577
      %v2748 = vrcp.pop %v2580
      %v2749 = vrcp.pop %v2583
      %v2750 = vrcp.pop %v2586
      %v2751 = vrcp.pop %v2589
      %v2752 = vrcp.pop %v2592
      %v2753 = vrcp.pop %v2595
      %v2754 = vrcp.pop %v2598
      %v2755 = vrcp.pop %v2601
      %v2756 = vrcp.pop %v2604
      %v2757 = vrcp.pop %v2607
      %v2758 = vrcp.pop %v2610
      %v2759 = vrcp.pop %v2613
      %v2760 = vrcp.pop %v2616
      %v2761 = vrcp.pop %v2619
      %v2762 = vrcp.pop %v2622
      %v2763 = vrcp.pop %v2625
      %v2764 = vrcp.pop %v2628
      %v2765 = vrcp.pop %v2631
      %v2766 = vrcp.pop %v2634
      %v2767 = vrcp.pop %v2637
      %v2768 = vrcp.pop %v2640
      %v2769 = vrcp.pop %v2643
      %v2770 = vrcp.pop %v2646
      %v2771 = vrcp.pop %v2649
      %v2772 = vrcp.pop %v2652
      %v2773 = vrcp.pop %v2655
      %v2774 = vrcp.pop %v2658
      %v2775 = vrcp.pop %v2661
      %v2776 = vrcp.pop %v2664
      %v2777 = vrcp.pop %v2667
      %v2778 = vrcp.pop %v2670
      %v2779 = vrcp.pop %v2673
      %v2780 = vrcp.pop %v2676
      %v2781 = vrcp.pop %v2679
      %v2782 = vrcp.pop %v2682
      %v2783 = vrcp.pop %v2685
      %v2784 = vrcp.pop %v2688
      %v2785 = vrcp.pop %v2691
      %v2786 = vrcp.pop %v2694
      %v2787 = vrcp.pop %v2697
      %v2788 = vrcp.pop %v2700
      %v2789 = vrcp.pop %v2703
      %v2790 = vrcp.pop %v2706
      %v2791 = vrcp.pop %v2709
      %v2792 = vrcp.pop %v2712
      %v2793 = vrcp.pop %v2715
      %v2794 = vrcp.pop %v2718
      %v2795 = vrcp.pop %v2721
      %v2796 = vrcp.pop %v2724
      %v2797 = vrcp.pop %v2727
      %v2798 = vrcp.pop %v2730
      %v2799 = vrcp.pop %v2733
      %v2800 = vrcp.pop %v2736
      %v2801 = vmul.f32 %v2418, %v2737
      %v2802 = vmul.f32 %v2420, %v2738
      %v2803 = vmul.f32 %v2422, %v2739
      %v2804 = vmul.f32 %v2424, %v2740
      %v2805 = vmul.f32 %v2426, %v2741
      %v2806 = vmul.f32 %v2428, %v2742
      %v2807 = vmul.f32 %v2430, %v2743
      %v2808 = vmul.f32 %v2432, %v2744
      %v2809 = vmul.f32 %v2434, %v2745
      %v2810 = vmul.f32 %v2436, %v2746
      %v2811 = vmul.f32 %v2438, %v2747
      %v2812 = vmul.f32 %v2440, %v2748
      %v2813 = vmul.f32 %v2442, %v2749
      %v2814 = vmul.f32 %v2444, %v2750
      %v2815 = vmul.f32 %v2446, %v2751
      %v2816 = vmul.f32 %v2448, %v2752
      %v2817 = vmul.f32 %v2450, %v2753
      %v2818 = vmul.f32 %v2452, %v2754
      %v2819 = vmul.f32 %v2454, %v2755
      %v2820 = vmul.f32 %v2456, %v2756
      %v2821 = vmul.f32 %v2458, %v2757
      %v2822 = vmul.f32 %v2460, %v2758
      %v2823 = vmul.f32 %v2462, %v2759
      %v2824 = vmul.f32 %v2464, %v2760
      %v2825 = vmul.f32 %v2466, %v2761
      %v2826 = vmul.f32 %v2468, %v2762
      %v2827 = vmul.f32 %v2470, %v2763
      %v2828 = vmul.f32 %v2472, %v2764
      %v2829 = vmul.f32 %v2474, %v2765
      %v2830 = vmul.f32 %v2476, %v2766
      %v2831 = vmul.f32 %v2478, %v2767
      %v2832 = vmul.f32 %v2480, %v2768
      %v2833 = vmul.f32 %v2482, %v2769
      %v2834 = vmul.f32 %v2484, %v2770
      %v2835 = vmul.f32 %v2486, %v2771
      %v2836 = vmul.f32 %v2488, %v2772
      %v2837 = vmul.f32 %v2490, %v2773
      %v2838 = vmul.f32 %v2492, %v2774
      %v2839 = vmul.f32 %v2494, %v2775
      %v2840 = vmul.f32 %v2496, %v2776
      %v2841 = vmul.f32 %v2498, %v2777
      %v2842 = vmul.f32 %v2500, %v2778
      %v2843 = vmul.f32 %v2502, %v2779
      %v2844 = vmul.f32 %v2504, %v2780
      %v2845 = vmul.f32 %v2506, %v2781
      %v2846 = vmul.f32 %v2508, %v2782
      %v2847 = vmul.f32 %v2510, %v2783
      %v2848 = vmul.f32 %v2512, %v2784
      %v2849 = vmul.f32 %v2514, %v2785
      %v2850 = vmul.f32 %v2516, %v2786
      %v2851 = vmul.f32 %v2518, %v2787
      %v2852 = vmul.f32 %v2520, %v2788
      %v2853 = vmul.f32 %v2522, %v2789
      %v2854 = vmul.f32 %v2524, %v2790
      %v2855 = vmul.f32 %v2526, %v2791
      %v2856 = vmul.f32 %v2528, %v2792
      %v2857 = vmul.f32 %v2530, %v2793
      %v2858 = vmul.f32 %v2532, %v2794
      %v2859 = vmul.f32 %v2534, %v2795
      %v2860 = vmul.f32 %v2536, %v2796
      %v2861 = vmul.f32 %v2538, %v2797
      %v2862 = vmul.f32 %v2540, %v2798
      %v2863 = vmul.f32 %v2542, %v2799
      %v2864 = vmul.f32 %v2544, %v2800
      %v2865 = vpack.c.bf16 %v2802, %v2801
      %v2866 = vpack.c.bf16 %v2804, %v2803
      %v2867 = vpack.c.bf16 %v2806, %v2805
      %v2868 = vpack.c.bf16 %v2808, %v2807
      %v2869 = vpack.c.bf16 %v2810, %v2809
      %v2870 = vpack.c.bf16 %v2812, %v2811
      %v2871 = vpack.c.bf16 %v2814, %v2813
      %v2872 = vpack.c.bf16 %v2816, %v2815
      %v2873 = vpack.c.bf16 %v2818, %v2817
      %v2874 = vpack.c.bf16 %v2820, %v2819
      %v2875 = vpack.c.bf16 %v2822, %v2821
      %v2876 = vpack.c.bf16 %v2824, %v2823
      %v2877 = vpack.c.bf16 %v2826, %v2825
      %v2878 = vpack.c.bf16 %v2828, %v2827
      %v2879 = vpack.c.bf16 %v2830, %v2829
      %v2880 = vpack.c.bf16 %v2832, %v2831
      %v2881 = vpack.c.bf16 %v2834, %v2833
      %v2882 = vpack.c.bf16 %v2836, %v2835
      %v2883 = vpack.c.bf16 %v2838, %v2837
      %v2884 = vpack.c.bf16 %v2840, %v2839
      %v2885 = vpack.c.bf16 %v2842, %v2841
      %v2886 = vpack.c.bf16 %v2844, %v2843
      %v2887 = vpack.c.bf16 %v2846, %v2845
      %v2888 = vpack.c.bf16 %v2848, %v2847
      %v2889 = vpack.c.bf16 %v2850, %v2849
      %v2890 = vpack.c.bf16 %v2852, %v2851
      %v2891 = vpack.c.bf16 %v2854, %v2853
      %v2892 = vpack.c.bf16 %v2856, %v2855
      %v2893 = vpack.c.bf16 %v2858, %v2857
      %v2894 = vpack.c.bf16 %v2860, %v2859
      %v2895 = vpack.c.bf16 %v2862, %v2861
      %v2896 = vpack.c.bf16 %v2864, %v2863
      %2897 = vrot.lane.b32.xlu0 %v1320, 96
      %v2898 = vpop.permute.xlu0 %2897
      %2899 = vrot.lane.b32.xlu0 %v1322, 96
      %v2900 = vpop.permute.xlu0 %2899
      %2901 = vrot.lane.b32.xlu0 %v1324, 96
      %v2902 = vpop.permute.xlu0 %2901
      %2903 = vrot.lane.b32.xlu0 %v1326, 96
      %v2904 = vpop.permute.xlu0 %2903
      %v2910 = vsel %vm2160, %v2865, 0
      %v2913 = vsel %vm2160, %v2866, 0
      %v2916 = vsel %vm2160, %v2867, 0
      %v2919 = vsel %vm2160, %v2868, 0
      %2921 = vmatprep.subr.bf16.mxu0 0
      %2922 = vmatpush1.bf16.msra.mxu0 %v2898
      %2923 = vmatprep.subr.bf16.mxu0 0
      %2924 = vmatpush1.bf16.msra.mxu0 %v2900
      %2925 = vmatprep.subr.bf16.mxu0 0
      %2926 = vmatpush1.bf16.msra.mxu0 %v2902
      %2927 = vmatprep.subr.bf16.mxu0 0
      %2928 = vmatpush1.bf16.msra.mxu0 %v2904
      %2929 = vmatprep.subr.bf16.mxu0 0
      %2930 = vmatpush1.bf16.msra.mxu0 0
      %2931 = vmatprep.subr.bf16.mxu0 0
      %2932 = vmatpush1.bf16.msra.mxu0 0
      %2933 = vmatprep.subr.bf16.mxu0 0
      %2934 = vmatpush1.bf16.msra.mxu0 0
      %2935 = vmatprep.subr.bf16.mxu0 0
      %2936 = vmatpush1.bf16.msra.mxu0 0
      %2937 = vmatprep.subr.bf16.mxu0 0
      %2938 = vmatpush1.bf16.msra.mxu0 0
      %2939 = vmatprep.subr.bf16.mxu0 0
      %2940 = vmatpush1.bf16.msra.mxu0 0
      %2941 = vmatprep.subr.bf16.mxu0 0
      %2942 = vmatpush1.bf16.msra.mxu0 0
      %2943 = vmatprep.subr.bf16.mxu0 0
      %2944 = vmatpush1.bf16.msra.mxu0 0
      %2945 = vmatprep.subr.bf16.mxu0 0
      %2946 = vmatpush1.bf16.msra.mxu0 0
      %2947 = vmatprep.subr.bf16.mxu0 0
      %2948 = vmatpush1.bf16.msra.mxu0 0
      %2949 = vmatprep.subr.bf16.mxu0 0
      %2950 = vmatpush1.bf16.msra.mxu0 0
      %2951 = vmatprep.subr.bf16.mxu0 0
      %2952 = vmatpush1.bf16.msra.mxu0 0
      %2953 = vmatprep.mubr.bf16.mxu0 0
      %2954 = vmatmul.mubr.bf16.gmra.mrb[0].mxu0 %v2910
      %v2955 = vpop.f32.mrb[0].mxu0
      %v2956 = vadd.f32 0.0, %v2955
      %v2957 = vpop.f32.mrb[0].mxu0
      %v2958 = vpop.f32.mrb[0].mxu0
      %v2959 = vadd.f32 0.0, %v2958
      %v2960 = vpop.f32.mrb[0].mxu0
      %2961 = vmatprep.mubr.bf16.mxu0 0
      %2962 = vmatmul.mubr.bf16.gmra.mrb[0].mxu0 %v2913
      %v2963 = vpop.f32.mrb[0].mxu0
      %v2964 = vadd.f32 0.0, %v2963
      %v2965 = vpop.f32.mrb[0].mxu0
      %v2966 = vpop.f32.mrb[0].mxu0
      %v2967 = vadd.f32 0.0, %v2966
      %v2968 = vpop.f32.mrb[0].mxu0
      %2969 = vmatprep.mubr.bf16.mxu0 0
      %2970 = vmatmul.mubr.bf16.gmra.mrb[0].mxu0 %v2916
      %v2971 = vpop.f32.mrb[0].mxu0
      %v2972 = vadd.f32 0.0, %v2971
      %v2973 = vpop.f32.mrb[0].mxu0
      %v2974 = vpop.f32.mrb[0].mxu0
      %v2975 = vadd.f32 0.0, %v2974
      %v2976 = vpop.f32.mrb[0].mxu0
      %2977 = vmatprep.mubr.bf16.mxu0 0
      %2978 = vmatmul.mubr.bf16.gmra.mrb[0].mxu0 %v2919
      %v2979 = vpop.f32.mrb[0].mxu0
      %v2980 = vadd.f32 0.0, %v2979
      %v2981 = vpop.f32.mrb[0].mxu0
      %v2982 = vpop.f32.mrb[0].mxu0
      %v2983 = vadd.f32 0.0, %v2982
      %v2984 = vpop.f32.mrb[0].mxu0
      %2985 = vdwg.mxu0
      %2986 = vrot.lane.b32.xlu0 %v1328, 96
      %v2987 = vpop.permute.xlu0 %2986
      %2988 = vrot.lane.b32.xlu0 %v1330, 96
      %v2989 = vpop.permute.xlu0 %2988
      %2990 = vrot.lane.b32.xlu0 %v1332, 96
      %v2991 = vpop.permute.xlu0 %2990
      %2992 = vrot.lane.b32.xlu0 %v1334, 96
      %v2993 = vpop.permute.xlu0 %2992
      %v2999 = vsel %vm2160, %v2869, 0
      %v3002 = vsel %vm2160, %v2870, 0
      %v3005 = vsel %vm2160, %v2871, 0
      %v3008 = vsel %vm2160, %v2872, 0
      %3010 = vmatprep.subr.bf16.mxu0 0
      %3011 = vmatpush1.bf16.msra.mxu0 %v2987
      %3012 = vmatprep.subr.bf16.mxu0 0
      %3013 = vmatpush1.bf16.msra.mxu0 %v2989
      %3014 = vmatprep.subr.bf16.mxu0 0
      %3015 = vmatpush1.bf16.msra.mxu0 %v2991
      %3016 = vmatprep.subr.bf16.mxu0 0
      %3017 = vmatpush1.bf16.msra.mxu0 %v2993
      %3018 = vmatprep.subr.bf16.mxu0 0
      %3019 = vmatpush1.bf16.msra.mxu0 0
      %3020 = vmatprep.subr.bf16.mxu0 0
      %3021 = vmatpush1.bf16.msra.mxu0 0
      %3022 = vmatprep.subr.bf16.mxu0 0
      %3023 = vmatpush1.bf16.msra.mxu0 0
      %3024 = vmatprep.subr.bf16.mxu0 0
      %3025 = vmatpush1.bf16.msra.mxu0 0
      %3026 = vmatprep.subr.bf16.mxu0 0
      %3027 = vmatpush1.bf16.msra.mxu0 0
      %3028 = vmatprep.subr.bf16.mxu0 0
      %3029 = vmatpush1.bf16.msra.mxu0 0
      %3030 = vmatprep.subr.bf16.mxu0 0
      %3031 = vmatpush1.bf16.msra.mxu0 0
      %3032 = vmatprep.subr.bf16.mxu0 0
      %3033 = vmatpush1.bf16.msra.mxu0 0
      %3034 = vmatprep.subr.bf16.mxu0 0
      %3035 = vmatpush1.bf16.msra.mxu0 0
      %3036 = vmatprep.subr.bf16.mxu0 0
      %3037 = vmatpush1.bf16.msra.mxu0 0
      %3038 = vmatprep.subr.bf16.mxu0 0
      %3039 = vmatpush1.bf16.msra.mxu0 0
      %3040 = vmatprep.subr.bf16.mxu0 0
      %3041 = vmatpush1.bf16.msra.mxu0 0
      %3042 = vmatprep.mubr.bf16.mxu0 0
      %3043 = vmatmul.mubr.bf16.gmra.mrb[0].mxu0 %v2999
      %v3044 = vpop.f32.mrb[0].mxu0
      %v3045 = vadd.f32 0.0, %v3044
      %v3046 = vpop.f32.mrb[0].mxu0
      %v3047 = vpop.f32.mrb[0].mxu0
      %v3048 = vadd.f32 0.0, %v3047
      %v3049 = vpop.f32.mrb[0].mxu0
      %3050 = vmatprep.mubr.bf16.mxu0 0
      %3051 = vmatmul.mubr.bf16.gmra.mrb[0].mxu0 %v3002
      %v3052 = vpop.f32.mrb[0].mxu0
      %v3053 = vadd.f32 0.0, %v3052
      %v3054 = vpop.f32.mrb[0].mxu0
      %v3055 = vpop.f32.mrb[0].mxu0
      %v3056 = vadd.f32 0.0, %v3055
      %v3057 = vpop.f32.mrb[0].mxu0
      %3058 = vmatprep.mubr.bf16.mxu0 0
      %3059 = vmatmul.mubr.bf16.gmra.mrb[0].mxu0 %v3005
      %v3060 = vpop.f32.mrb[0].mxu0
      %v3061 = vadd.f32 0.0, %v3060
      %v3062 = vpop.f32.mrb[0].mxu0
      %v3063 = vpop.f32.mrb[0].mxu0
      %v3064 = vadd.f32 0.0, %v3063
      %v3065 = vpop.f32.mrb[0].mxu0
      %3066 = vmatprep.mubr.bf16.mxu0 0
      %3067 = vmatmul.mubr.bf16.gmra.mrb[0].mxu0 %v3008
      %v3068 = vpop.f32.mrb[0].mxu0
      %v3069 = vadd.f32 0.0, %v3068
      %v3070 = vpop.f32.mrb[0].mxu0
      %v3071 = vpop.f32.mrb[0].mxu0
      %v3072 = vadd.f32 0.0, %v3071
      %v3073 = vpop.f32.mrb[0].mxu0
      %3074 = vdwg.mxu0
      %3075 = vrot.lane.b32.xlu0 %v1400, 96
      %v3076 = vpop.permute.xlu0 %3075
      %3077 = vrot.lane.b32.xlu0 %v1402, 96
      %v3078 = vpop.permute.xlu0 %3077
      %3079 = vrot.lane.b32.xlu0 %v1404, 96
      %v3080 = vpop.permute.xlu0 %3079
      %3081 = vrot.lane.b32.xlu0 %v1406, 96
      %v3082 = vpop.permute.xlu0 %3081
      %v3088 = vsel %vm2160, %v2873, 0
      %v3091 = vsel %vm2160, %v2874, 0
      %v3094 = vsel %vm2160, %v2875, 0
      %v3097 = vsel %vm2160, %v2876, 0
      %3099 = vmatprep.subr.bf16.mxu0 0
      %3100 = vmatpush1.bf16.msra.mxu0 %v3076
      %3101 = vmatprep.subr.bf16.mxu0 0
      %3102 = vmatpush1.bf16.msra.mxu0 %v3078
      %3103 = vmatprep.subr.bf16.mxu0 0
      %3104 = vmatpush1.bf16.msra.mxu0 %v3080
      %3105 = vmatprep.subr.bf16.mxu0 0
      %3106 = vmatpush1.bf16.msra.mxu0 %v3082
      %3107 = vmatprep.subr.bf16.mxu0 0
      %3108 = vmatpush1.bf16.msra.mxu0 0
      %3109 = vmatprep.subr.bf16.mxu0 0
      %3110 = vmatpush1.bf16.msra.mxu0 0
      %3111 = vmatprep.subr.bf16.mxu0 0
      %3112 = vmatpush1.bf16.msra.mxu0 0
      %3113 = vmatprep.subr.bf16.mxu0 0
      %3114 = vmatpush1.bf16.msra.mxu0 0
      %3115 = vmatprep.subr.bf16.mxu0 0
      %3116 = vmatpush1.bf16.msra.mxu0 0
      %3117 = vmatprep.subr.bf16.mxu0 0
      %3118 = vmatpush1.bf16.msra.mxu0 0
      %3119 = vmatprep.subr.bf16.mxu0 0
      %3120 = vmatpush1.bf16.msra.mxu0 0
      %3121 = vmatprep.subr.bf16.mxu0 0
      %3122 = vmatpush1.bf16.msra.mxu0 0
      %3123 = vmatprep.subr.bf16.mxu0 0
      %3124 = vmatpush1.bf16.msra.mxu0 0
      %3125 = vmatprep.subr.bf16.mxu0 0
      %3126 = vmatpush1.bf16.msra.mxu0 0
      %3127 = vmatprep.subr.bf16.mxu0 0
      %3128 = vmatpush1.bf16.msra.mxu0 0
      %3129 = vmatprep.subr.bf16.mxu0 0
      %3130 = vmatpush1.bf16.msra.mxu0 0
      %3131 = vmatprep.mubr.bf16.mxu0 0
      %3132 = vmatmul.mubr.bf16.gmra.mrb[0].mxu0 %v3088
      %v3133 = vpop.f32.mrb[0].mxu0
      %v3134 = vadd.f32 0.0, %v3133
      %v3135 = vpop.f32.mrb[0].mxu0
      %v3136 = vpop.f32.mrb[0].mxu0
      %v3137 = vadd.f32 0.0, %v3136
      %v3138 = vpop.f32.mrb[0].mxu0
      %3139 = vmatprep.mubr.bf16.mxu0 0
      %3140 = vmatmul.mubr.bf16.gmra.mrb[0].mxu0 %v3091
      %v3141 = vpop.f32.mrb[0].mxu0
      %v3142 = vadd.f32 0.0, %v3141
      %v3143 = vpop.f32.mrb[0].mxu0
      %v3144 = vpop.f32.mrb[0].mxu0
      %v3145 = vadd.f32 0.0, %v3144
      %v3146 = vpop.f32.mrb[0].mxu0
      %3147 = vmatprep.mubr.bf16.mxu0 0
      %3148 = vmatmul.mubr.bf16.gmra.mrb[0].mxu0 %v3094
      %v3149 = vpop.f32.mrb[0].mxu0
      %v3150 = vadd.f32 0.0, %v3149
      %v3151 = vpop.f32.mrb[0].mxu0
      %v3152 = vpop.f32.mrb[0].mxu0
      %v3153 = vadd.f32 0.0, %v3152
      %v3154 = vpop.f32.mrb[0].mxu0
      %3155 = vmatprep.mubr.bf16.mxu0 0
      %3156 = vmatmul.mubr.bf16.gmra.mrb[0].mxu0 %v3097
      %v3157 = vpop.f32.mrb[0].mxu0
      %v3158 = vadd.f32 0.0, %v3157
      %v3159 = vpop.f32.mrb[0].mxu0
      %v3160 = vpop.f32.mrb[0].mxu0
      %v3161 = vadd.f32 0.0, %v3160
      %v3162 = vpop.f32.mrb[0].mxu0
      %3163 = vdwg.mxu0
      %3164 = vrot.lane.b32.xlu0 %v1408, 96
      %v3165 = vpop.permute.xlu0 %3164
      %3166 = vrot.lane.b32.xlu0 %v1410, 96
      %v3167 = vpop.permute.xlu0 %3166
      %3168 = vrot.lane.b32.xlu0 %v1412, 96
      %v3169 = vpop.permute.xlu0 %3168
      %3170 = vrot.lane.b32.xlu0 %v1414, 96
      %v3171 = vpop.permute.xlu0 %3170
      %v3177 = vsel %vm2160, %v2877, 0
      %v3180 = vsel %vm2160, %v2878, 0
      %v3183 = vsel %vm2160, %v2879, 0
      %v3186 = vsel %vm2160, %v2880, 0
      %3188 = vmatprep.subr.bf16.mxu0 0
      %3189 = vmatpush1.bf16.msra.mxu0 %v3165
      %3190 = vmatprep.subr.bf16.mxu0 0
      %3191 = vmatpush1.bf16.msra.mxu0 %v3167
      %3192 = vmatprep.subr.bf16.mxu0 0
      %3193 = vmatpush1.bf16.msra.mxu0 %v3169
      %3194 = vmatprep.subr.bf16.mxu0 0
      %3195 = vmatpush1.bf16.msra.mxu0 %v3171
      %3196 = vmatprep.subr.bf16.mxu0 0
      %3197 = vmatpush1.bf16.msra.mxu0 0
      %3198 = vmatprep.subr.bf16.mxu0 0
      %3199 = vmatpush1.bf16.msra.mxu0 0
      %3200 = vmatprep.subr.bf16.mxu0 0
      %3201 = vmatpush1.bf16.msra.mxu0 0
      %3202 = vmatprep.subr.bf16.mxu0 0
      %3203 = vmatpush1.bf16.msra.mxu0 0
      %3204 = vmatprep.subr.bf16.mxu0 0
      %3205 = vmatpush1.bf16.msra.mxu0 0
      %3206 = vmatprep.subr.bf16.mxu0 0
      %3207 = vmatpush1.bf16.msra.mxu0 0
      %3208 = vmatprep.subr.bf16.mxu0 0
      %3209 = vmatpush1.bf16.msra.mxu0 0
      %3210 = vmatprep.subr.bf16.mxu0 0
      %3211 = vmatpush1.bf16.msra.mxu0 0
      %3212 = vmatprep.subr.bf16.mxu0 0
      %3213 = vmatpush1.bf16.msra.mxu0 0
      %3214 = vmatprep.subr.bf16.mxu0 0
      %3215 = vmatpush1.bf16.msra.mxu0 0
      %3216 = vmatprep.subr.bf16.mxu0 0
      %3217 = vmatpush1.bf16.msra.mxu0 0
      %3218 = vmatprep.subr.bf16.mxu0 0
      %3219 = vmatpush1.bf16.msra.mxu0 0
      %3220 = vmatprep.mubr.bf16.mxu0 0
      %3221 = vmatmul.mubr.bf16.gmra.mrb[0].mxu0 %v3177
      %v3222 = vpop.f32.mrb[0].mxu0
      %v3223 = vadd.f32 0.0, %v3222
      %v3224 = vpop.f32.mrb[0].mxu0
      %v3225 = vpop.f32.mrb[0].mxu0
      %v3226 = vadd.f32 0.0, %v3225
      %v3227 = vpop.f32.mrb[0].mxu0
      %3228 = vmatprep.mubr.bf16.mxu0 0
      %3229 = vmatmul.mubr.bf16.gmra.mrb[0].mxu0 %v3180
      %v3230 = vpop.f32.mrb[0].mxu0
      %v3231 = vadd.f32 0.0, %v3230
      %v3232 = vpop.f32.mrb[0].mxu0
      %v3233 = vpop.f32.mrb[0].mxu0
      %v3234 = vadd.f32 0.0, %v3233
      %v3235 = vpop.f32.mrb[0].mxu0
      %3236 = vmatprep.mubr.bf16.mxu0 0
      %3237 = vmatmul.mubr.bf16.gmra.mrb[0].mxu0 %v3183
      %v3238 = vpop.f32.mrb[0].mxu0
      %v3239 = vadd.f32 0.0, %v3238
      %v3240 = vpop.f32.mrb[0].mxu0
      %v3241 = vpop.f32.mrb[0].mxu0
      %v3242 = vadd.f32 0.0, %v3241
      %v3243 = vpop.f32.mrb[0].mxu0
      %3244 = vmatprep.mubr.bf16.mxu0 0
      %3245 = vmatmul.mubr.bf16.gmra.mrb[0].mxu0 %v3186
      %v3246 = vpop.f32.mrb[0].mxu0
      %v3247 = vadd.f32 0.0, %v3246
      %v3248 = vpop.f32.mrb[0].mxu0
      %v3249 = vpop.f32.mrb[0].mxu0
      %v3250 = vadd.f32 0.0, %v3249
      %v3251 = vpop.f32.mrb[0].mxu0
      %3252 = vdwg.mxu0
      %3253 = vrot.lane.b32.xlu0 %v1416, 96
      %v3254 = vpop.permute.xlu0 %3253
      %3255 = vrot.lane.b32.xlu0 %v1418, 96
      %v3256 = vpop.permute.xlu0 %3255
      %3257 = vrot.lane.b32.xlu0 %v1420, 96
      %v3258 = vpop.permute.xlu0 %3257
      %3259 = vrot.lane.b32.xlu0 %v1422, 96
      %v3260 = vpop.permute.xlu0 %3259
      %v3266 = vsel %vm2160, %v2881, 0
      %v3269 = vsel %vm2160, %v2882, 0
      %v3272 = vsel %vm2160, %v2883, 0
      %v3275 = vsel %vm2160, %v2884, 0
      %3277 = vmatprep.subr.bf16.mxu0 0
      %3278 = vmatpush1.bf16.msra.mxu0 %v3254
      %3279 = vmatprep.subr.bf16.mxu0 0
      %3280 = vmatpush1.bf16.msra.mxu0 %v3256
      %3281 = vmatprep.subr.bf16.mxu0 0
      %3282 = vmatpush1.bf16.msra.mxu0 %v3258
      %3283 = vmatprep.subr.bf16.mxu0 0
      %3284 = vmatpush1.bf16.msra.mxu0 %v3260
      %3285 = vmatprep.subr.bf16.mxu0 0
      %3286 = vmatpush1.bf16.msra.mxu0 0
      %3287 = vmatprep.subr.bf16.mxu0 0
      %3288 = vmatpush1.bf16.msra.mxu0 0
      %3289 = vmatprep.subr.bf16.mxu0 0
      %3290 = vmatpush1.bf16.msra.mxu0 0
      %3291 = vmatprep.subr.bf16.mxu0 0
      %3292 = vmatpush1.bf16.msra.mxu0 0
      %3293 = vmatprep.subr.bf16.mxu0 0
      %3294 = vmatpush1.bf16.msra.mxu0 0
      %3295 = vmatprep.subr.bf16.mxu0 0
      %3296 = vmatpush1.bf16.msra.mxu0 0
      %3297 = vmatprep.subr.bf16.mxu0 0
      %3298 = vmatpush1.bf16.msra.mxu0 0
      %3299 = vmatprep.subr.bf16.mxu0 0
      %3300 = vmatpush1.bf16.msra.mxu0 0
      %3301 = vmatprep.subr.bf16.mxu0 0
      %3302 = vmatpush1.bf16.msra.mxu0 0
      %3303 = vmatprep.subr.bf16.mxu0 0
      %3304 = vmatpush1.bf16.msra.mxu0 0
      %3305 = vmatprep.subr.bf16.mxu0 0
      %3306 = vmatpush1.bf16.msra.mxu0 0
      %3307 = vmatprep.subr.bf16.mxu0 0
      %3308 = vmatpush1.bf16.msra.mxu0 0
      %3309 = vmatprep.mubr.bf16.mxu0 0
      %3310 = vmatmul.mubr.bf16.gmra.mrb[0].mxu0 %v3266
      %v3311 = vpop.f32.mrb[0].mxu0
      %v3312 = vadd.f32 0.0, %v3311
      %v3313 = vpop.f32.mrb[0].mxu0
      %v3314 = vpop.f32.mrb[0].mxu0
      %v3315 = vadd.f32 0.0, %v3314
      %v3316 = vpop.f32.mrb[0].mxu0
      %3317 = vmatprep.mubr.bf16.mxu0 0
      %3318 = vmatmul.mubr.bf16.gmra.mrb[0].mxu0 %v3269
      %v3319 = vpop.f32.mrb[0].mxu0
      %v3320 = vadd.f32 0.0, %v3319
      %v3321 = vpop.f32.mrb[0].mxu0
      %v3322 = vpop.f32.mrb[0].mxu0
      %v3323 = vadd.f32 0.0, %v3322
      %v3324 = vpop.f32.mrb[0].mxu0
      %3325 = vmatprep.mubr.bf16.mxu0 0
      %3326 = vmatmul.mubr.bf16.gmra.mrb[0].mxu0 %v3272
      %v3327 = vpop.f32.mrb[0].mxu0
      %v3328 = vadd.f32 0.0, %v3327
      %v3329 = vpop.f32.mrb[0].mxu0
      %v3330 = vpop.f32.mrb[0].mxu0
      %v3331 = vadd.f32 0.0, %v3330
      %v3332 = vpop.f32.mrb[0].mxu0
      %3333 = vmatprep.mubr.bf16.mxu0 0
      %3334 = vmatmul.mubr.bf16.gmra.mrb[0].mxu0 %v3275
      %v3335 = vpop.f32.mrb[0].mxu0
      %v3336 = vadd.f32 0.0, %v3335
      %v3337 = vpop.f32.mrb[0].mxu0
      %v3338 = vpop.f32.mrb[0].mxu0
      %v3339 = vadd.f32 0.0, %v3338
      %v3340 = vpop.f32.mrb[0].mxu0
      %3341 = vdwg.mxu0
      %3342 = vrot.lane.b32.xlu0 %v1424, 96
      %v3343 = vpop.permute.xlu0 %3342
      %3344 = vrot.lane.b32.xlu0 %v1426, 96
      %v3345 = vpop.permute.xlu0 %3344
      %3346 = vrot.lane.b32.xlu0 %v1428, 96
      %v3347 = vpop.permute.xlu0 %3346
      %3348 = vrot.lane.b32.xlu0 %v1430, 96
      %v3349 = vpop.permute.xlu0 %3348
      %v3355 = vsel %vm2160, %v2885, 0
      %v3358 = vsel %vm2160, %v2886, 0
      %v3361 = vsel %vm2160, %v2887, 0
      %v3364 = vsel %vm2160, %v2888, 0
      %3366 = vmatprep.subr.bf16.mxu0 0
      %3367 = vmatpush1.bf16.msra.mxu0 %v3343
      %3368 = vmatprep.subr.bf16.mxu0 0
      %3369 = vmatpush1.bf16.msra.mxu0 %v3345
      %3370 = vmatprep.subr.bf16.mxu0 0
      %3371 = vmatpush1.bf16.msra.mxu0 %v3347
      %3372 = vmatprep.subr.bf16.mxu0 0
      %3373 = vmatpush1.bf16.msra.mxu0 %v3349
      %3374 = vmatprep.subr.bf16.mxu0 0
      %3375 = vmatpush1.bf16.msra.mxu0 0
      %3376 = vmatprep.subr.bf16.mxu0 0
      %3377 = vmatpush1.bf16.msra.mxu0 0
      %3378 = vmatprep.subr.bf16.mxu0 0
      %3379 = vmatpush1.bf16.msra.mxu0 0
      %3380 = vmatprep.subr.bf16.mxu0 0
      %3381 = vmatpush1.bf16.msra.mxu0 0
      %3382 = vmatprep.subr.bf16.mxu0 0
      %3383 = vmatpush1.bf16.msra.mxu0 0
      %3384 = vmatprep.subr.bf16.mxu0 0
      %3385 = vmatpush1.bf16.msra.mxu0 0
      %3386 = vmatprep.subr.bf16.mxu0 0
      %3387 = vmatpush1.bf16.msra.mxu0 0
      %3388 = vmatprep.subr.bf16.mxu0 0
      %3389 = vmatpush1.bf16.msra.mxu0 0
      %3390 = vmatprep.subr.bf16.mxu0 0
      %3391 = vmatpush1.bf16.msra.mxu0 0
      %3392 = vmatprep.subr.bf16.mxu0 0
      %3393 = vmatpush1.bf16.msra.mxu0 0
      %3394 = vmatprep.subr.bf16.mxu0 0
      %3395 = vmatpush1.bf16.msra.mxu0 0
      %3396 = vmatprep.subr.bf16.mxu0 0
      %3397 = vmatpush1.bf16.msra.mxu0 0
      %3398 = vmatprep.mubr.bf16.mxu0 0
      %3399 = vmatmul.mubr.bf16.gmra.mrb[0].mxu0 %v3355
      %v3400 = vpop.f32.mrb[0].mxu0
      %v3401 = vadd.f32 0.0, %v3400
      %v3402 = vpop.f32.mrb[0].mxu0
      %v3403 = vpop.f32.mrb[0].mxu0
      %v3404 = vadd.f32 0.0, %v3403
      %v3405 = vpop.f32.mrb[0].mxu0
      %3406 = vmatprep.mubr.bf16.mxu0 0
      %3407 = vmatmul.mubr.bf16.gmra.mrb[0].mxu0 %v3358
      %v3408 = vpop.f32.mrb[0].mxu0
      %v3409 = vadd.f32 0.0, %v3408
      %v3410 = vpop.f32.mrb[0].mxu0
      %v3411 = vpop.f32.mrb[0].mxu0
      %v3412 = vadd.f32 0.0, %v3411
      %v3413 = vpop.f32.mrb[0].mxu0
      %3414 = vmatprep.mubr.bf16.mxu0 0
      %3415 = vmatmul.mubr.bf16.gmra.mrb[0].mxu0 %v3361
      %v3416 = vpop.f32.mrb[0].mxu0
      %v3417 = vadd.f32 0.0, %v3416
      %v3418 = vpop.f32.mrb[0].mxu0
      %v3419 = vpop.f32.mrb[0].mxu0
      %v3420 = vadd.f32 0.0, %v3419
      %v3421 = vpop.f32.mrb[0].mxu0
      %3422 = vmatprep.mubr.bf16.mxu0 0
      %3423 = vmatmul.mubr.bf16.gmra.mrb[0].mxu0 %v3364
      %v3424 = vpop.f32.mrb[0].mxu0
      %v3425 = vadd.f32 0.0, %v3424
      %v3426 = vpop.f32.mrb[0].mxu0
      %v3427 = vpop.f32.mrb[0].mxu0
      %v3428 = vadd.f32 0.0, %v3427
      %v3429 = vpop.f32.mrb[0].mxu0
      %3430 = vdwg.mxu0
      %3431 = vrot.lane.b32.xlu0 %v1432, 96
      %v3432 = vpop.permute.xlu0 %3431
      %3433 = vrot.lane.b32.xlu0 %v1434, 96
      %v3434 = vpop.permute.xlu0 %3433
      %3435 = vrot.lane.b32.xlu0 %v1436, 96
      %v3436 = vpop.permute.xlu0 %3435
      %3437 = vrot.lane.b32.xlu0 %v1438, 96
      %v3438 = vpop.permute.xlu0 %3437
      %v3444 = vsel %vm2160, %v2889, 0
      %v3447 = vsel %vm2160, %v2890, 0
      %v3450 = vsel %vm2160, %v2891, 0
      %v3453 = vsel %vm2160, %v2892, 0
      %3455 = vmatprep.subr.bf16.mxu0 0
      %3456 = vmatpush1.bf16.msra.mxu0 %v3432
      %3457 = vmatprep.subr.bf16.mxu0 0
      %3458 = vmatpush1.bf16.msra.mxu0 %v3434
      %3459 = vmatprep.subr.bf16.mxu0 0
      %3460 = vmatpush1.bf16.msra.mxu0 %v3436
      %3461 = vmatprep.subr.bf16.mxu0 0
      %3462 = vmatpush1.bf16.msra.mxu0 %v3438
      %3463 = vmatprep.subr.bf16.mxu0 0
      %3464 = vmatpush1.bf16.msra.mxu0 0
      %3465 = vmatprep.subr.bf16.mxu0 0
      %3466 = vmatpush1.bf16.msra.mxu0 0
      %3467 = vmatprep.subr.bf16.mxu0 0
      %3468 = vmatpush1.bf16.msra.mxu0 0
      %3469 = vmatprep.subr.bf16.mxu0 0
      %3470 = vmatpush1.bf16.msra.mxu0 0
      %3471 = vmatprep.subr.bf16.mxu0 0
      %3472 = vmatpush1.bf16.msra.mxu0 0
      %3473 = vmatprep.subr.bf16.mxu0 0
      %3474 = vmatpush1.bf16.msra.mxu0 0
      %3475 = vmatprep.subr.bf16.mxu0 0
      %3476 = vmatpush1.bf16.msra.mxu0 0
      %3477 = vmatprep.subr.bf16.mxu0 0
      %3478 = vmatpush1.bf16.msra.mxu0 0
      %3479 = vmatprep.subr.bf16.mxu0 0
      %3480 = vmatpush1.bf16.msra.mxu0 0
      %3481 = vmatprep.subr.bf16.mxu0 0
      %3482 = vmatpush1.bf16.msra.mxu0 0
      %3483 = vmatprep.subr.bf16.mxu0 0
      %3484 = vmatpush1.bf16.msra.mxu0 0
      %3485 = vmatprep.subr.bf16.mxu0 0
      %3486 = vmatpush1.bf16.msra.mxu0 0
      %3487 = vmatprep.mubr.bf16.mxu0 0
      %3488 = vmatmul.mubr.bf16.gmra.mrb[0].mxu0 %v3444
      %v3489 = vpop.f32.mrb[0].mxu0
      %v3490 = vadd.f32 0.0, %v3489
      %v3491 = vpop.f32.mrb[0].mxu0
      %v3492 = vpop.f32.mrb[0].mxu0
      %v3493 = vadd.f32 0.0, %v3492
      %v3494 = vpop.f32.mrb[0].mxu0
      %3495 = vmatprep.mubr.bf16.mxu0 0
      %3496 = vmatmul.mubr.bf16.gmra.mrb[0].mxu0 %v3447
      %v3497 = vpop.f32.mrb[0].mxu0
      %v3498 = vadd.f32 0.0, %v3497
      %v3499 = vpop.f32.mrb[0].mxu0
      %v3500 = vpop.f32.mrb[0].mxu0
      %v3501 = vadd.f32 0.0, %v3500
      %v3502 = vpop.f32.mrb[0].mxu0
      %3503 = vmatprep.mubr.bf16.mxu0 0
      %3504 = vmatmul.mubr.bf16.gmra.mrb[0].mxu0 %v3450
      %v3505 = vpop.f32.mrb[0].mxu0
      %v3506 = vadd.f32 0.0, %v3505
      %v3507 = vpop.f32.mrb[0].mxu0
      %v3508 = vpop.f32.mrb[0].mxu0
      %v3509 = vadd.f32 0.0, %v3508
      %v3510 = vpop.f32.mrb[0].mxu0
      %3511 = vmatprep.mubr.bf16.mxu0 0
      %3512 = vmatmul.mubr.bf16.gmra.mrb[0].mxu0 %v3453
      %v3513 = vpop.f32.mrb[0].mxu0
      %v3514 = vadd.f32 0.0, %v3513
      %v3515 = vpop.f32.mrb[0].mxu0
      %v3516 = vpop.f32.mrb[0].mxu0
      %v3517 = vadd.f32 0.0, %v3516
      %v3518 = vpop.f32.mrb[0].mxu0
      %3519 = vdwg.mxu0
      %3520 = vrot.lane.b32.xlu0 %v1440, 96
      %v3521 = vpop.permute.xlu0 %3520
      %3522 = vrot.lane.b32.xlu0 %v1442, 96
      %v3523 = vpop.permute.xlu0 %3522
      %3524 = vrot.lane.b32.xlu0 %v1444, 96
      %v3525 = vpop.permute.xlu0 %3524
      %3526 = vrot.lane.b32.xlu0 %v1446, 96
      %v3527 = vpop.permute.xlu0 %3526
      %v3533 = vsel %vm2160, %v2893, 0
      %v3536 = vsel %vm2160, %v2894, 0
      %v3539 = vsel %vm2160, %v2895, 0
      %v3542 = vsel %vm2160, %v2896, 0
      %3544 = vmatprep.subr.bf16.mxu0 0
      %3545 = vmatpush1.bf16.msra.mxu0 %v3521
      %3546 = vmatprep.subr.bf16.mxu0 0
      %3547 = vmatpush1.bf16.msra.mxu0 %v3523
      %3548 = vmatprep.subr.bf16.mxu0 0
      %3549 = vmatpush1.bf16.msra.mxu0 %v3525
      %3550 = vmatprep.subr.bf16.mxu0 0
      %3551 = vmatpush1.bf16.msra.mxu0 %v3527
      %3552 = vmatprep.subr.bf16.mxu0 0
      %3553 = vmatpush1.bf16.msra.mxu0 0
      %3554 = vmatprep.subr.bf16.mxu0 0
      %3555 = vmatpush1.bf16.msra.mxu0 0
      %3556 = vmatprep.subr.bf16.mxu0 0
      %3557 = vmatpush1.bf16.msra.mxu0 0
      %3558 = vmatprep.subr.bf16.mxu0 0
      %3559 = vmatpush1.bf16.msra.mxu0 0
      %3560 = vmatprep.subr.bf16.mxu0 0
      %3561 = vmatpush1.bf16.msra.mxu0 0
      %3562 = vmatprep.subr.bf16.mxu0 0
      %3563 = vmatpush1.bf16.msra.mxu0 0
      %3564 = vmatprep.subr.bf16.mxu0 0
      %3565 = vmatpush1.bf16.msra.mxu0 0
      %3566 = vmatprep.subr.bf16.mxu0 0
      %3567 = vmatpush1.bf16.msra.mxu0 0
      %3568 = vmatprep.subr.bf16.mxu0 0
      %3569 = vmatpush1.bf16.msra.mxu0 0
      %3570 = vmatprep.subr.bf16.mxu0 0
      %3571 = vmatpush1.bf16.msra.mxu0 0
      %3572 = vmatprep.subr.bf16.mxu0 0
      %3573 = vmatpush1.bf16.msra.mxu0 0
      %3574 = vmatprep.subr.bf16.mxu0 0
      %3575 = vmatpush1.bf16.msra.mxu0 0
      %3576 = vmatprep.mubr.bf16.mxu0 0
      %3577 = vmatmul.mubr.bf16.gmra.mrb[0].mxu0 %v3533
      %v3578 = vpop.f32.mrb[0].mxu0
      %v3579 = vadd.f32 0.0, %v3578
      %v3580 = vpop.f32.mrb[0].mxu0
      %v3581 = vpop.f32.mrb[0].mxu0
      %v3582 = vadd.f32 0.0, %v3581
      %v3583 = vpop.f32.mrb[0].mxu0
      %3584 = vmatprep.mubr.bf16.mxu0 0
      %3585 = vmatmul.mubr.bf16.gmra.mrb[0].mxu0 %v3536
      %v3586 = vpop.f32.mrb[0].mxu0
      %v3587 = vadd.f32 0.0, %v3586
      %v3588 = vpop.f32.mrb[0].mxu0
      %v3589 = vpop.f32.mrb[0].mxu0
      %v3590 = vadd.f32 0.0, %v3589
      %v3591 = vpop.f32.mrb[0].mxu0
      %3592 = vmatprep.mubr.bf16.mxu0 0
      %3593 = vmatmul.mubr.bf16.gmra.mrb[0].mxu0 %v3539
      %v3594 = vpop.f32.mrb[0].mxu0
      %v3595 = vadd.f32 0.0, %v3594
      %v3596 = vpop.f32.mrb[0].mxu0
      %v3597 = vpop.f32.mrb[0].mxu0
      %v3598 = vadd.f32 0.0, %v3597
      %v3599 = vpop.f32.mrb[0].mxu0
      %3600 = vmatprep.mubr.bf16.mxu0 0
      %3601 = vmatmul.mubr.bf16.gmra.mrb[0].mxu0 %v3542
      %v3602 = vpop.f32.mrb[0].mxu0
      %v3603 = vadd.f32 0.0, %v3602
      %v3604 = vpop.f32.mrb[0].mxu0
      %v3605 = vpop.f32.mrb[0].mxu0
      %v3606 = vadd.f32 0.0, %v3605
      %v3607 = vpop.f32.mrb[0].mxu0
      %3608 = vdwg.mxu0
      %3625 = vrot.lane.b32.xlu0 %v3134, 16
      %v3626 = vpop.permute.xlu0 %3625
      %3627 = vrot.lane.b32.xlu0 %v3137, 16
      %v3628 = vpop.permute.xlu0 %3627
      %3629 = vrot.lane.b32.xlu0 %v3142, 16
      %v3630 = vpop.permute.xlu0 %3629
      %3631 = vrot.lane.b32.xlu0 %v3145, 16
      %v3632 = vpop.permute.xlu0 %3631
      %3633 = vrot.lane.b32.xlu0 %v3150, 16
      %v3634 = vpop.permute.xlu0 %3633
      %3635 = vrot.lane.b32.xlu0 %v3153, 16
      %v3636 = vpop.permute.xlu0 %3635
      %3637 = vrot.lane.b32.xlu0 %v3158, 16
      %v3638 = vpop.permute.xlu0 %3637
      %3639 = vrot.lane.b32.xlu0 %v3161, 16
      %v3640 = vpop.permute.xlu0 %3639
      %3641 = vrot.lane.b32.xlu0 %v3223, 16
      %v3642 = vpop.permute.xlu0 %3641
      %3643 = vrot.lane.b32.xlu0 %v3226, 16
      %v3644 = vpop.permute.xlu0 %3643
      %3645 = vrot.lane.b32.xlu0 %v3231, 16
      %v3646 = vpop.permute.xlu0 %3645
      %3647 = vrot.lane.b32.xlu0 %v3234, 16
      %v3648 = vpop.permute.xlu0 %3647
      %3649 = vrot.lane.b32.xlu0 %v3239, 16
      %v3650 = vpop.permute.xlu0 %3649
      %3651 = vrot.lane.b32.xlu0 %v3242, 16
      %v3652 = vpop.permute.xlu0 %3651
      %3653 = vrot.lane.b32.xlu0 %v3247, 16
      %v3654 = vpop.permute.xlu0 %3653
      %3655 = vrot.lane.b32.xlu0 %v3250, 16
      %v3656 = vpop.permute.xlu0 %3655
      %3689 = vrot.lane.b32.xlu0 %v3312, 32
      %v3690 = vpop.permute.xlu0 %3689
      %3691 = vrot.lane.b32.xlu0 %v3315, 32
      %v3692 = vpop.permute.xlu0 %3691
      %3693 = vrot.lane.b32.xlu0 %v3320, 32
      %v3694 = vpop.permute.xlu0 %3693
      %3695 = vrot.lane.b32.xlu0 %v3323, 32
      %v3696 = vpop.permute.xlu0 %3695
      %3697 = vrot.lane.b32.xlu0 %v3328, 32
      %v3698 = vpop.permute.xlu0 %3697
      %3699 = vrot.lane.b32.xlu0 %v3331, 32
      %v3700 = vpop.permute.xlu0 %3699
      %3701 = vrot.lane.b32.xlu0 %v3336, 32
      %v3702 = vpop.permute.xlu0 %3701
      %3703 = vrot.lane.b32.xlu0 %v3339, 32
      %v3704 = vpop.permute.xlu0 %3703
      %3705 = vrot.lane.b32.xlu0 %v3401, 32
      %v3706 = vpop.permute.xlu0 %3705
      %3707 = vrot.lane.b32.xlu0 %v3404, 32
      %v3708 = vpop.permute.xlu0 %3707
      %3709 = vrot.lane.b32.xlu0 %v3409, 32
      %v3710 = vpop.permute.xlu0 %3709
      %3711 = vrot.lane.b32.xlu0 %v3412, 32
      %v3712 = vpop.permute.xlu0 %3711
      %3713 = vrot.lane.b32.xlu0 %v3417, 32
      %v3714 = vpop.permute.xlu0 %3713
      %3715 = vrot.lane.b32.xlu0 %v3420, 32
      %v3716 = vpop.permute.xlu0 %3715
      %3717 = vrot.lane.b32.xlu0 %v3425, 32
      %v3718 = vpop.permute.xlu0 %3717
      %3719 = vrot.lane.b32.xlu0 %v3428, 32
      %v3720 = vpop.permute.xlu0 %3719
      %3753 = vrot.lane.b32.xlu0 %v3490, 48
      %v3754 = vpop.permute.xlu0 %3753
      %3755 = vrot.lane.b32.xlu0 %v3493, 48
      %v3756 = vpop.permute.xlu0 %3755
      %3757 = vrot.lane.b32.xlu0 %v3498, 48
      %v3758 = vpop.permute.xlu0 %3757
      %3759 = vrot.lane.b32.xlu0 %v3501, 48
      %v3760 = vpop.permute.xlu0 %3759
      %3761 = vrot.lane.b32.xlu0 %v3506, 48
      %v3762 = vpop.permute.xlu0 %3761
      %3763 = vrot.lane.b32.xlu0 %v3509, 48
      %v3764 = vpop.permute.xlu0 %3763
      %3765 = vrot.lane.b32.xlu0 %v3514, 48
      %v3766 = vpop.permute.xlu0 %3765
      %3767 = vrot.lane.b32.xlu0 %v3517, 48
      %v3768 = vpop.permute.xlu0 %3767
      %3769 = vrot.lane.b32.xlu0 %v3579, 48
      %v3770 = vpop.permute.xlu0 %3769
      %3771 = vrot.lane.b32.xlu0 %v3582, 48
      %v3772 = vpop.permute.xlu0 %3771
      %3773 = vrot.lane.b32.xlu0 %v3587, 48
      %v3774 = vpop.permute.xlu0 %3773
      %3775 = vrot.lane.b32.xlu0 %v3590, 48
      %v3776 = vpop.permute.xlu0 %3775
      %3777 = vrot.lane.b32.xlu0 %v3595, 48
      %v3778 = vpop.permute.xlu0 %3777
      %3779 = vrot.lane.b32.xlu0 %v3598, 48
      %v3780 = vpop.permute.xlu0 %3779
      %3781 = vrot.lane.b32.xlu0 %v3603, 48
      %v3782 = vpop.permute.xlu0 %3781
      %3783 = vrot.lane.b32.xlu0 %v3606, 48
      %v3784 = vpop.permute.xlu0 %3783
      %v3801 = vsel %vm1447, %v2956, %v3626
      %v3802 = vsel %vm1447, %v2959, %v3628
      %v3803 = vsel %vm1447, %v2964, %v3630
      %v3804 = vsel %vm1447, %v2967, %v3632
      %v3805 = vsel %vm1447, %v2972, %v3634
      %v3806 = vsel %vm1447, %v2975, %v3636
      %v3807 = vsel %vm1447, %v2980, %v3638
      %v3808 = vsel %vm1447, %v2983, %v3640
      %v3809 = vsel %vm1447, %v3045, %v3642
      %v3810 = vsel %vm1447, %v3048, %v3644
      %v3811 = vsel %vm1447, %v3053, %v3646
      %v3812 = vsel %vm1447, %v3056, %v3648
      %v3813 = vsel %vm1447, %v3061, %v3650
      %v3814 = vsel %vm1447, %v3064, %v3652
      %v3815 = vsel %vm1447, %v3069, %v3654
      %v3816 = vsel %vm1447, %v3072, %v3656
      %vm3817 = vcmask 261120
      %v3818 = vsel %vm3817, %v3801, %v3690
      %v3819 = vsel %vm3817, %v3802, %v3692
      %v3820 = vsel %vm3817, %v3803, %v3694
      %v3821 = vsel %vm3817, %v3804, %v3696
      %v3822 = vsel %vm3817, %v3805, %v3698
      %v3823 = vsel %vm3817, %v3806, %v3700
      %v3824 = vsel %vm3817, %v3807, %v3702
      %v3825 = vsel %vm3817, %v3808, %v3704
      %v3826 = vsel %vm3817, %v3809, %v3706
      %v3827 = vsel %vm3817, %v3810, %v3708
      %v3828 = vsel %vm3817, %v3811, %v3710
      %v3829 = vsel %vm3817, %v3812, %v3712
      %v3830 = vsel %vm3817, %v3813, %v3714
      %v3831 = vsel %vm3817, %v3814, %v3716
      %v3832 = vsel %vm3817, %v3815, %v3718
      %v3833 = vsel %vm3817, %v3816, %v3720
      %vm3834 = vcmask 392192
      %v3835 = vsel %vm3834, %v3818, %v3754
      %v3836 = vsel %vm3834, %v3819, %v3756
      %v3837 = vsel %vm3834, %v3820, %v3758
      %v3838 = vsel %vm3834, %v3821, %v3760
      %v3839 = vsel %vm3834, %v3822, %v3762
      %v3840 = vsel %vm3834, %v3823, %v3764
      %v3841 = vsel %vm3834, %v3824, %v3766
      %v3842 = vsel %vm3834, %v3825, %v3768
      %v3843 = vsel %vm3834, %v3826, %v3770
      %v3844 = vsel %vm3834, %v3827, %v3772
      %v3845 = vsel %vm3834, %v3828, %v3774
      %v3846 = vsel %vm3834, %v3829, %v3776
      %v3847 = vsel %vm3834, %v3830, %v3778
      %v3848 = vsel %vm3834, %v3831, %v3780
      %v3849 = vsel %vm3834, %v3832, %v3782
      %v3850 = vsel %vm3834, %v3833, %v3784
      %v3851 = vpack.c.bf16 %v3836, %v3835
      %v3852 = vpack.c.bf16 %v3838, %v3837
      %v3853 = vpack.c.bf16 %v3840, %v3839
      %v3854 = vpack.c.bf16 %v3842, %v3841
      %v3855 = vpack.c.bf16 %v3844, %v3843
      %v3856 = vpack.c.bf16 %v3846, %v3845
      %v3857 = vpack.c.bf16 %v3848, %v3847
      %v3858 = vpack.c.bf16 %v3850, %v3849
      %v3859 = vld [vmem:[%s631] sm:$0xf]
      %v3860 = vld [vmem:[%s631 + $0x4] sm:$0xf]
      %v3861 = vld [vmem:[%s631 + $0x8] sm:$0xf]
      %v3862 = vld [vmem:[%s631 + $0xc] sm:$0xf]
      %v3863 = vld [vmem:[%s631 + $0x10] sm:$0xf]
      %v3864 = vld [vmem:[%s631 + $0x14] sm:$0xf]
      %v3865 = vld [vmem:[%s631 + $0x18] sm:$0xf]
      %v3866 = vld [vmem:[%s631 + $0x1c] sm:$0xf]
      %v3867 = vld [vmem:[%s634] sm:$0x1]
      %v3869 = vlaneseq
      %v3870 = vshrl.u32 %v3869, 7
      %v3871 = vsub.s32 0, %v3870
      %v3872 = vrot.slane %v3867, %v3871
      %v3882 = vunpack.c.l.b16 %v3859
      %v3883 = vunpack.c.l.b16 %v3860
      %v3884 = vunpack.c.l.b16 %v3861
      %v3885 = vunpack.c.l.b16 %v3862
      %v3886 = vunpack.c.l.b16 %v3863
      %v3887 = vunpack.c.l.b16 %v3864
      %v3888 = vunpack.c.l.b16 %v3865
      %v3889 = vunpack.c.l.b16 %v3866
      %v3890 = vpack.c.b16 %v3883, %v3882
      %v3891 = vpack.c.b16 %v3885, %v3884
      %v3892 = vpack.c.b16 %v3887, %v3886
      %v3893 = vpack.c.b16 %v3889, %v3888
      %v3899 = vsel %vm2160, %v3851, 0
      %v3902 = vsel %vm2160, %v3852, 0
      %v3905 = vsel %vm2160, %v3853, 0
      %v3908 = vsel %vm2160, %v3854, 0
      %v3911 = vsel %vm2160, %v3855, 0
      %v3914 = vsel %vm2160, %v3856, 0
      %v3917 = vsel %vm2160, %v3857, 0
      %v3920 = vsel %vm2160, %v3858, 0
      %3922 = vmatprep.subr.bf16.mxu0 0
      %3923 = vmatpush1.bf16.msra.mxu0 %v3890
      %3924 = vmatprep.subr.bf16.mxu0 0
      %3925 = vmatpush1.bf16.msra.mxu0 %v3891
      %3926 = vmatprep.subr.bf16.mxu0 0
      %3927 = vmatpush1.bf16.msra.mxu0 %v3892
      %3928 = vmatprep.subr.bf16.mxu0 0
      %3929 = vmatpush1.bf16.msra.mxu0 %v3893
      %3930 = vmatprep.subr.bf16.mxu0 0
      %3931 = vmatpush1.bf16.msra.mxu0 0
      %3932 = vmatprep.subr.bf16.mxu0 0
      %3933 = vmatpush1.bf16.msra.mxu0 0
      %3934 = vmatprep.subr.bf16.mxu0 0
      %3935 = vmatpush1.bf16.msra.mxu0 0
      %3936 = vmatprep.subr.bf16.mxu0 0
      %3937 = vmatpush1.bf16.msra.mxu0 0
      %3938 = vmatprep.subr.bf16.mxu0 0
      %3939 = vmatpush1.bf16.msra.mxu0 0
      %3940 = vmatprep.subr.bf16.mxu0 0
      %3941 = vmatpush1.bf16.msra.mxu0 0
      %3942 = vmatprep.subr.bf16.mxu0 0
      %3943 = vmatpush1.bf16.msra.mxu0 0
      %3944 = vmatprep.subr.bf16.mxu0 0
      %3945 = vmatpush1.bf16.msra.mxu0 0
      %3946 = vmatprep.subr.bf16.mxu0 0
      %3947 = vmatpush1.bf16.msra.mxu0 0
      %3948 = vmatprep.subr.bf16.mxu0 0
      %3949 = vmatpush1.bf16.msra.mxu0 0
      %3950 = vmatprep.subr.bf16.mxu0 0
      %3951 = vmatpush1.bf16.msra.mxu0 0
      %3952 = vmatprep.subr.bf16.mxu0 0
      %3953 = vmatpush1.bf16.msra.mxu0 0
      %3954 = vmatprep.mubr.bf16.mxu0 0
      %3955 = vmatmul.mubr.bf16.gmra.mrb[0].mxu0 %v3899
      %v3956 = vpop.f32.mrb[0].mxu0
      %v3957 = vadd.f32 %v3872, %v3956
      %v3958 = vpop.f32.mrb[0].mxu0
      %v3959 = vpop.f32.mrb[0].mxu0
      %v3960 = vadd.f32 %v3872, %v3959
      %v3961 = vpop.f32.mrb[0].mxu0
      %3962 = vmatprep.mubr.bf16.mxu0 0
      %3963 = vmatmul.mubr.bf16.gmra.mrb[0].mxu0 %v3902
      %v3964 = vpop.f32.mrb[0].mxu0
      %v3965 = vadd.f32 %v3872, %v3964
      %v3966 = vpop.f32.mrb[0].mxu0
      %v3967 = vpop.f32.mrb[0].mxu0
      %v3968 = vadd.f32 %v3872, %v3967
      %v3969 = vpop.f32.mrb[0].mxu0
      %3970 = vmatprep.mubr.bf16.mxu0 0
      %3971 = vmatmul.mubr.bf16.gmra.mrb[0].mxu0 %v3905
      %v3972 = vpop.f32.mrb[0].mxu0
      %v3973 = vadd.f32 %v3872, %v3972
      %v3974 = vpop.f32.mrb[0].mxu0
      %v3975 = vpop.f32.mrb[0].mxu0
      %v3976 = vadd.f32 %v3872, %v3975
      %v3977 = vpop.f32.mrb[0].mxu0
      %3978 = vmatprep.mubr.bf16.mxu0 0
      %3979 = vmatmul.mubr.bf16.gmra.mrb[0].mxu0 %v3908
      %v3980 = vpop.f32.mrb[0].mxu0
      %v3981 = vadd.f32 %v3872, %v3980
      %v3982 = vpop.f32.mrb[0].mxu0
      %v3983 = vpop.f32.mrb[0].mxu0
      %v3984 = vadd.f32 %v3872, %v3983
      %v3985 = vpop.f32.mrb[0].mxu0
      %3986 = vmatprep.mubr.bf16.mxu0 0
      %3987 = vmatmul.mubr.bf16.gmra.mrb[0].mxu0 %v3911
      %v3988 = vpop.f32.mrb[0].mxu0
      %v3989 = vadd.f32 %v3872, %v3988
      %v3990 = vpop.f32.mrb[0].mxu0
      %v3991 = vpop.f32.mrb[0].mxu0
      %v3992 = vadd.f32 %v3872, %v3991
      %v3993 = vpop.f32.mrb[0].mxu0
      %3994 = vmatprep.mubr.bf16.mxu0 0
      %3995 = vmatmul.mubr.bf16.gmra.mrb[0].mxu0 %v3914
      %v3996 = vpop.f32.mrb[0].mxu0
      %v3997 = vadd.f32 %v3872, %v3996
      %v3998 = vpop.f32.mrb[0].mxu0
      %v3999 = vpop.f32.mrb[0].mxu0
      %v4000 = vadd.f32 %v3872, %v3999
      %v4001 = vpop.f32.mrb[0].mxu0
      %4002 = vmatprep.mubr.bf16.mxu0 0
      %4003 = vmatmul.mubr.bf16.gmra.mrb[0].mxu0 %v3917
      %v4004 = vpop.f32.mrb[0].mxu0
      %v4005 = vadd.f32 %v3872, %v4004
      %v4006 = vpop.f32.mrb[0].mxu0
      %v4007 = vpop.f32.mrb[0].mxu0
      %v4008 = vadd.f32 %v3872, %v4007
      %v4009 = vpop.f32.mrb[0].mxu0
      %4010 = vmatprep.mubr.bf16.mxu0 0
      %4011 = vmatmul.mubr.bf16.gmra.mrb[0].mxu0 %v3920
      %v4012 = vpop.f32.mrb[0].mxu0
      %v4013 = vadd.f32 %v3872, %v4012
      %v4014 = vpop.f32.mrb[0].mxu0
      %v4015 = vpop.f32.mrb[0].mxu0
      %v4016 = vadd.f32 %v3872, %v4015
      %v4017 = vpop.f32.mrb[0].mxu0
      %4018 = vdwg.mxu0
      %v4019 = vadd.f32 %v3957, %v1086
      %v4020 = vadd.f32 %v3960, %v1087
      %v4021 = vadd.f32 %v3965, %v1088
      %v4022 = vadd.f32 %v3968, %v1089
      %v4023 = vadd.f32 %v3973, %v1090
      %v4024 = vadd.f32 %v3976, %v1091
      %v4025 = vadd.f32 %v3981, %v1092
      %v4026 = vadd.f32 %v3984, %v1093
      %v4027 = vadd.f32 %v3989, %v1094
      %v4028 = vadd.f32 %v3992, %v1095
      %v4029 = vadd.f32 %v3997, %v1096
      %v4030 = vadd.f32 %v4000, %v1097
      %v4031 = vadd.f32 %v4005, %v1098
      %v4032 = vadd.f32 %v4008, %v1099
      %v4033 = vadd.f32 %v4013, %v1100
      %v4034 = vadd.f32 %v4016, %v1101
      %v4035 = vld [vmem:[%s637] sm:$0x1]
      %v4036 = vld [vmem:[%s640] sm:$0x1]
      %v4037 = vsel %vm719, %v4019, 0.0
      %v4038 = vsel %vm719, %v4020, 0.0
      %v4039 = vsel %vm719, %v4021, 0.0
      %v4040 = vsel %vm719, %v4022, 0.0
      %v4041 = vsel %vm719, %v4023, 0.0
      %v4042 = vsel %vm719, %v4024, 0.0
      %v4043 = vsel %vm719, %v4025, 0.0
      %v4044 = vsel %vm719, %v4026, 0.0
      %v4045 = vsel %vm719, %v4027, 0.0
      %v4046 = vsel %vm719, %v4028, 0.0
      %v4047 = vsel %vm719, %v4029, 0.0
      %v4048 = vsel %vm719, %v4030, 0.0
      %v4049 = vsel %vm719, %v4031, 0.0
      %v4050 = vsel %vm719, %v4032, 0.0
      %v4051 = vsel %vm719, %v4033, 0.0
      %v4052 = vsel %vm719, %v4034, 0.0
      %4053 = vadd.xlane.f32.xlu0 %v4037
      %v4054 = vpop.xlane.xlu0 %4053
      %4055 = vadd.xlane.f32.xlu0 %v4038
      %v4056 = vpop.xlane.xlu0 %4055
      %4057 = vadd.xlane.f32.xlu0 %v4039
      %v4058 = vpop.xlane.xlu0 %4057
      %4059 = vadd.xlane.f32.xlu0 %v4040
      %v4060 = vpop.xlane.xlu0 %4059
      %4061 = vadd.xlane.f32.xlu0 %v4041
      %v4062 = vpop.xlane.xlu0 %4061
      %4063 = vadd.xlane.f32.xlu0 %v4042
      %v4064 = vpop.xlane.xlu0 %4063
      %4065 = vadd.xlane.f32.xlu0 %v4043
      %v4066 = vpop.xlane.xlu0 %4065
      %4067 = vadd.xlane.f32.xlu0 %v4044
      %v4068 = vpop.xlane.xlu0 %4067
      %4069 = vadd.xlane.f32.xlu0 %v4045
      %v4070 = vpop.xlane.xlu0 %4069
      %4071 = vadd.xlane.f32.xlu0 %v4046
      %v4072 = vpop.xlane.xlu0 %4071
      %4073 = vadd.xlane.f32.xlu0 %v4047
      %v4074 = vpop.xlane.xlu0 %4073
      %4075 = vadd.xlane.f32.xlu0 %v4048
      %v4076 = vpop.xlane.xlu0 %4075
      %4077 = vadd.xlane.f32.xlu0 %v4049
      %v4078 = vpop.xlane.xlu0 %4077
      %4079 = vadd.xlane.f32.xlu0 %v4050
      %v4080 = vpop.xlane.xlu0 %4079
      %4081 = vadd.xlane.f32.xlu0 %v4051
      %v4082 = vpop.xlane.xlu0 %4081
      %4083 = vadd.xlane.f32.xlu0 %v4052
      %v4084 = vpop.xlane.xlu0 %4083
      %v4085 = vsel %vm719, 0.0, %v4019
      %v4086 = vsel %vm719, 0.0, %v4020
      %v4087 = vsel %vm719, 0.0, %v4021
      %v4088 = vsel %vm719, 0.0, %v4022
      %v4089 = vsel %vm719, 0.0, %v4023
      %v4090 = vsel %vm719, 0.0, %v4024
      %v4091 = vsel %vm719, 0.0, %v4025
      %v4092 = vsel %vm719, 0.0, %v4026
      %v4093 = vsel %vm719, 0.0, %v4027
      %v4094 = vsel %vm719, 0.0, %v4028
      %v4095 = vsel %vm719, 0.0, %v4029
      %v4096 = vsel %vm719, 0.0, %v4030
      %v4097 = vsel %vm719, 0.0, %v4031
      %v4098 = vsel %vm719, 0.0, %v4032
      %v4099 = vsel %vm719, 0.0, %v4033
      %v4100 = vsel %vm719, 0.0, %v4034
      %4101 = vadd.xlane.f32.xlu0 %v4085
      %v4102 = vpop.xlane.xlu0 %4101
      %4103 = vadd.xlane.f32.xlu0 %v4086
      %v4104 = vpop.xlane.xlu0 %4103
      %4105 = vadd.xlane.f32.xlu0 %v4087
      %v4106 = vpop.xlane.xlu0 %4105
      %4107 = vadd.xlane.f32.xlu0 %v4088
      %v4108 = vpop.xlane.xlu0 %4107
      %4109 = vadd.xlane.f32.xlu0 %v4089
      %v4110 = vpop.xlane.xlu0 %4109
      %4111 = vadd.xlane.f32.xlu0 %v4090
      %v4112 = vpop.xlane.xlu0 %4111
      %4113 = vadd.xlane.f32.xlu0 %v4091
      %v4114 = vpop.xlane.xlu0 %4113
      %4115 = vadd.xlane.f32.xlu0 %v4092
      %v4116 = vpop.xlane.xlu0 %4115
      %4117 = vadd.xlane.f32.xlu0 %v4093
      %v4118 = vpop.xlane.xlu0 %4117
      %4119 = vadd.xlane.f32.xlu0 %v4094
      %v4120 = vpop.xlane.xlu0 %4119
      %4121 = vadd.xlane.f32.xlu0 %v4095
      %v4122 = vpop.xlane.xlu0 %4121
      %4123 = vadd.xlane.f32.xlu0 %v4096
      %v4124 = vpop.xlane.xlu0 %4123
      %4125 = vadd.xlane.f32.xlu0 %v4097
      %v4126 = vpop.xlane.xlu0 %4125
      %4127 = vadd.xlane.f32.xlu0 %v4098
      %v4128 = vpop.xlane.xlu0 %4127
      %4129 = vadd.xlane.f32.xlu0 %v4099
      %v4130 = vpop.xlane.xlu0 %4129
      %4131 = vadd.xlane.f32.xlu0 %v4100
      %v4132 = vpop.xlane.xlu0 %4131
      %v4133 = vsel %vm719, %v4054, %v4102
      %v4134 = vsel %vm719, %v4056, %v4104
      %v4135 = vsel %vm719, %v4058, %v4106
      %v4136 = vsel %vm719, %v4060, %v4108
      %v4137 = vsel %vm719, %v4062, %v4110
      %v4138 = vsel %vm719, %v4064, %v4112
      %v4139 = vsel %vm719, %v4066, %v4114
      %v4140 = vsel %vm719, %v4068, %v4116
      %v4141 = vsel %vm719, %v4070, %v4118
      %v4142 = vsel %vm719, %v4072, %v4120
      %v4143 = vsel %vm719, %v4074, %v4122
      %v4144 = vsel %vm719, %v4076, %v4124
      %v4145 = vsel %vm719, %v4078, %v4126
      %v4146 = vsel %vm719, %v4080, %v4128
      %v4147 = vsel %vm719, %v4082, %v4130
      %v4148 = vsel %vm719, %v4084, %v4132
      %v4149 = vmul.f32 %v4133, 0.015625
      %v4150 = vmul.f32 %v4134, 0.015625
      %v4151 = vmul.f32 %v4135, 0.015625
      %v4152 = vmul.f32 %v4136, 0.015625
      %v4153 = vmul.f32 %v4137, 0.015625
      %v4154 = vmul.f32 %v4138, 0.015625
      %v4155 = vmul.f32 %v4139, 0.015625
      %v4156 = vmul.f32 %v4140, 0.015625
      %v4157 = vmul.f32 %v4141, 0.015625
      %v4158 = vmul.f32 %v4142, 0.015625
      %v4159 = vmul.f32 %v4143, 0.015625
      %v4160 = vmul.f32 %v4144, 0.015625
      %v4161 = vmul.f32 %v4145, 0.015625
      %v4162 = vmul.f32 %v4146, 0.015625
      %v4163 = vmul.f32 %v4147, 0.015625
      %v4164 = vmul.f32 %v4148, 0.015625
      %v4165 = vsub.f32 %v4019, %v4149
      %v4166 = vsub.f32 %v4020, %v4150
      %v4167 = vsub.f32 %v4021, %v4151
      %v4168 = vsub.f32 %v4022, %v4152
      %v4169 = vsub.f32 %v4023, %v4153
      %v4170 = vsub.f32 %v4024, %v4154
      %v4171 = vsub.f32 %v4025, %v4155
      %v4172 = vsub.f32 %v4026, %v4156
      %v4173 = vsub.f32 %v4027, %v4157
      %v4174 = vsub.f32 %v4028, %v4158
      %v4175 = vsub.f32 %v4029, %v4159
      %v4176 = vsub.f32 %v4030, %v4160
      %v4177 = vsub.f32 %v4031, %v4161
      %v4178 = vsub.f32 %v4032, %v4162
      %v4179 = vsub.f32 %v4033, %v4163
      %v4180 = vsub.f32 %v4034, %v4164
      %v4181 = vmul.f32 %v4165, %v4165
      %v4182 = vmul.f32 %v4166, %v4166
      %v4183 = vmul.f32 %v4167, %v4167
      %v4184 = vmul.f32 %v4168, %v4168
      %v4185 = vmul.f32 %v4169, %v4169
      %v4186 = vmul.f32 %v4170, %v4170
      %v4187 = vmul.f32 %v4171, %v4171
      %v4188 = vmul.f32 %v4172, %v4172
      %v4189 = vmul.f32 %v4173, %v4173
      %v4190 = vmul.f32 %v4174, %v4174
      %v4191 = vmul.f32 %v4175, %v4175
      %v4192 = vmul.f32 %v4176, %v4176
      %v4193 = vmul.f32 %v4177, %v4177
      %v4194 = vmul.f32 %v4178, %v4178
      %v4195 = vmul.f32 %v4179, %v4179
      %v4196 = vmul.f32 %v4180, %v4180
      %v4197 = vsel %vm719, %v4181, 0.0
      %v4198 = vsel %vm719, %v4182, 0.0
      %v4199 = vsel %vm719, %v4183, 0.0
      %v4200 = vsel %vm719, %v4184, 0.0
      %v4201 = vsel %vm719, %v4185, 0.0
      %v4202 = vsel %vm719, %v4186, 0.0
      %v4203 = vsel %vm719, %v4187, 0.0
      %v4204 = vsel %vm719, %v4188, 0.0
      %v4205 = vsel %vm719, %v4189, 0.0
      %v4206 = vsel %vm719, %v4190, 0.0
      %v4207 = vsel %vm719, %v4191, 0.0
      %v4208 = vsel %vm719, %v4192, 0.0
      %v4209 = vsel %vm719, %v4193, 0.0
      %v4210 = vsel %vm719, %v4194, 0.0
      %v4211 = vsel %vm719, %v4195, 0.0
      %v4212 = vsel %vm719, %v4196, 0.0
      %4213 = vadd.xlane.f32.xlu0 %v4197
      %v4214 = vpop.xlane.xlu0 %4213
      %4215 = vadd.xlane.f32.xlu0 %v4198
      %v4216 = vpop.xlane.xlu0 %4215
      %4217 = vadd.xlane.f32.xlu0 %v4199
      %v4218 = vpop.xlane.xlu0 %4217
      %4219 = vadd.xlane.f32.xlu0 %v4200
      %v4220 = vpop.xlane.xlu0 %4219
      %4221 = vadd.xlane.f32.xlu0 %v4201
      %v4222 = vpop.xlane.xlu0 %4221
      %4223 = vadd.xlane.f32.xlu0 %v4202
      %v4224 = vpop.xlane.xlu0 %4223
      %4225 = vadd.xlane.f32.xlu0 %v4203
      %v4226 = vpop.xlane.xlu0 %4225
      %4227 = vadd.xlane.f32.xlu0 %v4204
      %v4228 = vpop.xlane.xlu0 %4227
      %4229 = vadd.xlane.f32.xlu0 %v4205
      %v4230 = vpop.xlane.xlu0 %4229
      %4231 = vadd.xlane.f32.xlu0 %v4206
      %v4232 = vpop.xlane.xlu0 %4231
      %4233 = vadd.xlane.f32.xlu0 %v4207
      %v4234 = vpop.xlane.xlu0 %4233
      %4235 = vadd.xlane.f32.xlu0 %v4208
      %v4236 = vpop.xlane.xlu0 %4235
      %4237 = vadd.xlane.f32.xlu0 %v4209
      %v4238 = vpop.xlane.xlu0 %4237
      %4239 = vadd.xlane.f32.xlu0 %v4210
      %v4240 = vpop.xlane.xlu0 %4239
      %4241 = vadd.xlane.f32.xlu0 %v4211
      %v4242 = vpop.xlane.xlu0 %4241
      %4243 = vadd.xlane.f32.xlu0 %v4212
      %v4244 = vpop.xlane.xlu0 %4243
      %v4245 = vsel %vm719, 0.0, %v4181
      %v4246 = vsel %vm719, 0.0, %v4182
      %v4247 = vsel %vm719, 0.0, %v4183
      %v4248 = vsel %vm719, 0.0, %v4184
      %v4249 = vsel %vm719, 0.0, %v4185
      %v4250 = vsel %vm719, 0.0, %v4186
      %v4251 = vsel %vm719, 0.0, %v4187
      %v4252 = vsel %vm719, 0.0, %v4188
      %v4253 = vsel %vm719, 0.0, %v4189
      %v4254 = vsel %vm719, 0.0, %v4190
      %v4255 = vsel %vm719, 0.0, %v4191
      %v4256 = vsel %vm719, 0.0, %v4192
      %v4257 = vsel %vm719, 0.0, %v4193
      %v4258 = vsel %vm719, 0.0, %v4194
      %v4259 = vsel %vm719, 0.0, %v4195
      %v4260 = vsel %vm719, 0.0, %v4196
      %4261 = vadd.xlane.f32.xlu0 %v4245
      %v4262 = vpop.xlane.xlu0 %4261
      %4263 = vadd.xlane.f32.xlu0 %v4246
      %v4264 = vpop.xlane.xlu0 %4263
      %4265 = vadd.xlane.f32.xlu0 %v4247
      %v4266 = vpop.xlane.xlu0 %4265
      %4267 = vadd.xlane.f32.xlu0 %v4248
      %v4268 = vpop.xlane.xlu0 %4267
      %4269 = vadd.xlane.f32.xlu0 %v4249
      %v4270 = vpop.xlane.xlu0 %4269
      %4271 = vadd.xlane.f32.xlu0 %v4250
      %v4272 = vpop.xlane.xlu0 %4271
      %4273 = vadd.xlane.f32.xlu0 %v4251
      %v4274 = vpop.xlane.xlu0 %4273
      %4275 = vadd.xlane.f32.xlu0 %v4252
      %v4276 = vpop.xlane.xlu0 %4275
      %4277 = vadd.xlane.f32.xlu0 %v4253
      %v4278 = vpop.xlane.xlu0 %4277
      %4279 = vadd.xlane.f32.xlu0 %v4254
      %v4280 = vpop.xlane.xlu0 %4279
      %4281 = vadd.xlane.f32.xlu0 %v4255
      %v4282 = vpop.xlane.xlu0 %4281
      %4283 = vadd.xlane.f32.xlu0 %v4256
      %v4284 = vpop.xlane.xlu0 %4283
      %4285 = vadd.xlane.f32.xlu0 %v4257
      %v4286 = vpop.xlane.xlu0 %4285
      %4287 = vadd.xlane.f32.xlu0 %v4258
      %v4288 = vpop.xlane.xlu0 %4287
      %4289 = vadd.xlane.f32.xlu0 %v4259
      %v4290 = vpop.xlane.xlu0 %4289
      %4291 = vadd.xlane.f32.xlu0 %v4260
      %v4292 = vpop.xlane.xlu0 %4291
      %v4293 = vsel %vm719, %v4214, %v4262
      %v4294 = vsel %vm719, %v4216, %v4264
      %v4295 = vsel %vm719, %v4218, %v4266
      %v4296 = vsel %vm719, %v4220, %v4268
      %v4297 = vsel %vm719, %v4222, %v4270
      %v4298 = vsel %vm719, %v4224, %v4272
      %v4299 = vsel %vm719, %v4226, %v4274
      %v4300 = vsel %vm719, %v4228, %v4276
      %v4301 = vsel %vm719, %v4230, %v4278
      %v4302 = vsel %vm719, %v4232, %v4280
      %v4303 = vsel %vm719, %v4234, %v4282
      %v4304 = vsel %vm719, %v4236, %v4284
      %v4305 = vsel %vm719, %v4238, %v4286
      %v4306 = vsel %vm719, %v4240, %v4288
      %v4307 = vsel %vm719, %v4242, %v4290
      %v4308 = vsel %vm719, %v4244, %v4292
      %v4309 = vmul.f32 %v4293, 0.015625
      %v4310 = vmul.f32 %v4294, 0.015625
      %v4311 = vmul.f32 %v4295, 0.015625
      %v4312 = vmul.f32 %v4296, 0.015625
      %v4313 = vmul.f32 %v4297, 0.015625
      %v4314 = vmul.f32 %v4298, 0.015625
      %v4315 = vmul.f32 %v4299, 0.015625
      %v4316 = vmul.f32 %v4300, 0.015625
      %v4317 = vmul.f32 %v4301, 0.015625
      %v4318 = vmul.f32 %v4302, 0.015625
      %v4319 = vmul.f32 %v4303, 0.015625
      %v4320 = vmul.f32 %v4304, 0.015625
      %v4321 = vmul.f32 %v4305, 0.015625
      %v4322 = vmul.f32 %v4306, 0.015625
      %v4323 = vmul.f32 %v4307, 0.015625
      %v4324 = vmul.f32 %v4308, 0.015625
      %v4325 = vadd.f32 %v4309, 1e-05
      %v4326 = vadd.f32 %v4310, 1e-05
      %v4327 = vadd.f32 %v4311, 1e-05
      %v4328 = vadd.f32 %v4312, 1e-05
      %v4329 = vadd.f32 %v4313, 1e-05
      %v4330 = vadd.f32 %v4314, 1e-05
      %v4331 = vadd.f32 %v4315, 1e-05
      %v4332 = vadd.f32 %v4316, 1e-05
      %v4333 = vadd.f32 %v4317, 1e-05
      %v4334 = vadd.f32 %v4318, 1e-05
      %v4335 = vadd.f32 %v4319, 1e-05
      %v4336 = vadd.f32 %v4320, 1e-05
      %v4337 = vadd.f32 %v4321, 1e-05
      %v4338 = vadd.f32 %v4322, 1e-05
      %v4339 = vadd.f32 %v4323, 1e-05
      %v4340 = vadd.f32 %v4324, 1e-05
      %v4341 = vrsqrt.pop %v4325
      %v4342 = vrsqrt.pop %v4326
      %v4343 = vrsqrt.pop %v4327
      %v4344 = vrsqrt.pop %v4328
      %v4345 = vrsqrt.pop %v4329
      %v4346 = vrsqrt.pop %v4330
      %v4347 = vrsqrt.pop %v4331
      %v4348 = vrsqrt.pop %v4332
      %v4349 = vrsqrt.pop %v4333
      %v4350 = vrsqrt.pop %v4334
      %v4351 = vrsqrt.pop %v4335
      %v4352 = vrsqrt.pop %v4336
      %v4353 = vrsqrt.pop %v4337
      %v4354 = vrsqrt.pop %v4338
      %v4355 = vrsqrt.pop %v4339
      %v4356 = vrsqrt.pop %v4340
      %v4357 = vmul.f32 %v4165, %v4341
      %v4358 = vmul.f32 %v4166, %v4342
      %v4359 = vmul.f32 %v4167, %v4343
      %v4360 = vmul.f32 %v4168, %v4344
      %v4361 = vmul.f32 %v4169, %v4345
      %v4362 = vmul.f32 %v4170, %v4346
      %v4363 = vmul.f32 %v4171, %v4347
      %v4364 = vmul.f32 %v4172, %v4348
      %v4365 = vmul.f32 %v4173, %v4349
      %v4366 = vmul.f32 %v4174, %v4350
      %v4367 = vmul.f32 %v4175, %v4351
      %v4368 = vmul.f32 %v4176, %v4352
      %v4369 = vmul.f32 %v4177, %v4353
      %v4370 = vmul.f32 %v4178, %v4354
      %v4371 = vmul.f32 %v4179, %v4355
      %v4372 = vmul.f32 %v4180, %v4356
      %v4374 = vlaneseq
      %v4375 = vshrl.u32 %v4374, 7
      %v4376 = vsub.s32 0, %v4375
      %v4377 = vrot.slane %v4035, %v4376
      %v4379 = vmul.f32 %v4357, %v4377
      %v4380 = vmul.f32 %v4358, %v4377
      %v4381 = vmul.f32 %v4359, %v4377
      %v4382 = vmul.f32 %v4360, %v4377
      %v4383 = vmul.f32 %v4361, %v4377
      %v4384 = vmul.f32 %v4362, %v4377
      %v4385 = vmul.f32 %v4363, %v4377
      %v4386 = vmul.f32 %v4364, %v4377
      %v4387 = vmul.f32 %v4365, %v4377
      %v4388 = vmul.f32 %v4366, %v4377
      %v4389 = vmul.f32 %v4367, %v4377
      %v4390 = vmul.f32 %v4368, %v4377
      %v4391 = vmul.f32 %v4369, %v4377
      %v4392 = vmul.f32 %v4370, %v4377
      %v4393 = vmul.f32 %v4371, %v4377
      %v4394 = vmul.f32 %v4372, %v4377
      %v4396 = vlaneseq
      %v4397 = vshrl.u32 %v4396, 7
      %v4398 = vsub.s32 0, %v4397
      %v4399 = vrot.slane %v4036, %v4398
      %v4401 = vadd.f32 %v4379, %v4399
      %v4402 = vadd.f32 %v4380, %v4399
      %v4403 = vadd.f32 %v4381, %v4399
      %v4404 = vadd.f32 %v4382, %v4399
      %v4405 = vadd.f32 %v4383, %v4399
      %v4406 = vadd.f32 %v4384, %v4399
      %v4407 = vadd.f32 %v4385, %v4399
      %v4408 = vadd.f32 %v4386, %v4399
      %v4409 = vadd.f32 %v4387, %v4399
      %v4410 = vadd.f32 %v4388, %v4399
      %v4411 = vadd.f32 %v4389, %v4399
      %v4412 = vadd.f32 %v4390, %v4399
      %v4413 = vadd.f32 %v4391, %v4399
      %v4414 = vadd.f32 %v4392, %v4399
      %v4415 = vadd.f32 %v4393, %v4399
      %v4416 = vadd.f32 %v4394, %v4399
      %v4417 = vpack.c.bf16 %v4402, %v4401
      %v4418 = vpack.c.bf16 %v4404, %v4403
      %v4419 = vpack.c.bf16 %v4406, %v4405
      %v4420 = vpack.c.bf16 %v4408, %v4407
      %v4421 = vpack.c.bf16 %v4410, %v4409
      %v4422 = vpack.c.bf16 %v4412, %v4411
      %v4423 = vpack.c.bf16 %v4414, %v4413
      %v4424 = vpack.c.bf16 %v4416, %v4415
      %v4425 = vld [vmem:[%s645] sm:$0xff]
      %v4426 = vld [vmem:[%s645 + $0x8] sm:$0xff]
      %v4427 = vld [vmem:[%s645 + $0x10] sm:$0xff]
      %v4428 = vld [vmem:[%s645 + $0x18] sm:$0xff]
      %v4429 = vld [vmem:[%s645 + $0x20] sm:$0xff]
      %v4430 = vld [vmem:[%s645 + $0x28] sm:$0xff]
      %v4431 = vld [vmem:[%s645 + $0x30] sm:$0xff]
      %v4432 = vld [vmem:[%s645 + $0x38] sm:$0xff]
      %v4433 = vld [vmem:[%s645 + $0x40] sm:$0xff]
      %v4434 = vld [vmem:[%s645 + $0x48] sm:$0xff]
      %v4435 = vld [vmem:[%s645 + $0x50] sm:$0xff]
      %v4436 = vld [vmem:[%s645 + $0x58] sm:$0xff]
      %v4437 = vld [vmem:[%s645 + $0x60] sm:$0xff]
      %v4438 = vld [vmem:[%s645 + $0x68] sm:$0xff]
      %v4439 = vld [vmem:[%s645 + $0x70] sm:$0xff]
      %v4440 = vld [vmem:[%s645 + $0x78] sm:$0xff]
      %v4441 = vld [vmem:[%s649] sm:$0x3]
      %v4443 = vlaneseq
      %v4444 = vshrl.u32 %v4443, 7
      %v4445 = vsub.s32 0, %v4444
      %v4446 = vrot.slane %v4441, %v4445
      %v4447 = vlaneseq
      %v4448 = vshrl.u32 %v4447, 7
      %v4449 = vsub.s32 1, %v4448
      %v4450 = vrot.slane %v4441, %v4449
      %v4469 = vunpack.c.l.b16 %v4425
      %v4470 = vunpack.c.h.b16 %v4425
      %v4471 = vunpack.c.l.b16 %v4426
      %v4472 = vunpack.c.h.b16 %v4426
      %v4473 = vunpack.c.l.b16 %v4427
      %v4474 = vunpack.c.h.b16 %v4427
      %v4475 = vunpack.c.l.b16 %v4428
      %v4476 = vunpack.c.h.b16 %v4428
      %v4477 = vunpack.c.l.b16 %v4429
      %v4478 = vunpack.c.h.b16 %v4429
      %v4479 = vunpack.c.l.b16 %v4430
      %v4480 = vunpack.c.h.b16 %v4430
      %v4481 = vunpack.c.l.b16 %v4431
      %v4482 = vunpack.c.h.b16 %v4431
      %v4483 = vunpack.c.l.b16 %v4432
      %v4484 = vunpack.c.h.b16 %v4432
      %v4485 = vunpack.c.l.b16 %v4433
      %v4486 = vunpack.c.h.b16 %v4433
      %v4487 = vunpack.c.l.b16 %v4434
      %v4488 = vunpack.c.h.b16 %v4434
      %v4489 = vunpack.c.l.b16 %v4435
      %v4490 = vunpack.c.h.b16 %v4435
      %v4491 = vunpack.c.l.b16 %v4436
      %v4492 = vunpack.c.h.b16 %v4436
      %v4493 = vunpack.c.l.b16 %v4437
      %v4494 = vunpack.c.h.b16 %v4437
      %v4495 = vunpack.c.l.b16 %v4438
      %v4496 = vunpack.c.h.b16 %v4438
      %v4497 = vunpack.c.l.b16 %v4439
      %v4498 = vunpack.c.h.b16 %v4439
      %v4499 = vunpack.c.l.b16 %v4440
      %v4500 = vunpack.c.h.b16 %v4440
      %v4501 = vpack.c.b16 %v4471, %v4469
      %v4502 = vpack.c.b16 %v4472, %v4470
      %v4503 = vpack.c.b16 %v4475, %v4473
      %v4504 = vpack.c.b16 %v4476, %v4474
      %v4505 = vpack.c.b16 %v4479, %v4477
      %v4506 = vpack.c.b16 %v4480, %v4478
      %v4507 = vpack.c.b16 %v4483, %v4481
      %v4508 = vpack.c.b16 %v4484, %v4482
      %v4509 = vpack.c.b16 %v4487, %v4485
      %v4510 = vpack.c.b16 %v4488, %v4486
      %v4511 = vpack.c.b16 %v4491, %v4489
      %v4512 = vpack.c.b16 %v4492, %v4490
      %v4513 = vpack.c.b16 %v4495, %v4493
      %v4514 = vpack.c.b16 %v4496, %v4494
      %v4515 = vpack.c.b16 %v4499, %v4497
      %v4516 = vpack.c.b16 %v4500, %v4498
      %4533 = vmatprep.subr.bf16.mxu0 %v4502
      %4534 = vmatpush1.bf16.msra.mxu0 %v4501
      %4535 = vmatprep.subr.bf16.mxu0 %v4504
      %4536 = vmatpush1.bf16.msra.mxu0 %v4503
      %4537 = vmatprep.subr.bf16.mxu0 %v4506
      %4538 = vmatpush1.bf16.msra.mxu0 %v4505
      %4539 = vmatprep.subr.bf16.mxu0 %v4508
      %4540 = vmatpush1.bf16.msra.mxu0 %v4507
      %4541 = vmatprep.subr.bf16.mxu0 %v4510
      %4542 = vmatpush1.bf16.msra.mxu0 %v4509
      %4543 = vmatprep.subr.bf16.mxu0 %v4512
      %4544 = vmatpush1.bf16.msra.mxu0 %v4511
      %4545 = vmatprep.subr.bf16.mxu0 %v4514
      %4546 = vmatpush1.bf16.msra.mxu0 %v4513
      %4547 = vmatprep.subr.bf16.mxu0 %v4516
      %4548 = vmatpush1.bf16.msra.mxu0 %v4515
      %4549 = vmatprep.subr.bf16.mxu0 0
      %4550 = vmatpush1.bf16.msra.mxu0 0
      %4551 = vmatprep.subr.bf16.mxu0 0
      %4552 = vmatpush1.bf16.msra.mxu0 0
      %4553 = vmatprep.subr.bf16.mxu0 0
      %4554 = vmatpush1.bf16.msra.mxu0 0
      %4555 = vmatprep.subr.bf16.mxu0 0
      %4556 = vmatpush1.bf16.msra.mxu0 0
      %4557 = vmatprep.subr.bf16.mxu0 0
      %4558 = vmatpush1.bf16.msra.mxu0 0
      %4559 = vmatprep.subr.bf16.mxu0 0
      %4560 = vmatpush1.bf16.msra.mxu0 0
      %4561 = vmatprep.subr.bf16.mxu0 0
      %4562 = vmatpush1.bf16.msra.mxu0 0
      %4563 = vmatprep.subr.bf16.mxu0 0
      %4564 = vmatpush1.bf16.msra.mxu0 0
      %4565 = vmatprep.mubr.bf16.mxu0 0
      %4566 = vmatmul.mubr.bf16.gmra.mrb[0].mxu0 %v4417
      %v4567 = vpop.f32.mrb[0].mxu0
      %v4568 = vadd.f32 %v4446, %v4567
      %v4569 = vpop.f32.mrb[0].mxu0
      %v4570 = vadd.f32 %v4450, %v4569
      %v4571 = vpop.f32.mrb[0].mxu0
      %v4572 = vadd.f32 %v4446, %v4571
      %v4573 = vpop.f32.mrb[0].mxu0
      %v4574 = vadd.f32 %v4450, %v4573
      %4575 = vmatprep.mubr.bf16.mxu0 0
      %4576 = vmatmul.mubr.bf16.gmra.mrb[0].mxu0 %v4418
      %v4577 = vpop.f32.mrb[0].mxu0
      %v4578 = vadd.f32 %v4446, %v4577
      %v4579 = vpop.f32.mrb[0].mxu0
      %v4580 = vadd.f32 %v4450, %v4579
      %v4581 = vpop.f32.mrb[0].mxu0
      %v4582 = vadd.f32 %v4446, %v4581
      %v4583 = vpop.f32.mrb[0].mxu0
      %v4584 = vadd.f32 %v4450, %v4583
      %4585 = vmatprep.mubr.bf16.mxu0 0
      %4586 = vmatmul.mubr.bf16.gmra.mrb[0].mxu0 %v4419
      %v4587 = vpop.f32.mrb[0].mxu0
      %v4588 = vadd.f32 %v4446, %v4587
      %v4589 = vpop.f32.mrb[0].mxu0
      %v4590 = vadd.f32 %v4450, %v4589
      %v4591 = vpop.f32.mrb[0].mxu0
      %v4592 = vadd.f32 %v4446, %v4591
      %v4593 = vpop.f32.mrb[0].mxu0
      %v4594 = vadd.f32 %v4450, %v4593
      %4595 = vmatprep.mubr.bf16.mxu0 0
      %4596 = vmatmul.mubr.bf16.gmra.mrb[0].mxu0 %v4420
      %v4597 = vpop.f32.mrb[0].mxu0
      %v4598 = vadd.f32 %v4446, %v4597
      %v4599 = vpop.f32.mrb[0].mxu0
      %v4600 = vadd.f32 %v4450, %v4599
      %v4601 = vpop.f32.mrb[0].mxu0
      %v4602 = vadd.f32 %v4446, %v4601
      %v4603 = vpop.f32.mrb[0].mxu0
      %v4604 = vadd.f32 %v4450, %v4603
      %4605 = vmatprep.mubr.bf16.mxu0 0
      %4606 = vmatmul.mubr.bf16.gmra.mrb[0].mxu0 %v4421
      %v4607 = vpop.f32.mrb[0].mxu0
      %v4608 = vadd.f32 %v4446, %v4607
      %v4609 = vpop.f32.mrb[0].mxu0
      %v4610 = vadd.f32 %v4450, %v4609
      %v4611 = vpop.f32.mrb[0].mxu0
      %v4612 = vadd.f32 %v4446, %v4611
      %v4613 = vpop.f32.mrb[0].mxu0
      %v4614 = vadd.f32 %v4450, %v4613
      %4615 = vmatprep.mubr.bf16.mxu0 0
      %4616 = vmatmul.mubr.bf16.gmra.mrb[0].mxu0 %v4422
      %v4617 = vpop.f32.mrb[0].mxu0
      %v4618 = vadd.f32 %v4446, %v4617
      %v4619 = vpop.f32.mrb[0].mxu0
      %v4620 = vadd.f32 %v4450, %v4619
      %v4621 = vpop.f32.mrb[0].mxu0
      %v4622 = vadd.f32 %v4446, %v4621
      %v4623 = vpop.f32.mrb[0].mxu0
      %v4624 = vadd.f32 %v4450, %v4623
      %4625 = vmatprep.mubr.bf16.mxu0 0
      %4626 = vmatmul.mubr.bf16.gmra.mrb[0].mxu0 %v4423
      %v4627 = vpop.f32.mrb[0].mxu0
      %v4628 = vadd.f32 %v4446, %v4627
      %v4629 = vpop.f32.mrb[0].mxu0
      %v4630 = vadd.f32 %v4450, %v4629
      %v4631 = vpop.f32.mrb[0].mxu0
      %v4632 = vadd.f32 %v4446, %v4631
      %v4633 = vpop.f32.mrb[0].mxu0
      %v4634 = vadd.f32 %v4450, %v4633
      %4635 = vmatprep.mubr.bf16.mxu0 0
      %4636 = vmatmul.mubr.bf16.gmra.mrb[0].mxu0 %v4424
      %v4637 = vpop.f32.mrb[0].mxu0
      %v4638 = vadd.f32 %v4446, %v4637
      %v4639 = vpop.f32.mrb[0].mxu0
      %v4640 = vadd.f32 %v4450, %v4639
      %v4641 = vpop.f32.mrb[0].mxu0
      %v4642 = vadd.f32 %v4446, %v4641
      %v4643 = vpop.f32.mrb[0].mxu0
      %v4644 = vadd.f32 %v4450, %v4643
      %4645 = vdwg.mxu0
      %v4646 = vmul.f32 %v4568, %v4568
      %v4647 = vmul.f32 %v4570, %v4570
      %v4648 = vmul.f32 %v4572, %v4572
      %v4649 = vmul.f32 %v4574, %v4574
      %v4650 = vmul.f32 %v4578, %v4578
      %v4651 = vmul.f32 %v4580, %v4580
      %v4652 = vmul.f32 %v4582, %v4582
      %v4653 = vmul.f32 %v4584, %v4584
      %v4654 = vmul.f32 %v4588, %v4588
      %v4655 = vmul.f32 %v4590, %v4590
      %v4656 = vmul.f32 %v4592, %v4592
      %v4657 = vmul.f32 %v4594, %v4594
      %v4658 = vmul.f32 %v4598, %v4598
      %v4659 = vmul.f32 %v4600, %v4600
      %v4660 = vmul.f32 %v4602, %v4602
      %v4661 = vmul.f32 %v4604, %v4604
      %v4662 = vmul.f32 %v4608, %v4608
      %v4663 = vmul.f32 %v4610, %v4610
      %v4664 = vmul.f32 %v4612, %v4612
      %v4665 = vmul.f32 %v4614, %v4614
      %v4666 = vmul.f32 %v4618, %v4618
      %v4667 = vmul.f32 %v4620, %v4620
      %v4668 = vmul.f32 %v4622, %v4622
      %v4669 = vmul.f32 %v4624, %v4624
      %v4670 = vmul.f32 %v4628, %v4628
      %v4671 = vmul.f32 %v4630, %v4630
      %v4672 = vmul.f32 %v4632, %v4632
      %v4673 = vmul.f32 %v4634, %v4634
      %v4674 = vmul.f32 %v4638, %v4638
      %v4675 = vmul.f32 %v4640, %v4640
      %v4676 = vmul.f32 %v4642, %v4642
      %v4677 = vmul.f32 %v4644, %v4644
      %v4678 = vmul.f32 %v4568, %v4646
      %v4679 = vmul.f32 %v4570, %v4647
      %v4680 = vmul.f32 %v4572, %v4648
      %v4681 = vmul.f32 %v4574, %v4649
      %v4682 = vmul.f32 %v4578, %v4650
      %v4683 = vmul.f32 %v4580, %v4651
      %v4684 = vmul.f32 %v4582, %v4652
      %v4685 = vmul.f32 %v4584, %v4653
      %v4686 = vmul.f32 %v4588, %v4654
      %v4687 = vmul.f32 %v4590, %v4655
      %v4688 = vmul.f32 %v4592, %v4656
      %v4689 = vmul.f32 %v4594, %v4657
      %v4690 = vmul.f32 %v4598, %v4658
      %v4691 = vmul.f32 %v4600, %v4659
      %v4692 = vmul.f32 %v4602, %v4660
      %v4693 = vmul.f32 %v4604, %v4661
      %v4694 = vmul.f32 %v4608, %v4662
      %v4695 = vmul.f32 %v4610, %v4663
      %v4696 = vmul.f32 %v4612, %v4664
      %v4697 = vmul.f32 %v4614, %v4665
      %v4698 = vmul.f32 %v4618, %v4666
      %v4699 = vmul.f32 %v4620, %v4667
      %v4700 = vmul.f32 %v4622, %v4668
      %v4701 = vmul.f32 %v4624, %v4669
      %v4702 = vmul.f32 %v4628, %v4670
      %v4703 = vmul.f32 %v4630, %v4671
      %v4704 = vmul.f32 %v4632, %v4672
      %v4705 = vmul.f32 %v4634, %v4673
      %v4706 = vmul.f32 %v4638, %v4674
      %v4707 = vmul.f32 %v4640, %v4675
      %v4708 = vmul.f32 %v4642, %v4676
      %v4709 = vmul.f32 %v4644, %v4677
      %v4710 = vmul.f32 %v4678, 0.044715
      %v4711 = vmul.f32 %v4679, 0.044715
      %v4712 = vmul.f32 %v4680, 0.044715
      %v4713 = vmul.f32 %v4681, 0.044715
      %v4714 = vmul.f32 %v4682, 0.044715
      %v4715 = vmul.f32 %v4683, 0.044715
      %v4716 = vmul.f32 %v4684, 0.044715
      %v4717 = vmul.f32 %v4685, 0.044715
      %v4718 = vmul.f32 %v4686, 0.044715
      %v4719 = vmul.f32 %v4687, 0.044715
      %v4720 = vmul.f32 %v4688, 0.044715
      %v4721 = vmul.f32 %v4689, 0.044715
      %v4722 = vmul.f32 %v4690, 0.044715
      %v4723 = vmul.f32 %v4691, 0.044715
      %v4724 = vmul.f32 %v4692, 0.044715
      %v4725 = vmul.f32 %v4693, 0.044715
      %v4726 = vmul.f32 %v4694, 0.044715
      %v4727 = vmul.f32 %v4695, 0.044715
      %v4728 = vmul.f32 %v4696, 0.044715
      %v4729 = vmul.f32 %v4697, 0.044715
      %v4730 = vmul.f32 %v4698, 0.044715
      %v4731 = vmul.f32 %v4699, 0.044715
      %v4732 = vmul.f32 %v4700, 0.044715
      %v4733 = vmul.f32 %v4701, 0.044715
      %v4734 = vmul.f32 %v4702, 0.044715
      %v4735 = vmul.f32 %v4703, 0.044715
      %v4736 = vmul.f32 %v4704, 0.044715
      %v4737 = vmul.f32 %v4705, 0.044715
      %v4738 = vmul.f32 %v4706, 0.044715
      %v4739 = vmul.f32 %v4707, 0.044715
      %v4740 = vmul.f32 %v4708, 0.044715
      %v4741 = vmul.f32 %v4709, 0.044715
      %v4742 = vadd.f32 %v4568, %v4710
      %v4743 = vadd.f32 %v4570, %v4711
      %v4744 = vadd.f32 %v4572, %v4712
      %v4745 = vadd.f32 %v4574, %v4713
      %v4746 = vadd.f32 %v4578, %v4714
      %v4747 = vadd.f32 %v4580, %v4715
      %v4748 = vadd.f32 %v4582, %v4716
      %v4749 = vadd.f32 %v4584, %v4717
      %v4750 = vadd.f32 %v4588, %v4718
      %v4751 = vadd.f32 %v4590, %v4719
      %v4752 = vadd.f32 %v4592, %v4720
      %v4753 = vadd.f32 %v4594, %v4721
      %v4754 = vadd.f32 %v4598, %v4722
      %v4755 = vadd.f32 %v4600, %v4723
      %v4756 = vadd.f32 %v4602, %v4724
      %v4757 = vadd.f32 %v4604, %v4725
      %v4758 = vadd.f32 %v4608, %v4726
      %v4759 = vadd.f32 %v4610, %v4727
      %v4760 = vadd.f32 %v4612, %v4728
      %v4761 = vadd.f32 %v4614, %v4729
      %v4762 = vadd.f32 %v4618, %v4730
      %v4763 = vadd.f32 %v4620, %v4731
      %v4764 = vadd.f32 %v4622, %v4732
      %v4765 = vadd.f32 %v4624, %v4733
      %v4766 = vadd.f32 %v4628, %v4734
      %v4767 = vadd.f32 %v4630, %v4735
      %v4768 = vadd.f32 %v4632, %v4736
      %v4769 = vadd.f32 %v4634, %v4737
      %v4770 = vadd.f32 %v4638, %v4738
      %v4771 = vadd.f32 %v4640, %v4739
      %v4772 = vadd.f32 %v4642, %v4740
      %v4773 = vadd.f32 %v4644, %v4741
      %v4774 = vmul.f32 %v4742, 0.7978846
      %v4775 = vmul.f32 %v4743, 0.7978846
      %v4776 = vmul.f32 %v4744, 0.7978846
      %v4777 = vmul.f32 %v4745, 0.7978846
      %v4778 = vmul.f32 %v4746, 0.7978846
      %v4779 = vmul.f32 %v4747, 0.7978846
      %v4780 = vmul.f32 %v4748, 0.7978846
      %v4781 = vmul.f32 %v4749, 0.7978846
      %v4782 = vmul.f32 %v4750, 0.7978846
      %v4783 = vmul.f32 %v4751, 0.7978846
      %v4784 = vmul.f32 %v4752, 0.7978846
      %v4785 = vmul.f32 %v4753, 0.7978846
      %v4786 = vmul.f32 %v4754, 0.7978846
      %v4787 = vmul.f32 %v4755, 0.7978846
      %v4788 = vmul.f32 %v4756, 0.7978846
      %v4789 = vmul.f32 %v4757, 0.7978846
      %v4790 = vmul.f32 %v4758, 0.7978846
      %v4791 = vmul.f32 %v4759, 0.7978846
      %v4792 = vmul.f32 %v4760, 0.7978846
      %v4793 = vmul.f32 %v4761, 0.7978846
      %v4794 = vmul.f32 %v4762, 0.7978846
      %v4795 = vmul.f32 %v4763, 0.7978846
      %v4796 = vmul.f32 %v4764, 0.7978846
      %v4797 = vmul.f32 %v4765, 0.7978846
      %v4798 = vmul.f32 %v4766, 0.7978846
      %v4799 = vmul.f32 %v4767, 0.7978846
      %v4800 = vmul.f32 %v4768, 0.7978846
      %v4801 = vmul.f32 %v4769, 0.7978846
      %v4802 = vmul.f32 %v4770, 0.7978846
      %v4803 = vmul.f32 %v4771, 0.7978846
      %v4804 = vmul.f32 %v4772, 0.7978846
      %v4805 = vmul.f32 %v4773, 0.7978846
      %v4806 = vtanh.pop %v4774
      %v4807 = vtanh.pop %v4775
      %v4808 = vtanh.pop %v4776
      %v4809 = vtanh.pop %v4777
      %v4810 = vtanh.pop %v4778
      %v4811 = vtanh.pop %v4779
      %v4812 = vtanh.pop %v4780
      %v4813 = vtanh.pop %v4781
      %v4814 = vtanh.pop %v4782
      %v4815 = vtanh.pop %v4783
      %v4816 = vtanh.pop %v4784
      %v4817 = vtanh.pop %v4785
      %v4818 = vtanh.pop %v4786
      %v4819 = vtanh.pop %v4787
      %v4820 = vtanh.pop %v4788
      %v4821 = vtanh.pop %v4789
      %v4822 = vtanh.pop %v4790
      %v4823 = vtanh.pop %v4791
      %v4824 = vtanh.pop %v4792
      %v4825 = vtanh.pop %v4793
      %v4826 = vtanh.pop %v4794
      %v4827 = vtanh.pop %v4795
      %v4828 = vtanh.pop %v4796
      %v4829 = vtanh.pop %v4797
      %v4830 = vtanh.pop %v4798
      %v4831 = vtanh.pop %v4799
      %v4832 = vtanh.pop %v4800
      %v4833 = vtanh.pop %v4801
      %v4834 = vtanh.pop %v4802
      %v4835 = vtanh.pop %v4803
      %v4836 = vtanh.pop %v4804
      %v4837 = vtanh.pop %v4805
      %v4838 = vadd.f32 %v4806, 1.0
      %v4839 = vadd.f32 %v4807, 1.0
      %v4840 = vadd.f32 %v4808, 1.0
      %v4841 = vadd.f32 %v4809, 1.0
      %v4842 = vadd.f32 %v4810, 1.0
      %v4843 = vadd.f32 %v4811, 1.0
      %v4844 = vadd.f32 %v4812, 1.0
      %v4845 = vadd.f32 %v4813, 1.0
      %v4846 = vadd.f32 %v4814, 1.0
      %v4847 = vadd.f32 %v4815, 1.0
      %v4848 = vadd.f32 %v4816, 1.0
      %v4849 = vadd.f32 %v4817, 1.0
      %v4850 = vadd.f32 %v4818, 1.0
      %v4851 = vadd.f32 %v4819, 1.0
      %v4852 = vadd.f32 %v4820, 1.0
      %v4853 = vadd.f32 %v4821, 1.0
      %v4854 = vadd.f32 %v4822, 1.0
      %v4855 = vadd.f32 %v4823, 1.0
      %v4856 = vadd.f32 %v4824, 1.0
      %v4857 = vadd.f32 %v4825, 1.0
      %v4858 = vadd.f32 %v4826, 1.0
      %v4859 = vadd.f32 %v4827, 1.0
      %v4860 = vadd.f32 %v4828, 1.0
      %v4861 = vadd.f32 %v4829, 1.0
      %v4862 = vadd.f32 %v4830, 1.0
      %v4863 = vadd.f32 %v4831, 1.0
      %v4864 = vadd.f32 %v4832, 1.0
      %v4865 = vadd.f32 %v4833, 1.0
      %v4866 = vadd.f32 %v4834, 1.0
      %v4867 = vadd.f32 %v4835, 1.0
      %v4868 = vadd.f32 %v4836, 1.0
      %v4869 = vadd.f32 %v4837, 1.0
      %v4870 = vmul.f32 %v4838, 0.5
      %v4871 = vmul.f32 %v4839, 0.5
      %v4872 = vmul.f32 %v4840, 0.5
      %v4873 = vmul.f32 %v4841, 0.5
      %v4874 = vmul.f32 %v4842, 0.5
      %v4875 = vmul.f32 %v4843, 0.5
      %v4876 = vmul.f32 %v4844, 0.5
      %v4877 = vmul.f32 %v4845, 0.5
      %v4878 = vmul.f32 %v4846, 0.5
      %v4879 = vmul.f32 %v4847, 0.5
      %v4880 = vmul.f32 %v4848, 0.5
      %v4881 = vmul.f32 %v4849, 0.5
      %v4882 = vmul.f32 %v4850, 0.5
      %v4883 = vmul.f32 %v4851, 0.5
      %v4884 = vmul.f32 %v4852, 0.5
      %v4885 = vmul.f32 %v4853, 0.5
      %v4886 = vmul.f32 %v4854, 0.5
      %v4887 = vmul.f32 %v4855, 0.5
      %v4888 = vmul.f32 %v4856, 0.5
      %v4889 = vmul.f32 %v4857, 0.5
      %v4890 = vmul.f32 %v4858, 0.5
      %v4891 = vmul.f32 %v4859, 0.5
      %v4892 = vmul.f32 %v4860, 0.5
      %v4893 = vmul.f32 %v4861, 0.5
      %v4894 = vmul.f32 %v4862, 0.5
      %v4895 = vmul.f32 %v4863, 0.5
      %v4896 = vmul.f32 %v4864, 0.5
      %v4897 = vmul.f32 %v4865, 0.5
      %v4898 = vmul.f32 %v4866, 0.5
      %v4899 = vmul.f32 %v4867, 0.5
      %v4900 = vmul.f32 %v4868, 0.5
      %v4901 = vmul.f32 %v4869, 0.5
      %v4902 = vmul.f32 %v4568, %v4870
      %v4903 = vmul.f32 %v4570, %v4871
      %v4904 = vmul.f32 %v4572, %v4872
      %v4905 = vmul.f32 %v4574, %v4873
      %v4906 = vmul.f32 %v4578, %v4874
      %v4907 = vmul.f32 %v4580, %v4875
      %v4908 = vmul.f32 %v4582, %v4876
      %v4909 = vmul.f32 %v4584, %v4877
      %v4910 = vmul.f32 %v4588, %v4878
      %v4911 = vmul.f32 %v4590, %v4879
      %v4912 = vmul.f32 %v4592, %v4880
      %v4913 = vmul.f32 %v4594, %v4881
      %v4914 = vmul.f32 %v4598, %v4882
      %v4915 = vmul.f32 %v4600, %v4883
      %v4916 = vmul.f32 %v4602, %v4884
      %v4917 = vmul.f32 %v4604, %v4885
      %v4918 = vmul.f32 %v4608, %v4886
      %v4919 = vmul.f32 %v4610, %v4887
      %v4920 = vmul.f32 %v4612, %v4888
      %v4921 = vmul.f32 %v4614, %v4889
      %v4922 = vmul.f32 %v4618, %v4890
      %v4923 = vmul.f32 %v4620, %v4891
      %v4924 = vmul.f32 %v4622, %v4892
      %v4925 = vmul.f32 %v4624, %v4893
      %v4926 = vmul.f32 %v4628, %v4894
      %v4927 = vmul.f32 %v4630, %v4895
      %v4928 = vmul.f32 %v4632, %v4896
      %v4929 = vmul.f32 %v4634, %v4897
      %v4930 = vmul.f32 %v4638, %v4898
      %v4931 = vmul.f32 %v4640, %v4899
      %v4932 = vmul.f32 %v4642, %v4900
      %v4933 = vmul.f32 %v4644, %v4901
      %v4934 = vpack.c.bf16 %v4904, %v4902
      %v4935 = vpack.c.bf16 %v4905, %v4903
      %v4936 = vpack.c.bf16 %v4908, %v4906
      %v4937 = vpack.c.bf16 %v4909, %v4907
      %v4938 = vpack.c.bf16 %v4912, %v4910
      %v4939 = vpack.c.bf16 %v4913, %v4911
      %v4940 = vpack.c.bf16 %v4916, %v4914
      %v4941 = vpack.c.bf16 %v4917, %v4915
      %v4942 = vpack.c.bf16 %v4920, %v4918
      %v4943 = vpack.c.bf16 %v4921, %v4919
      %v4944 = vpack.c.bf16 %v4924, %v4922
      %v4945 = vpack.c.bf16 %v4925, %v4923
      %v4946 = vpack.c.bf16 %v4928, %v4926
      %v4947 = vpack.c.bf16 %v4929, %v4927
      %v4948 = vpack.c.bf16 %v4932, %v4930
      %v4949 = vpack.c.bf16 %v4933, %v4931
      %v4950 = vld [vmem:[%s654] sm:$0xf]
      %v4951 = vld [vmem:[%s654 + $0x4] sm:$0xf]
      %v4952 = vld [vmem:[%s654 + $0x8] sm:$0xf]
      %v4953 = vld [vmem:[%s654 + $0xc] sm:$0xf]
      %v4954 = vld [vmem:[%s654 + $0x10] sm:$0xf]
      %v4955 = vld [vmem:[%s654 + $0x14] sm:$0xf]
      %v4956 = vld [vmem:[%s654 + $0x18] sm:$0xf]
      %v4957 = vld [vmem:[%s654 + $0x1c] sm:$0xf]
      %v4958 = vld [vmem:[%s654 + $0x20] sm:$0xf]
      %v4959 = vld [vmem:[%s654 + $0x24] sm:$0xf]
      %v4960 = vld [vmem:[%s654 + $0x28] sm:$0xf]
      %v4961 = vld [vmem:[%s654 + $0x2c] sm:$0xf]
      %v4962 = vld [vmem:[%s654 + $0x30] sm:$0xf]
      %v4963 = vld [vmem:[%s654 + $0x34] sm:$0xf]
      %v4964 = vld [vmem:[%s654 + $0x38] sm:$0xf]
      %v4965 = vld [vmem:[%s654 + $0x3c] sm:$0xf]
      %v4966 = vld [vmem:[%s654 + $0x40] sm:$0xf]
      %v4967 = vld [vmem:[%s654 + $0x44] sm:$0xf]
      %v4968 = vld [vmem:[%s654 + $0x48] sm:$0xf]
      %v4969 = vld [vmem:[%s654 + $0x4c] sm:$0xf]
      %v4970 = vld [vmem:[%s654 + $0x50] sm:$0xf]
      %v4971 = vld [vmem:[%s654 + $0x54] sm:$0xf]
      %v4972 = vld [vmem:[%s654 + $0x58] sm:$0xf]
      %v4973 = vld [vmem:[%s654 + $0x5c] sm:$0xf]
      %v4974 = vld [vmem:[%s654 + $0x60] sm:$0xf]
      %v4975 = vld [vmem:[%s654 + $0x64] sm:$0xf]
      %v4976 = vld [vmem:[%s654 + $0x68] sm:$0xf]
      %v4977 = vld [vmem:[%s654 + $0x6c] sm:$0xf]
      %v4978 = vld [vmem:[%s654 + $0x70] sm:$0xf]
      %v4979 = vld [vmem:[%s654 + $0x74] sm:$0xf]
      %v4980 = vld [vmem:[%s654 + $0x78] sm:$0xf]
      %v4981 = vld [vmem:[%s654 + $0x7c] sm:$0xf]
      %v5014 = vunpack.c.l.b16 %v4950
      %v5015 = vunpack.c.l.b16 %v4951
      %v5016 = vunpack.c.l.b16 %v4952
      %v5017 = vunpack.c.l.b16 %v4953
      %v5018 = vunpack.c.l.b16 %v4954
      %v5019 = vunpack.c.l.b16 %v4955
      %v5020 = vunpack.c.l.b16 %v4956
      %v5021 = vunpack.c.l.b16 %v4957
      %v5022 = vunpack.c.l.b16 %v4958
      %v5023 = vunpack.c.l.b16 %v4959
      %v5024 = vunpack.c.l.b16 %v4960
      %v5025 = vunpack.c.l.b16 %v4961
      %v5026 = vunpack.c.l.b16 %v4962
      %v5027 = vunpack.c.l.b16 %v4963
      %v5028 = vunpack.c.l.b16 %v4964
      %v5029 = vunpack.c.l.b16 %v4965
      %v5030 = vunpack.c.l.b16 %v4966
      %v5031 = vunpack.c.l.b16 %v4967
      %v5032 = vunpack.c.l.b16 %v4968
      %v5033 = vunpack.c.l.b16 %v4969
      %v5034 = vunpack.c.l.b16 %v4970
      %v5035 = vunpack.c.l.b16 %v4971
      %v5036 = vunpack.c.l.b16 %v4972
      %v5037 = vunpack.c.l.b16 %v4973
      %v5038 = vunpack.c.l.b16 %v4974
      %v5039 = vunpack.c.l.b16 %v4975
      %v5040 = vunpack.c.l.b16 %v4976
      %v5041 = vunpack.c.l.b16 %v4977
      %v5042 = vunpack.c.l.b16 %v4978
      %v5043 = vunpack.c.l.b16 %v4979
      %v5044 = vunpack.c.l.b16 %v4980
      %v5045 = vunpack.c.l.b16 %v4981
      %v5046 = vpack.c.b16 %v5015, %v5014
      %v5047 = vpack.c.b16 %v5017, %v5016
      %v5048 = vpack.c.b16 %v5019, %v5018
      %v5049 = vpack.c.b16 %v5021, %v5020
      %v5050 = vpack.c.b16 %v5023, %v5022
      %v5051 = vpack.c.b16 %v5025, %v5024
      %v5052 = vpack.c.b16 %v5027, %v5026
      %v5053 = vpack.c.b16 %v5029, %v5028
      %v5054 = vpack.c.b16 %v5031, %v5030
      %v5055 = vpack.c.b16 %v5033, %v5032
      %v5056 = vpack.c.b16 %v5035, %v5034
      %v5057 = vpack.c.b16 %v5037, %v5036
      %v5058 = vpack.c.b16 %v5039, %v5038
      %v5059 = vpack.c.b16 %v5041, %v5040
      %v5060 = vpack.c.b16 %v5043, %v5042
      %v5061 = vpack.c.b16 %v5045, %v5044
      %5078 = vmatprep.subr.bf16.mxu0 0
      %5079 = vmatpush1.bf16.msra.mxu0 %v5046
      %5080 = vmatprep.subr.bf16.mxu0 0
      %5081 = vmatpush1.bf16.msra.mxu0 %v5047
      %5082 = vmatprep.subr.bf16.mxu0 0
      %5083 = vmatpush1.bf16.msra.mxu0 %v5048
      %5084 = vmatprep.subr.bf16.mxu0 0
      %5085 = vmatpush1.bf16.msra.mxu0 %v5049
      %5086 = vmatprep.subr.bf16.mxu0 0
      %5087 = vmatpush1.bf16.msra.mxu0 %v5050
      %5088 = vmatprep.subr.bf16.mxu0 0
      %5089 = vmatpush1.bf16.msra.mxu0 %v5051
      %5090 = vmatprep.subr.bf16.mxu0 0
      %5091 = vmatpush1.bf16.msra.mxu0 %v5052
      %5092 = vmatprep.subr.bf16.mxu0 0
      %5093 = vmatpush1.bf16.msra.mxu0 %v5053
      %5094 = vmatprep.subr.bf16.mxu0 0
      %5095 = vmatpush1.bf16.msra.mxu0 %v5054
      %5096 = vmatprep.subr.bf16.mxu0 0
      %5097 = vmatpush1.bf16.msra.mxu0 %v5055
      %5098 = vmatprep.subr.bf16.mxu0 0
      %5099 = vmatpush1.bf16.msra.mxu0 %v5056
      %5100 = vmatprep.subr.bf16.mxu0 0
      %5101 = vmatpush1.bf16.msra.mxu0 %v5057
      %5102 = vmatprep.subr.bf16.mxu0 0
      %5103 = vmatpush1.bf16.msra.mxu0 %v5058
      %5104 = vmatprep.subr.bf16.mxu0 0
      %5105 = vmatpush1.bf16.msra.mxu0 %v5059
      %5106 = vmatprep.subr.bf16.mxu0 0
      %5107 = vmatpush1.bf16.msra.mxu0 %v5060
      %5108 = vmatprep.subr.bf16.mxu0 0
      %5109 = vmatpush1.bf16.msra.mxu0 %v5061
      %5110 = vmatprep.mubr.bf16.mxu0 %v4935
      %5111 = vmatmul.mubr.bf16.gmra.mrb[0].mxu0 %v4934
      %v5112 = vpop.f32.mrb[0].mxu0
      %v5113 = vadd.f32 0.0, %v5112
      %v5114 = vpop.f32.mrb[0].mxu0
      %v5115 = vpop.f32.mrb[0].mxu0
      %v5116 = vadd.f32 0.0, %v5115
      %v5117 = vpop.f32.mrb[0].mxu0
      %5118 = vmatprep.mubr.bf16.mxu0 %v4937
      %5119 = vmatmul.mubr.bf16.gmra.mrb[0].mxu0 %v4936
      %v5120 = vpop.f32.mrb[0].mxu0
      %v5121 = vadd.f32 0.0, %v5120
      %v5122 = vpop.f32.mrb[0].mxu0
      %v5123 = vpop.f32.mrb[0].mxu0
      %v5124 = vadd.f32 0.0, %v5123
      %v5125 = vpop.f32.mrb[0].mxu0
      %5126 = vmatprep.mubr.bf16.mxu0 %v4939
      %5127 = vmatmul.mubr.bf16.gmra.mrb[0].mxu0 %v4938
      %v5128 = vpop.f32.mrb[0].mxu0
      %v5129 = vadd.f32 0.0, %v5128
      %v5130 = vpop.f32.mrb[0].mxu0
      %v5131 = vpop.f32.mrb[0].mxu0
      %v5132 = vadd.f32 0.0, %v5131
      %v5133 = vpop.f32.mrb[0].mxu0
      %5134 = vmatprep.mubr.bf16.mxu0 %v4941
      %5135 = vmatmul.mubr.bf16.gmra.mrb[0].mxu0 %v4940
      %v5136 = vpop.f32.mrb[0].mxu0
      %v5137 = vadd.f32 0.0, %v5136
      %v5138 = vpop.f32.mrb[0].mxu0
      %v5139 = vpop.f32.mrb[0].mxu0
      %v5140 = vadd.f32 0.0, %v5139
      %v5141 = vpop.f32.mrb[0].mxu0
      %5142 = vmatprep.mubr.bf16.mxu0 %v4943
      %5143 = vmatmul.mubr.bf16.gmra.mrb[0].mxu0 %v4942
      %v5144 = vpop.f32.mrb[0].mxu0
      %v5145 = vadd.f32 0.0, %v5144
      %v5146 = vpop.f32.mrb[0].mxu0
      %v5147 = vpop.f32.mrb[0].mxu0
      %v5148 = vadd.f32 0.0, %v5147
      %v5149 = vpop.f32.mrb[0].mxu0
      %5150 = vmatprep.mubr.bf16.mxu0 %v4945
      %5151 = vmatmul.mubr.bf16.gmra.mrb[0].mxu0 %v4944
      %v5152 = vpop.f32.mrb[0].mxu0
      %v5153 = vadd.f32 0.0, %v5152
      %v5154 = vpop.f32.mrb[0].mxu0
      %v5155 = vpop.f32.mrb[0].mxu0
      %v5156 = vadd.f32 0.0, %v5155
      %v5157 = vpop.f32.mrb[0].mxu0
      %5158 = vmatprep.mubr.bf16.mxu0 %v4947
      %5159 = vmatmul.mubr.bf16.gmra.mrb[0].mxu0 %v4946
      %v5160 = vpop.f32.mrb[0].mxu0
      %v5161 = vadd.f32 0.0, %v5160
      %v5162 = vpop.f32.mrb[0].mxu0
      %v5163 = vpop.f32.mrb[0].mxu0
      %v5164 = vadd.f32 0.0, %v5163
      %v5165 = vpop.f32.mrb[0].mxu0
      %5166 = vmatprep.mubr.bf16.mxu0 %v4949
      %5167 = vmatmul.mubr.bf16.gmra.mrb[0].mxu0 %v4948
      %v5168 = vpop.f32.mrb[0].mxu0
      %v5169 = vadd.f32 0.0, %v5168
      %v5170 = vpop.f32.mrb[0].mxu0
      %v5171 = vpop.f32.mrb[0].mxu0
      %v5172 = vadd.f32 0.0, %v5171
      %v5173 = vpop.f32.mrb[0].mxu0
      %5174 = vdwg.mxu0
      %v5175 = vadd.f32 %v4401, %v5113
      %v5176 = vadd.f32 %v4402, %v5116
      %v5177 = vadd.f32 %v4403, %v5121
      %v5178 = vadd.f32 %v4404, %v5124
      %v5179 = vadd.f32 %v4405, %v5129
      %v5180 = vadd.f32 %v4406, %v5132
      %v5181 = vadd.f32 %v4407, %v5137
      %v5182 = vadd.f32 %v4408, %v5140
      %v5183 = vadd.f32 %v4409, %v5145
      %v5184 = vadd.f32 %v4410, %v5148
      %v5185 = vadd.f32 %v4411, %v5153
      %v5186 = vadd.f32 %v4412, %v5156
      %v5187 = vadd.f32 %v4413, %v5161
      %v5188 = vadd.f32 %v4414, %v5164
      %v5189 = vadd.f32 %v4415, %v5169
      %v5190 = vadd.f32 %v4416, %v5172
      %v5191 = vld [vmem:[%s657] sm:$0x1]
      %v5193 = vlaneseq
      %v5194 = vshrl.u32 %v5193, 7
      %v5195 = vsub.s32 0, %v5194
      %v5196 = vrot.slane %v5191, %v5195
      %v5198 = vadd.f32 %v5175, %v5196
      %v5199 = vadd.f32 %v5176, %v5196
      %v5200 = vadd.f32 %v5177, %v5196
      %v5201 = vadd.f32 %v5178, %v5196
      %v5202 = vadd.f32 %v5179, %v5196
      %v5203 = vadd.f32 %v5180, %v5196
      %v5204 = vadd.f32 %v5181, %v5196
      %v5205 = vadd.f32 %v5182, %v5196
      %v5206 = vadd.f32 %v5183, %v5196
      %v5207 = vadd.f32 %v5184, %v5196
      %v5208 = vadd.f32 %v5185, %v5196
      %v5209 = vadd.f32 %v5186, %v5196
      %v5210 = vadd.f32 %v5187, %v5196
      %v5211 = vadd.f32 %v5188, %v5196
      %v5212 = vadd.f32 %v5189, %v5196
      %v5213 = vadd.f32 %v5190, %v5196
      %p5214 = scmp.lt.s32.totalorder %s30, 1
      // Predicated region
      $region81: #{cross_vit_forward.1} parent=75 // pred_check
        %p5215 = pneg %p5214
      $region82: #{cross_vit_forward.1} parent=75 // pred_check_branch
        %5217 = sbr.rel (%p5215) target = $region84
      $region83: #{cross_vit_forward.1} parent=75 // pred_region
        %5218 = vst [vmem:[%s662] sm:$0xff] %v5198
        %5219 = vst [vmem:[%s662 + $0x8] sm:$0xff] %v5199
        %5220 = vst [vmem:[%s662 + $0x10] sm:$0xff] %v5200
        %5221 = vst [vmem:[%s662 + $0x18] sm:$0xff] %v5201
        %5222 = vst [vmem:[%s662 + $0x20] sm:$0xff] %v5202
        %5223 = vst [vmem:[%s662 + $0x28] sm:$0xff] %v5203
        %5224 = vst [vmem:[%s662 + $0x30] sm:$0xff] %v5204
        %5225 = vst [vmem:[%s662 + $0x38] sm:$0xff] %v5205
        %5226 = vst [vmem:[%s662 + $0x40] sm:$0xff] %v5206
        %5227 = vst [vmem:[%s662 + $0x48] sm:$0xff] %v5207
        %5228 = vst [vmem:[%s662 + $0x50] sm:$0xff] %v5208
        %5229 = vst [vmem:[%s662 + $0x58] sm:$0xff] %v5209
        %5230 = vst [vmem:[%s662 + $0x60] sm:$0xff] %v5210
        %5231 = vst [vmem:[%s662 + $0x68] sm:$0xff] %v5211
        %5232 = vst [vmem:[%s662 + $0x70] sm:$0xff] %v5212
        %5233 = vst [vmem:[%s662 + $0x78] sm:$0xff] %v5213
      $region84: #{cross_vit_forward.1} parent=75 // pred_fallthru
        _
      %p5234 = scmp.eq.s32.totalorder %s30, 1
      // Predicated region
      $region85: #{cross_vit_forward.1} parent=75 // pred_check
        %p5235 = pneg %p5234
      $region86: #{cross_vit_forward.1} parent=75 // pred_check_branch
        %5237 = sbr.rel (%p5235) target = $region88
      $region87: #{cross_vit_forward.1} parent=75 // pred_region
        %v5238 = vld [vmem:[%s12] sm:$0x1]
        %v5239 = vld [vmem:[%s13] sm:$0x1]
        %v5240 = vsel %vm719, %v5198, 0.0
        %v5241 = vsel %vm719, %v5199, 0.0
        %v5242 = vsel %vm719, %v5200, 0.0
        %v5243 = vsel %vm719, %v5201, 0.0
        %v5244 = vsel %vm719, %v5202, 0.0
        %v5245 = vsel %vm719, %v5203, 0.0
        %v5246 = vsel %vm719, %v5204, 0.0
        %v5247 = vsel %vm719, %v5205, 0.0
        %v5248 = vsel %vm719, %v5206, 0.0
        %v5249 = vsel %vm719, %v5207, 0.0
        %v5250 = vsel %vm719, %v5208, 0.0
        %v5251 = vsel %vm719, %v5209, 0.0
        %v5252 = vsel %vm719, %v5210, 0.0
        %v5253 = vsel %vm719, %v5211, 0.0
        %v5254 = vsel %vm719, %v5212, 0.0
        %v5255 = vsel %vm719, %v5213, 0.0
        %5256 = vadd.xlane.f32.xlu0 %v5240
        %v5257 = vpop.xlane.xlu0 %5256
        %5258 = vadd.xlane.f32.xlu0 %v5241
        %v5259 = vpop.xlane.xlu0 %5258
        %5260 = vadd.xlane.f32.xlu0 %v5242
        %v5261 = vpop.xlane.xlu0 %5260
        %5262 = vadd.xlane.f32.xlu0 %v5243
        %v5263 = vpop.xlane.xlu0 %5262
        %5264 = vadd.xlane.f32.xlu0 %v5244
        %v5265 = vpop.xlane.xlu0 %5264
        %5266 = vadd.xlane.f32.xlu0 %v5245
        %v5267 = vpop.xlane.xlu0 %5266
        %5268 = vadd.xlane.f32.xlu0 %v5246
        %v5269 = vpop.xlane.xlu0 %5268
        %5270 = vadd.xlane.f32.xlu0 %v5247
        %v5271 = vpop.xlane.xlu0 %5270
        %5272 = vadd.xlane.f32.xlu0 %v5248
        %v5273 = vpop.xlane.xlu0 %5272
        %5274 = vadd.xlane.f32.xlu0 %v5249
        %v5275 = vpop.xlane.xlu0 %5274
        %5276 = vadd.xlane.f32.xlu0 %v5250
        %v5277 = vpop.xlane.xlu0 %5276
        %5278 = vadd.xlane.f32.xlu0 %v5251
        %v5279 = vpop.xlane.xlu0 %5278
        %5280 = vadd.xlane.f32.xlu0 %v5252
        %v5281 = vpop.xlane.xlu0 %5280
        %5282 = vadd.xlane.f32.xlu0 %v5253
        %v5283 = vpop.xlane.xlu0 %5282
        %5284 = vadd.xlane.f32.xlu0 %v5254
        %v5285 = vpop.xlane.xlu0 %5284
        %5286 = vadd.xlane.f32.xlu0 %v5255
        %v5287 = vpop.xlane.xlu0 %5286
        %v5288 = vsel %vm719, 0.0, %v5198
        %v5289 = vsel %vm719, 0.0, %v5199
        %v5290 = vsel %vm719, 0.0, %v5200
        %v5291 = vsel %vm719, 0.0, %v5201
        %v5292 = vsel %vm719, 0.0, %v5202
        %v5293 = vsel %vm719, 0.0, %v5203
        %v5294 = vsel %vm719, 0.0, %v5204
        %v5295 = vsel %vm719, 0.0, %v5205
        %v5296 = vsel %vm719, 0.0, %v5206
        %v5297 = vsel %vm719, 0.0, %v5207
        %v5298 = vsel %vm719, 0.0, %v5208
        %v5299 = vsel %vm719, 0.0, %v5209
        %v5300 = vsel %vm719, 0.0, %v5210
        %v5301 = vsel %vm719, 0.0, %v5211
        %v5302 = vsel %vm719, 0.0, %v5212
        %v5303 = vsel %vm719, 0.0, %v5213
        %5304 = vadd.xlane.f32.xlu0 %v5288
        %v5305 = vpop.xlane.xlu0 %5304
        %5306 = vadd.xlane.f32.xlu0 %v5289
        %v5307 = vpop.xlane.xlu0 %5306
        %5308 = vadd.xlane.f32.xlu0 %v5290
        %v5309 = vpop.xlane.xlu0 %5308
        %5310 = vadd.xlane.f32.xlu0 %v5291
        %v5311 = vpop.xlane.xlu0 %5310
        %5312 = vadd.xlane.f32.xlu0 %v5292
        %v5313 = vpop.xlane.xlu0 %5312
        %5314 = vadd.xlane.f32.xlu0 %v5293
        %v5315 = vpop.xlane.xlu0 %5314
        %5316 = vadd.xlane.f32.xlu0 %v5294
        %v5317 = vpop.xlane.xlu0 %5316
        %5318 = vadd.xlane.f32.xlu0 %v5295
        %v5319 = vpop.xlane.xlu0 %5318
        %5320 = vadd.xlane.f32.xlu0 %v5296
        %v5321 = vpop.xlane.xlu0 %5320
        %5322 = vadd.xlane.f32.xlu0 %v5297
        %v5323 = vpop.xlane.xlu0 %5322
        %5324 = vadd.xlane.f32.xlu0 %v5298
        %v5325 = vpop.xlane.xlu0 %5324
        %5326 = vadd.xlane.f32.xlu0 %v5299
        %v5327 = vpop.xlane.xlu0 %5326
        %5328 = vadd.xlane.f32.xlu0 %v5300
        %v5329 = vpop.xlane.xlu0 %5328
        %5330 = vadd.xlane.f32.xlu0 %v5301
        %v5331 = vpop.xlane.xlu0 %5330
        %5332 = vadd.xlane.f32.xlu0 %v5302
        %v5333 = vpop.xlane.xlu0 %5332
        %5334 = vadd.xlane.f32.xlu0 %v5303
        %v5335 = vpop.xlane.xlu0 %5334
        %v5336 = vsel %vm719, %v5257, %v5305
        %v5337 = vsel %vm719, %v5259, %v5307
        %v5338 = vsel %vm719, %v5261, %v5309
        %v5339 = vsel %vm719, %v5263, %v5311
        %v5340 = vsel %vm719, %v5265, %v5313
        %v5341 = vsel %vm719, %v5267, %v5315
        %v5342 = vsel %vm719, %v5269, %v5317
        %v5343 = vsel %vm719, %v5271, %v5319
        %v5344 = vsel %vm719, %v5273, %v5321
        %v5345 = vsel %vm719, %v5275, %v5323
        %v5346 = vsel %vm719, %v5277, %v5325
        %v5347 = vsel %vm719, %v5279, %v5327
        %v5348 = vsel %vm719, %v5281, %v5329
        %v5349 = vsel %vm719, %v5283, %v5331
        %v5350 = vsel %vm719, %v5285, %v5333
        %v5351 = vsel %vm719, %v5287, %v5335
        %v5352 = vmul.f32 %v5336, 0.015625
        %v5353 = vmul.f32 %v5337, 0.015625
        %v5354 = vmul.f32 %v5338, 0.015625
        %v5355 = vmul.f32 %v5339, 0.015625
        %v5356 = vmul.f32 %v5340, 0.015625
        %v5357 = vmul.f32 %v5341, 0.015625
        %v5358 = vmul.f32 %v5342, 0.015625
        %v5359 = vmul.f32 %v5343, 0.015625
        %v5360 = vmul.f32 %v5344, 0.015625
        %v5361 = vmul.f32 %v5345, 0.015625
        %v5362 = vmul.f32 %v5346, 0.015625
        %v5363 = vmul.f32 %v5347, 0.015625
        %v5364 = vmul.f32 %v5348, 0.015625
        %v5365 = vmul.f32 %v5349, 0.015625
        %v5366 = vmul.f32 %v5350, 0.015625
        %v5367 = vmul.f32 %v5351, 0.015625
        %v5368 = vsub.f32 %v5198, %v5352
        %v5369 = vsub.f32 %v5199, %v5353
        %v5370 = vsub.f32 %v5200, %v5354
        %v5371 = vsub.f32 %v5201, %v5355
        %v5372 = vsub.f32 %v5202, %v5356
        %v5373 = vsub.f32 %v5203, %v5357
        %v5374 = vsub.f32 %v5204, %v5358
        %v5375 = vsub.f32 %v5205, %v5359
        %v5376 = vsub.f32 %v5206, %v5360
        %v5377 = vsub.f32 %v5207, %v5361
        %v5378 = vsub.f32 %v5208, %v5362
        %v5379 = vsub.f32 %v5209, %v5363
        %v5380 = vsub.f32 %v5210, %v5364
        %v5381 = vsub.f32 %v5211, %v5365
        %v5382 = vsub.f32 %v5212, %v5366
        %v5383 = vsub.f32 %v5213, %v5367
        %v5384 = vmul.f32 %v5368, %v5368
        %v5385 = vmul.f32 %v5369, %v5369
        %v5386 = vmul.f32 %v5370, %v5370
        %v5387 = vmul.f32 %v5371, %v5371
        %v5388 = vmul.f32 %v5372, %v5372
        %v5389 = vmul.f32 %v5373, %v5373
        %v5390 = vmul.f32 %v5374, %v5374
        %v5391 = vmul.f32 %v5375, %v5375
        %v5392 = vmul.f32 %v5376, %v5376
        %v5393 = vmul.f32 %v5377, %v5377
        %v5394 = vmul.f32 %v5378, %v5378
        %v5395 = vmul.f32 %v5379, %v5379
        %v5396 = vmul.f32 %v5380, %v5380
        %v5397 = vmul.f32 %v5381, %v5381
        %v5398 = vmul.f32 %v5382, %v5382
        %v5399 = vmul.f32 %v5383, %v5383
        %v5400 = vsel %vm719, %v5384, 0.0
        %v5401 = vsel %vm719, %v5385, 0.0
        %v5402 = vsel %vm719, %v5386, 0.0
        %v5403 = vsel %vm719, %v5387, 0.0
        %v5404 = vsel %vm719, %v5388, 0.0
        %v5405 = vsel %vm719, %v5389, 0.0
        %v5406 = vsel %vm719, %v5390, 0.0
        %v5407 = vsel %vm719, %v5391, 0.0
        %v5408 = vsel %vm719, %v5392, 0.0
        %v5409 = vsel %vm719, %v5393, 0.0
        %v5410 = vsel %vm719, %v5394, 0.0
        %v5411 = vsel %vm719, %v5395, 0.0
        %v5412 = vsel %vm719, %v5396, 0.0
        %v5413 = vsel %vm719, %v5397, 0.0
        %v5414 = vsel %vm719, %v5398, 0.0
        %v5415 = vsel %vm719, %v5399, 0.0
        %5416 = vadd.xlane.f32.xlu0 %v5400
        %v5417 = vpop.xlane.xlu0 %5416
        %5418 = vadd.xlane.f32.xlu0 %v5401
        %v5419 = vpop.xlane.xlu0 %5418
        %5420 = vadd.xlane.f32.xlu0 %v5402
        %v5421 = vpop.xlane.xlu0 %5420
        %5422 = vadd.xlane.f32.xlu0 %v5403
        %v5423 = vpop.xlane.xlu0 %5422
        %5424 = vadd.xlane.f32.xlu0 %v5404
        %v5425 = vpop.xlane.xlu0 %5424
        %5426 = vadd.xlane.f32.xlu0 %v5405
        %v5427 = vpop.xlane.xlu0 %5426
        %5428 = vadd.xlane.f32.xlu0 %v5406
        %v5429 = vpop.xlane.xlu0 %5428
        %5430 = vadd.xlane.f32.xlu0 %v5407
        %v5431 = vpop.xlane.xlu0 %5430
        %5432 = vadd.xlane.f32.xlu0 %v5408
        %v5433 = vpop.xlane.xlu0 %5432
        %5434 = vadd.xlane.f32.xlu0 %v5409
        %v5435 = vpop.xlane.xlu0 %5434
        %5436 = vadd.xlane.f32.xlu0 %v5410
        %v5437 = vpop.xlane.xlu0 %5436
        %5438 = vadd.xlane.f32.xlu0 %v5411
        %v5439 = vpop.xlane.xlu0 %5438
        %5440 = vadd.xlane.f32.xlu0 %v5412
        %v5441 = vpop.xlane.xlu0 %5440
        %5442 = vadd.xlane.f32.xlu0 %v5413
        %v5443 = vpop.xlane.xlu0 %5442
        %5444 = vadd.xlane.f32.xlu0 %v5414
        %v5445 = vpop.xlane.xlu0 %5444
        %5446 = vadd.xlane.f32.xlu0 %v5415
        %v5447 = vpop.xlane.xlu0 %5446
        %v5448 = vsel %vm719, 0.0, %v5384
        %v5449 = vsel %vm719, 0.0, %v5385
        %v5450 = vsel %vm719, 0.0, %v5386
        %v5451 = vsel %vm719, 0.0, %v5387
        %v5452 = vsel %vm719, 0.0, %v5388
        %v5453 = vsel %vm719, 0.0, %v5389
        %v5454 = vsel %vm719, 0.0, %v5390
        %v5455 = vsel %vm719, 0.0, %v5391
        %v5456 = vsel %vm719, 0.0, %v5392
        %v5457 = vsel %vm719, 0.0, %v5393
        %v5458 = vsel %vm719, 0.0, %v5394
        %v5459 = vsel %vm719, 0.0, %v5395
        %v5460 = vsel %vm719, 0.0, %v5396
        %v5461 = vsel %vm719, 0.0, %v5397
        %v5462 = vsel %vm719, 0.0, %v5398
        %v5463 = vsel %vm719, 0.0, %v5399
        %5464 = vadd.xlane.f32.xlu0 %v5448
        %v5465 = vpop.xlane.xlu0 %5464
        %5466 = vadd.xlane.f32.xlu0 %v5449
        %v5467 = vpop.xlane.xlu0 %5466
        %5468 = vadd.xlane.f32.xlu0 %v5450
        %v5469 = vpop.xlane.xlu0 %5468
        %5470 = vadd.xlane.f32.xlu0 %v5451
        %v5471 = vpop.xlane.xlu0 %5470
        %5472 = vadd.xlane.f32.xlu0 %v5452
        %v5473 = vpop.xlane.xlu0 %5472
        %5474 = vadd.xlane.f32.xlu0 %v5453
        %v5475 = vpop.xlane.xlu0 %5474
        %5476 = vadd.xlane.f32.xlu0 %v5454
        %v5477 = vpop.xlane.xlu0 %5476
        %5478 = vadd.xlane.f32.xlu0 %v5455
        %v5479 = vpop.xlane.xlu0 %5478
        %5480 = vadd.xlane.f32.xlu0 %v5456
        %v5481 = vpop.xlane.xlu0 %5480
        %5482 = vadd.xlane.f32.xlu0 %v5457
        %v5483 = vpop.xlane.xlu0 %5482
        %5484 = vadd.xlane.f32.xlu0 %v5458
        %v5485 = vpop.xlane.xlu0 %5484
        %5486 = vadd.xlane.f32.xlu0 %v5459
        %v5487 = vpop.xlane.xlu0 %5486
        %5488 = vadd.xlane.f32.xlu0 %v5460
        %v5489 = vpop.xlane.xlu0 %5488
        %5490 = vadd.xlane.f32.xlu0 %v5461
        %v5491 = vpop.xlane.xlu0 %5490
        %5492 = vadd.xlane.f32.xlu0 %v5462
        %v5493 = vpop.xlane.xlu0 %5492
        %5494 = vadd.xlane.f32.xlu0 %v5463
        %v5495 = vpop.xlane.xlu0 %5494
        %v5496 = vsel %vm719, %v5417, %v5465
        %v5497 = vsel %vm719, %v5419, %v5467
        %v5498 = vsel %vm719, %v5421, %v5469
        %v5499 = vsel %vm719, %v5423, %v5471
        %v5500 = vsel %vm719, %v5425, %v5473
        %v5501 = vsel %vm719, %v5427, %v5475
        %v5502 = vsel %vm719, %v5429, %v5477
        %v5503 = vsel %vm719, %v5431, %v5479
        %v5504 = vsel %vm719, %v5433, %v5481
        %v5505 = vsel %vm719, %v5435, %v5483
        %v5506 = vsel %vm719, %v5437, %v5485
        %v5507 = vsel %vm719, %v5439, %v5487
        %v5508 = vsel %vm719, %v5441, %v5489
        %v5509 = vsel %vm719, %v5443, %v5491
        %v5510 = vsel %vm719, %v5445, %v5493
        %v5511 = vsel %vm719, %v5447, %v5495
        %v5512 = vmul.f32 %v5496, 0.015625
        %v5513 = vmul.f32 %v5497, 0.015625
        %v5514 = vmul.f32 %v5498, 0.015625
        %v5515 = vmul.f32 %v5499, 0.015625
        %v5516 = vmul.f32 %v5500, 0.015625
        %v5517 = vmul.f32 %v5501, 0.015625
        %v5518 = vmul.f32 %v5502, 0.015625
        %v5519 = vmul.f32 %v5503, 0.015625
        %v5520 = vmul.f32 %v5504, 0.015625
        %v5521 = vmul.f32 %v5505, 0.015625
        %v5522 = vmul.f32 %v5506, 0.015625
        %v5523 = vmul.f32 %v5507, 0.015625
        %v5524 = vmul.f32 %v5508, 0.015625
        %v5525 = vmul.f32 %v5509, 0.015625
        %v5526 = vmul.f32 %v5510, 0.015625
        %v5527 = vmul.f32 %v5511, 0.015625
        %v5528 = vadd.f32 %v5512, 1e-05
        %v5529 = vadd.f32 %v5513, 1e-05
        %v5530 = vadd.f32 %v5514, 1e-05
        %v5531 = vadd.f32 %v5515, 1e-05
        %v5532 = vadd.f32 %v5516, 1e-05
        %v5533 = vadd.f32 %v5517, 1e-05
        %v5534 = vadd.f32 %v5518, 1e-05
        %v5535 = vadd.f32 %v5519, 1e-05
        %v5536 = vadd.f32 %v5520, 1e-05
        %v5537 = vadd.f32 %v5521, 1e-05
        %v5538 = vadd.f32 %v5522, 1e-05
        %v5539 = vadd.f32 %v5523, 1e-05
        %v5540 = vadd.f32 %v5524, 1e-05
        %v5541 = vadd.f32 %v5525, 1e-05
        %v5542 = vadd.f32 %v5526, 1e-05
        %v5543 = vadd.f32 %v5527, 1e-05
        %v5544 = vrsqrt.pop %v5528
        %v5545 = vrsqrt.pop %v5529
        %v5546 = vrsqrt.pop %v5530
        %v5547 = vrsqrt.pop %v5531
        %v5548 = vrsqrt.pop %v5532
        %v5549 = vrsqrt.pop %v5533
        %v5550 = vrsqrt.pop %v5534
        %v5551 = vrsqrt.pop %v5535
        %v5552 = vrsqrt.pop %v5536
        %v5553 = vrsqrt.pop %v5537
        %v5554 = vrsqrt.pop %v5538
        %v5555 = vrsqrt.pop %v5539
        %v5556 = vrsqrt.pop %v5540
        %v5557 = vrsqrt.pop %v5541
        %v5558 = vrsqrt.pop %v5542
        %v5559 = vrsqrt.pop %v5543
        %v5560 = vmul.f32 %v5368, %v5544
        %v5561 = vmul.f32 %v5369, %v5545
        %v5562 = vmul.f32 %v5370, %v5546
        %v5563 = vmul.f32 %v5371, %v5547
        %v5564 = vmul.f32 %v5372, %v5548
        %v5565 = vmul.f32 %v5373, %v5549
        %v5566 = vmul.f32 %v5374, %v5550
        %v5567 = vmul.f32 %v5375, %v5551
        %v5568 = vmul.f32 %v5376, %v5552
        %v5569 = vmul.f32 %v5377, %v5553
        %v5570 = vmul.f32 %v5378, %v5554
        %v5571 = vmul.f32 %v5379, %v5555
        %v5572 = vmul.f32 %v5380, %v5556
        %v5573 = vmul.f32 %v5381, %v5557
        %v5574 = vmul.f32 %v5382, %v5558
        %v5575 = vmul.f32 %v5383, %v5559
        %v5577 = vlaneseq
        %v5578 = vshrl.u32 %v5577, 7
        %v5579 = vsub.s32 0, %v5578
        %v5580 = vrot.slane %v5238, %v5579
        %v5582 = vmul.f32 %v5560, %v5580
        %v5583 = vmul.f32 %v5561, %v5580
        %v5584 = vmul.f32 %v5562, %v5580
        %v5585 = vmul.f32 %v5563, %v5580
        %v5586 = vmul.f32 %v5564, %v5580
        %v5587 = vmul.f32 %v5565, %v5580
        %v5588 = vmul.f32 %v5566, %v5580
        %v5589 = vmul.f32 %v5567, %v5580
        %v5590 = vmul.f32 %v5568, %v5580
        %v5591 = vmul.f32 %v5569, %v5580
        %v5592 = vmul.f32 %v5570, %v5580
        %v5593 = vmul.f32 %v5571, %v5580
        %v5594 = vmul.f32 %v5572, %v5580
        %v5595 = vmul.f32 %v5573, %v5580
        %v5596 = vmul.f32 %v5574, %v5580
        %v5597 = vmul.f32 %v5575, %v5580
        %v5599 = vlaneseq
        %v5600 = vshrl.u32 %v5599, 7
        %v5601 = vsub.s32 0, %v5600
        %v5602 = vrot.slane %v5239, %v5601
        %v5604 = vadd.f32 %v5582, %v5602
        %v5605 = vadd.f32 %v5583, %v5602
        %v5606 = vadd.f32 %v5584, %v5602
        %v5607 = vadd.f32 %v5585, %v5602
        %v5608 = vadd.f32 %v5586, %v5602
        %v5609 = vadd.f32 %v5587, %v5602
        %v5610 = vadd.f32 %v5588, %v5602
        %v5611 = vadd.f32 %v5589, %v5602
        %v5612 = vadd.f32 %v5590, %v5602
        %v5613 = vadd.f32 %v5591, %v5602
        %v5614 = vadd.f32 %v5592, %v5602
        %v5615 = vadd.f32 %v5593, %v5602
        %v5616 = vadd.f32 %v5594, %v5602
        %v5617 = vadd.f32 %v5595, %v5602
        %v5618 = vadd.f32 %v5596, %v5602
        %v5619 = vadd.f32 %v5597, %v5602
        %5620 = vst [vmem:[%s662] sm:$0xff] %v5604
        %5621 = vst [vmem:[%s662 + $0x8] sm:$0xff] %v5605
        %5622 = vst [vmem:[%s662 + $0x10] sm:$0xff] %v5606
        %5623 = vst [vmem:[%s662 + $0x18] sm:$0xff] %v5607
        %5624 = vst [vmem:[%s662 + $0x20] sm:$0xff] %v5608
        %5625 = vst [vmem:[%s662 + $0x28] sm:$0xff] %v5609
        %5626 = vst [vmem:[%s662 + $0x30] sm:$0xff] %v5610
        %5627 = vst [vmem:[%s662 + $0x38] sm:$0xff] %v5611
        %5628 = vst [vmem:[%s662 + $0x40] sm:$0xff] %v5612
        %5629 = vst [vmem:[%s662 + $0x48] sm:$0xff] %v5613
        %5630 = vst [vmem:[%s662 + $0x50] sm:$0xff] %v5614
        %5631 = vst [vmem:[%s662 + $0x58] sm:$0xff] %v5615
        %5632 = vst [vmem:[%s662 + $0x60] sm:$0xff] %v5616
        %5633 = vst [vmem:[%s662 + $0x68] sm:$0xff] %v5617
        %5634 = vst [vmem:[%s662 + $0x70] sm:$0xff] %v5618
        %5635 = vst [vmem:[%s662 + $0x78] sm:$0xff] %v5619
      $region88: #{cross_vit_forward.1} parent=75 // pred_fallthru
        _
      %s5636 = smul.u32 16, %s29
      %p5637 = scmp.lt.s32.totalorder %s5636, 15
      %s5638 = scalar_select %p5637, %s5636, 15
      %s5639 = smul.addr %s5638, 8
      %s5640 = scalar_lea.vmem %s14, %s5639
      // Predicated region
      $region89: #{cross_vit_forward.1} parent=75 // pred_check
        %p5641 = pneg %p409
      $region90: #{cross_vit_forward.1} parent=75 // pred_check_branch
        %5643 = sbr.rel (%p5641) target = $region92
      $region91: #{cross_vit_forward.1} parent=75 // pred_region
        %s5644 = smul.u32 16, %s29
      $region92: #{cross_vit_forward.1} parent=75 // pred_fallthru
        _
      // Predicated region
      $region93: #{cross_vit_forward.1} parent=75 // pred_check
        %p5645 = pneg %p409
      $region94: #{cross_vit_forward.1} parent=75 // pred_check_branch
        %5647 = sbr.rel (%p5645) target = $region96
      $region95: #{cross_vit_forward.1} parent=75 // pred_region
        %s5648 = smul.u32 16, %s29
        %p5649 = scmp.lt.s32.totalorder %s5648, 15
        %s5650 = scalar_select %p5649, %s5648, 15
        %s5651 = smul.addr %s5650, 8
        %s5652 = scalar_lea.vmem %s14, %s5651
      $region96: #{cross_vit_forward.1} parent=75 // pred_fallthru
        _
    $region76: #{cross_vit_forward.1} parent=5 // pred_fallthru
      _
    %p5653 = scmp.le.s32.totalorder 2, %s20
    // Predicated region
    $region97: #{cross_vit_forward.1} parent=5 // pred_check
      %p5654 = pneg %p5653
    $region98: #{cross_vit_forward.1} parent=5 // pred_check_branch
      %5656 = sbr.rel (%p5654) target = $region100
    $region99: #{cross_vit_forward.1} parent=5 // pred_region
      %s5657 = ssub.s32 %s20, 2
    $region100: #{cross_vit_forward.1} parent=5 // pred_fallthru
      _
  $region6: #{cross_vit_forward.1} parent=0 // loop_footer
    %s24 = sadd.s32 1, %s20
  $region7: #{cross_vit_forward.1} parent=0 // loop_footer_branch
    %19 = sbr.rel target = $region3
  $region8: #{cross_vit_forward.1} parent=0 // loop_exit
    _

</llo_original>
